<compile_context>
chip_gen: v7x
topology: tpu7x:2x2x1
jax: 0.10.0
libtpu: 0.0.40
codegen_flags: <defaults>
</compile_context>

<pallas_src>
import jax
import jax.numpy as jnp
from jax import lax
from jax.experimental import pallas as pl
from jax.experimental.pallas import tpu as pltpu

NEG_SLOPE = 0.01
NORM_EPS = 1e-12  # F.normalize default eps

# Layer dims of the nn.Sequential in SphereEncoder
DIMS = [3, 30, 150, 150, 150, 150, 30, 3]
N_LAYERS = len(DIMS) - 1  # 7 Linear layers


def _round_up(v, m):
    return (v + m - 1) // m * m


# Bias packing: each layer's bias segment starts on an 8-sublane boundary.
B_OFFS = []
_off = 0
for _d in DIMS[1:]:
    B_OFFS.append(_off)
    _off += _round_up(_d, 8)
B_TOTAL = _off  # 680


def _leaky_relu(h):
    return jnp.where(h >= 0, h, NEG_SLOPE * h)


def sphere_encoder_kernel(x_ref, w0_ref, w1_ref, wmid_ref, w5_ref, w6_ref,
                          b_ref, o_ref):
    # Activations are (features, rows): rows (multiple of 128) on the lane axis.

    def bias(layer):  # static slice of the packed bias array -> (out_d, 1) f32
        off = B_OFFS[layer]
        return b_ref[off:off + DIMS[layer + 1], :]

    x = x_ref[...].astype(jnp.float32)                        # (3, TM)

    # Layer 0 (3 -> 30): K=3 -> 3 lane-dense VPU FMAs, no MXU pass.
    w0 = w0_ref[...]                                          # (30, 3) f32
    h = (w0[:, 0:1] * x[0:1, :]
         + w0[:, 1:2] * x[1:2, :]
         + w0[:, 2:3] * x[2:3, :]
         + bias(0))                                           # (30, TM) f32
    h = _leaky_relu(h)

    # Layer 1 (30 -> 150): MXU, bf16 operands, f32 accumulation.
    h = jnp.dot(w1_ref[...], h.astype(jnp.bfloat16),
                preferred_element_type=jnp.float32) + bias(1)
    h = _leaky_relu(h)

    # Layers 2..4 (150 -> 150): MXU.
    for i in range(3):
        h = jnp.dot(wmid_ref[i], h.astype(jnp.bfloat16),
                    preferred_element_type=jnp.float32) + bias(2 + i)
        h = _leaky_relu(h)

    # Layer 5 (150 -> 30): MXU.
    h = jnp.dot(w5_ref[...], h.astype(jnp.bfloat16),
                preferred_element_type=jnp.float32) + bias(5)
    h = _leaky_relu(h)                                        # (30, TM) f32

    # Layer 6 (30 -> 3): <2% MXU fill -> 30 lane-dense VPU FMAs instead (f32).
    w6 = w6_ref[...]                                          # (3, 30) f32
    out = bias(6) + w6[:, 0:1] * h[0:1, :]
    for k in range(1, DIMS[6]):
        out = out + w6[:, k:k + 1] * h[k:k + 1, :]            # (3, TM) f32

    # F.normalize: h / max(||h||, eps) == h * rsqrt(max(||h||^2, eps^2))
    sq = jnp.sum(out * out, axis=0, keepdims=True)            # (1, TM)
    inv = lax.rsqrt(jnp.maximum(sq, NORM_EPS * NORM_EPS))     # EUP
    o_ref[...] = (out * inv).astype(o_ref.dtype)


def init_params(key):
    """PyTorch-layout params: w is (out_dim, in_dim), b is (out_dim,).
    Mimics nn.Linear default init (uniform +-1/sqrt(fan_in))."""
    params = []
    for i in range(N_LAYERS):
        fan_in, fan_out = DIMS[i], DIMS[i + 1]
        key, kw, kb = jax.random.split(key, 3)
        bound = 1.0 / jnp.sqrt(jnp.float32(fan_in))
        w = jax.random.uniform(kw, (fan_out, fan_in), jnp.float32, -bound, bound)
        b = jax.random.uniform(kb, (fan_out,), jnp.float32, -bound, bound)
        params.append((w, b))
    return params


def _pack_params(params):
    """Pack the 7 (w, b) pairs into 6 kernel operands."""
    w0 = jnp.asarray(params[0][0], jnp.float32)                     # (30, 3)   VPU
    w1 = jnp.asarray(params[1][0], jnp.bfloat16)                    # (150, 30) MXU
    wmid = jnp.stack([jnp.asarray(params[l][0], jnp.bfloat16)
                      for l in (2, 3, 4)])                          # (3,150,150)
    w5 = jnp.asarray(params[5][0], jnp.bfloat16)                    # (30, 150) MXU
    w6 = jnp.asarray(params[6][0], jnp.float32)                     # (3, 30)   VPU
    b_all = jnp.zeros((B_TOTAL, 1), jnp.float32)
    for l, (_, b) in enumerate(params):
        b_all = b_all.at[B_OFFS[l]:B_OFFS[l] + DIMS[l + 1], 0].set(
            jnp.asarray(b, jnp.float32))
    return w0, w1, wmid, w5, w6, b_all


def _pick_tile_m(n, max_tile=4096):
    """Largest row tile (multiple of 128, divides n, <= max_tile), preferring
    an EVEN number of grid steps (both v7x TensorCores busy), then >= 2 steps,
    then any divisor.  n is already padded to a multiple of 256."""
    best_even = best_multi = best_any = None
    t = 128
    while t <= min(n, max_tile):
        if n % t == 0:
            best_any = t
            steps = n // t
            if steps >= 2:
                best_multi = t
                if steps % 2 == 0:
                    best_even = t
        t += 128
    for cand in (best_even, best_multi, best_any):
        if cand is not None:
            return cand
    return n


def sphere_encoder(x, params, *, tile_m=None, max_tile=4096):
    N, F = x.shape
    assert F == DIMS[0]

    # Pad the point count to a multiple of 256: lane-dense unmasked stores and
    # an even grid-step count always exist.  Zero rows are harmless (eps clamp).
    n_pad = _round_up(max(N, 256), 256)
    if tile_m is None:
        tile_m = _pick_tile_m(n_pad, max_tile=max_tile)
    assert n_pad % tile_m == 0 and tile_m % 128 == 0

    # Transposed, lane-dense input: (features, rows).  Done once, outside the
    # kernel (negligible for the compute-bound regime).
    x_t = jnp.asarray(x, jnp.float32).T                        # (3, N)
    if n_pad != N:
        x_t = jnp.pad(x_t, ((0, 0), (0, n_pad - N)))

    w0, w1, wmid, w5, w6, b_all = _pack_params(params)

    in_specs = [
        pl.BlockSpec((DIMS[0], tile_m), lambda i: (0, i)),     # x
        pl.BlockSpec(w0.shape, lambda i: (0, 0)),              # (30, 3) f32
        pl.BlockSpec(w1.shape, lambda i: (0, 0)),              # (150, 30) bf16
        pl.BlockSpec(wmid.shape, lambda i: (0, 0, 0)),         # (3,150,150) bf16
        pl.BlockSpec(w5.shape, lambda i: (0, 0)),              # (30, 150) bf16
        pl.BlockSpec(w6.shape, lambda i: (0, 0)),              # (3, 30) f32
        pl.BlockSpec(b_all.shape, lambda i: (0, 0)),           # (680, 1) f32
    ]
    out_spec = pl.BlockSpec((DIMS[-1], tile_m), lambda i: (0, i))

    out_t = pl.pallas_call(
        sphere_encoder_kernel,
        out_shape=jax.ShapeDtypeStruct((DIMS[-1], n_pad), jnp.float32),
        grid_spec=pltpu.PrefetchScalarGridSpec(
            num_scalar_prefetch=0,
            grid=(n_pad // tile_m,),
            in_specs=in_specs,
            out_specs=out_spec,
        ),
        compiler_params=pltpu.CompilerParams(
            dimension_semantics=("parallel",),
            vmem_limit_bytes=32 * 1024 * 1024,
        ),
    )(x_t, w0, w1, wmid, w5, w6, b_all)

    return out_t[:, :N].T                                      # back to (N, 3)


def sphere_encoder_ref(x, params):
    """Pure-JAX reference mirroring the kernel's arithmetic: layers 0 and 6 in
    f32 (HIGHEST precision), layers 1..5 with bf16 operands + f32 accumulation.
    A fully-f32 reference only matches to ~1e-2 after normalization."""
    h = jnp.asarray(x, jnp.float32)
    for layer, (w, b) in enumerate(params):
        if layer == 0 or layer == N_LAYERS - 1:
            h = jnp.dot(h, w.T, precision=lax.Precision.HIGHEST) + b
        else:
            h = jnp.dot(h.astype(jnp.bfloat16), w.astype(jnp.bfloat16).T,
                        preferred_element_type=jnp.float32) + b
        if layer < N_LAYERS - 1:
            h = _leaky_relu(h)
    sq = jnp.sum(h * h, axis=1, keepdims=True)
    return h * lax.rsqrt(jnp.maximum(sq, NORM_EPS * NORM_EPS))


if __name__ == "__main__":
    key = jax.random.PRNGKey(0)
    key, kx = jax.random.split(key)

    N = 1024  # points; tile picker -> tile_m=512 (2 even grid steps)
    x = jax.random.normal(kx, (N, 3), dtype=jnp.float32)

    params = init_params(key)

    out = sphere_encoder(x, params)
    out = jax.block_until_ready(out)

    ref = sphere_encoder_ref(x, params)
    assert out.shape == (N, 3)
    assert jnp.allclose(out, ref, atol=5e-3, rtol=1e-3), "mismatch vs reference"
    # Unit-norm sanity check (F.normalize semantics)
    assert jnp.allclose(jnp.linalg.norm(out, axis=1), 1.0, atol=1e-3)

    print("KERNEL_OK")
</pallas_src>

<mosaic_0001>
module attributes {stable_mosaic.version = 11 : i64} {
  func.func @sphere_encoder_kernel(%arg0: i32, %arg1: memref<3x512xf32, #tpu.memory_space<vmem>>, %arg2: memref<30x3xf32, #tpu.memory_space<vmem>>, %arg3: memref<150x30xbf16, #tpu.memory_space<vmem>>, %arg4: memref<3x150x150xbf16, #tpu.memory_space<vmem>>, %arg5: memref<30x150xbf16, #tpu.memory_space<vmem>>, %arg6: memref<3x30xf32, #tpu.memory_space<vmem>>, %arg7: memref<680x1xf32, #tpu.memory_space<vmem>>, %arg8: memref<3x512xf32, #tpu.memory_space<vmem>>) attributes {dimension_semantics = [#tpu.dimension_semantics<parallel>], iteration_bounds = array<i64: 2>, scalar_prefetch = 0 : i64, scratch_operands = 0 : i64, tpu.core_type = #tpu.core_type<tc>, window_params = [{transform_indices = @transform_0, window_bounds = array<i64: 3, 512>}, {pipeline_mode = #tpu.pipeline_mode<synchronous>, transform_indices = @transform_1, window_bounds = array<i64: 30, 3>}, {pipeline_mode = #tpu.pipeline_mode<synchronous>, transform_indices = @transform_2, window_bounds = array<i64: 150, 30>}, {pipeline_mode = #tpu.pipeline_mode<synchronous>, transform_indices = @transform_3, window_bounds = array<i64: 3, 150, 150>}, {pipeline_mode = #tpu.pipeline_mode<synchronous>, transform_indices = @transform_4, window_bounds = array<i64: 30, 150>}, {pipeline_mode = #tpu.pipeline_mode<synchronous>, transform_indices = @transform_5, window_bounds = array<i64: 3, 30>}, {pipeline_mode = #tpu.pipeline_mode<synchronous>, transform_indices = @transform_6, window_bounds = array<i64: 680, 1>}, {transform_indices = @transform_7, window_bounds = array<i64: 3, 512>}]} {
    %c0 = arith.constant 0 : index
    %c0_0 = arith.constant 0 : index
    %0 = vector.load %arg1[%c0, %c0_0] : memref<3x512xf32, #tpu.memory_space<vmem>>, vector<3x512xf32>
    %c0_1 = arith.constant 0 : index
    %c0_2 = arith.constant 0 : index
    %1 = vector.load %arg2[%c0_1, %c0_2] : memref<30x3xf32, #tpu.memory_space<vmem>>, vector<30x3xf32>
    %2 = vector.extract_strided_slice %1 {offsets = [0, 0], sizes = [30, 1], strides = [1, 1]} : vector<30x3xf32> to vector<30x1xf32>
    %3 = vector.extract_strided_slice %0 {offsets = [0, 0], sizes = [1, 512], strides = [1, 1]} : vector<3x512xf32> to vector<1x512xf32>
    %4 = vector.broadcast %2 : vector<30x1xf32> to vector<30x512xf32>
    %5 = vector.broadcast %3 : vector<1x512xf32> to vector<30x512xf32>
    %6 = arith.mulf %4, %5 : vector<30x512xf32>
    %7 = vector.extract_strided_slice %1 {offsets = [0, 1], sizes = [30, 1], strides = [1, 1]} : vector<30x3xf32> to vector<30x1xf32>
    %8 = vector.extract_strided_slice %0 {offsets = [1, 0], sizes = [1, 512], strides = [1, 1]} : vector<3x512xf32> to vector<1x512xf32>
    %9 = vector.broadcast %7 : vector<30x1xf32> to vector<30x512xf32>
    %10 = vector.broadcast %8 : vector<1x512xf32> to vector<30x512xf32>
    %11 = arith.mulf %9, %10 : vector<30x512xf32>
    %12 = arith.addf %6, %11 : vector<30x512xf32>
    %13 = vector.extract_strided_slice %1 {offsets = [0, 2], sizes = [30, 1], strides = [1, 1]} : vector<30x3xf32> to vector<30x1xf32>
    %14 = vector.extract_strided_slice %0 {offsets = [2, 0], sizes = [1, 512], strides = [1, 1]} : vector<3x512xf32> to vector<1x512xf32>
    %15 = vector.broadcast %13 : vector<30x1xf32> to vector<30x512xf32>
    %16 = vector.broadcast %14 : vector<1x512xf32> to vector<30x512xf32>
    %17 = arith.mulf %15, %16 : vector<30x512xf32>
    %18 = arith.addf %12, %17 : vector<30x512xf32>
    %c0_3 = arith.constant 0 : index
    %c0_4 = arith.constant 0 : index
    %19 = vector.load %arg7[%c0_3, %c0_4] : memref<680x1xf32, #tpu.memory_space<vmem>>, vector<30x1xf32>
    %20 = vector.broadcast %19 : vector<30x1xf32> to vector<30x512xf32>
    %21 = arith.addf %18, %20 : vector<30x512xf32>
    %cst = arith.constant 0.000000e+00 : f32
    %22 = vector.broadcast %cst : f32 to vector<30x512xf32>
    %23 = arith.cmpf oge, %21, %22 : vector<30x512xf32>
    %cst_5 = arith.constant 0.00999999977 : f32
    %24 = vector.broadcast %cst_5 : f32 to vector<30x512xf32>
    %25 = arith.mulf %24, %21 : vector<30x512xf32>
    %26 = arith.select %23, %21, %25 : vector<30x512xi1>, vector<30x512xf32>
    %c0_6 = arith.constant 0 : index
    %c0_7 = arith.constant 0 : index
    %27 = vector.load %arg3[%c0_6, %c0_7] : memref<150x30xbf16, #tpu.memory_space<vmem>>, vector<150x30xbf16>
    %28 = arith.truncf %26 : vector<30x512xf32> to vector<30x512xbf16>
    %cst_8 = arith.constant dense<0.000000e+00> : vector<150x512xf32>
    %29 = tpu.matmul %27, %28, %cst_8 {dimension_numbers = #tpu.dot_dimension_numbers<[1], [0], [0], [1], [0, 0, 1, 1], [], []>} : vector<150x30xbf16>, vector<30x512xbf16>, vector<150x512xf32> -> vector<150x512xf32>
    %c32 = arith.constant 32 : index
    %c0_9 = arith.constant 0 : index
    %30 = vector.load %arg7[%c32, %c0_9] : memref<680x1xf32, #tpu.memory_space<vmem>>, vector<150x1xf32>
    %31 = vector.broadcast %30 : vector<150x1xf32> to vector<150x512xf32>
    %32 = arith.addf %29, %31 : vector<150x512xf32>
    %cst_10 = arith.constant 0.000000e+00 : f32
    %33 = vector.broadcast %cst_10 : f32 to vector<150x512xf32>
    %34 = arith.cmpf oge, %32, %33 : vector<150x512xf32>
    %cst_11 = arith.constant 0.00999999977 : f32
    %35 = vector.broadcast %cst_11 : f32 to vector<150x512xf32>
    %36 = arith.mulf %35, %32 : vector<150x512xf32>
    %37 = arith.select %34, %32, %36 : vector<150x512xi1>, vector<150x512xf32>
    %c0_12 = arith.constant 0 : index
    %c0_13 = arith.constant 0 : index
    %c0_14 = arith.constant 0 : index
    %38 = vector.load %arg4[%c0_12, %c0_13, %c0_14] : memref<3x150x150xbf16, #tpu.memory_space<vmem>>, vector<1x150x150xbf16>
    %39 = vector.shape_cast %38 : vector<1x150x150xbf16> to vector<150x150xbf16>
    %40 = arith.truncf %37 : vector<150x512xf32> to vector<150x512xbf16>
    %cst_15 = arith.constant dense<0.000000e+00> : vector<150x512xf32>
    %41 = tpu.matmul %39, %40, %cst_15 {dimension_numbers = #tpu.dot_dimension_numbers<[1], [0], [0], [1], [0, 0, 1, 1], [], []>} : vector<150x150xbf16>, vector<150x512xbf16>, vector<150x512xf32> -> vector<150x512xf32>
    %c184 = arith.constant 184 : index
    %c0_16 = arith.constant 0 : index
    %42 = vector.load %arg7[%c184, %c0_16] : memref<680x1xf32, #tpu.memory_space<vmem>>, vector<150x1xf32>
    %43 = vector.broadcast %42 : vector<150x1xf32> to vector<150x512xf32>
    %44 = arith.addf %41, %43 : vector<150x512xf32>
    %cst_17 = arith.constant 0.000000e+00 : f32
    %45 = vector.broadcast %cst_17 : f32 to vector<150x512xf32>
    %46 = arith.cmpf oge, %44, %45 : vector<150x512xf32>
    %cst_18 = arith.constant 0.00999999977 : f32
    %47 = vector.broadcast %cst_18 : f32 to vector<150x512xf32>
    %48 = arith.mulf %47, %44 : vector<150x512xf32>
    %49 = arith.select %46, %44, %48 : vector<150x512xi1>, vector<150x512xf32>
    %c1 = arith.constant 1 : index
    %c0_19 = arith.constant 0 : index
    %c0_20 = arith.constant 0 : index
    %50 = vector.load %arg4[%c1, %c0_19, %c0_20] : memref<3x150x150xbf16, #tpu.memory_space<vmem>>, vector<1x150x150xbf16>
    %51 = vector.shape_cast %50 : vector<1x150x150xbf16> to vector<150x150xbf16>
    %52 = arith.truncf %49 : vector<150x512xf32> to vector<150x512xbf16>
    %cst_21 = arith.constant dense<0.000000e+00> : vector<150x512xf32>
    %53 = tpu.matmul %51, %52, %cst_21 {dimension_numbers = #tpu.dot_dimension_numbers<[1], [0], [0], [1], [0, 0, 1, 1], [], []>} : vector<150x150xbf16>, vector<150x512xbf16>, vector<150x512xf32> -> vector<150x512xf32>
    %c336 = arith.constant 336 : index
    %c0_22 = arith.constant 0 : index
    %54 = vector.load %arg7[%c336, %c0_22] : memref<680x1xf32, #tpu.memory_space<vmem>>, vector<150x1xf32>
    %55 = vector.broadcast %54 : vector<150x1xf32> to vector<150x512xf32>
    %56 = arith.addf %53, %55 : vector<150x512xf32>
    %cst_23 = arith.constant 0.000000e+00 : f32
    %57 = vector.broadcast %cst_23 : f32 to vector<150x512xf32>
    %58 = arith.cmpf oge, %56, %57 : vector<150x512xf32>
    %cst_24 = arith.constant 0.00999999977 : f32
    %59 = vector.broadcast %cst_24 : f32 to vector<150x512xf32>
    %60 = arith.mulf %59, %56 : vector<150x512xf32>
    %61 = arith.select %58, %56, %60 : vector<150x512xi1>, vector<150x512xf32>
    %c2 = arith.constant 2 : index
    %c0_25 = arith.constant 0 : index
    %c0_26 = arith.constant 0 : index
    %62 = vector.load %arg4[%c2, %c0_25, %c0_26] : memref<3x150x150xbf16, #tpu.memory_space<vmem>>, vector<1x150x150xbf16>
    %63 = vector.shape_cast %62 : vector<1x150x150xbf16> to vector<150x150xbf16>
    %64 = arith.truncf %61 : vector<150x512xf32> to vector<150x512xbf16>
    %cst_27 = arith.constant dense<0.000000e+00> : vector<150x512xf32>
    %65 = tpu.matmul %63, %64, %cst_27 {dimension_numbers = #tpu.dot_dimension_numbers<[1], [0], [0], [1], [0, 0, 1, 1], [], []>} : vector<150x150xbf16>, vector<150x512xbf16>, vector<150x512xf32> -> vector<150x512xf32>
    %c488 = arith.constant 488 : index
    %c0_28 = arith.constant 0 : index
    %66 = vector.load %arg7[%c488, %c0_28] : memref<680x1xf32, #tpu.memory_space<vmem>>, vector<150x1xf32>
    %67 = vector.broadcast %66 : vector<150x1xf32> to vector<150x512xf32>
    %68 = arith.addf %65, %67 : vector<150x512xf32>
    %cst_29 = arith.constant 0.000000e+00 : f32
    %69 = vector.broadcast %cst_29 : f32 to vector<150x512xf32>
    %70 = arith.cmpf oge, %68, %69 : vector<150x512xf32>
    %cst_30 = arith.constant 0.00999999977 : f32
    %71 = vector.broadcast %cst_30 : f32 to vector<150x512xf32>
    %72 = arith.mulf %71, %68 : vector<150x512xf32>
    %73 = arith.select %70, %68, %72 : vector<150x512xi1>, vector<150x512xf32>
    %c0_31 = arith.constant 0 : index
    %c0_32 = arith.constant 0 : index
    %74 = vector.load %arg5[%c0_31, %c0_32] : memref<30x150xbf16, #tpu.memory_space<vmem>>, vector<30x150xbf16>
    %75 = arith.truncf %73 : vector<150x512xf32> to vector<150x512xbf16>
    %cst_33 = arith.constant dense<0.000000e+00> : vector<30x512xf32>
    %76 = tpu.matmul %74, %75, %cst_33 {dimension_numbers = #tpu.dot_dimension_numbers<[1], [0], [0], [1], [0, 0, 1, 1], [], []>} : vector<30x150xbf16>, vector<150x512xbf16>, vector<30x512xf32> -> vector<30x512xf32>
    %c640 = arith.constant 640 : index
    %c0_34 = arith.constant 0 : index
    %77 = vector.load %arg7[%c640, %c0_34] : memref<680x1xf32, #tpu.memory_space<vmem>>, vector<30x1xf32>
    %78 = vector.broadcast %77 : vector<30x1xf32> to vector<30x512xf32>
    %79 = arith.addf %76, %78 : vector<30x512xf32>
    %cst_35 = arith.constant 0.000000e+00 : f32
    %80 = vector.broadcast %cst_35 : f32 to vector<30x512xf32>
    %81 = arith.cmpf oge, %79, %80 : vector<30x512xf32>
    %cst_36 = arith.constant 0.00999999977 : f32
    %82 = vector.broadcast %cst_36 : f32 to vector<30x512xf32>
    %83 = arith.mulf %82, %79 : vector<30x512xf32>
    %84 = arith.select %81, %79, %83 : vector<30x512xi1>, vector<30x512xf32>
    %c0_37 = arith.constant 0 : index
    %c0_38 = arith.constant 0 : index
    %85 = vector.load %arg6[%c0_37, %c0_38] : memref<3x30xf32, #tpu.memory_space<vmem>>, vector<3x30xf32>
    %c672 = arith.constant 672 : index
    %c0_39 = arith.constant 0 : index
    %86 = vector.load %arg7[%c672, %c0_39] : memref<680x1xf32, #tpu.memory_space<vmem>>, vector<3x1xf32>
    %87 = vector.extract_strided_slice %85 {offsets = [0, 0], sizes = [3, 1], strides = [1, 1]} : vector<3x30xf32> to vector<3x1xf32>
    %88 = vector.extract_strided_slice %84 {offsets = [0, 0], sizes = [1, 512], strides = [1, 1]} : vector<30x512xf32> to vector<1x512xf32>
    %89 = vector.broadcast %87 : vector<3x1xf32> to vector<3x512xf32>
    %90 = vector.broadcast %88 : vector<1x512xf32> to vector<3x512xf32>
    %91 = arith.mulf %89, %90 : vector<3x512xf32>
    %92 = vector.broadcast %86 : vector<3x1xf32> to vector<3x512xf32>
    %93 = arith.addf %92, %91 : vector<3x512xf32>
    %94 = vector.extract_strided_slice %85 {offsets = [0, 1], sizes = [3, 1], strides = [1, 1]} : vector<3x30xf32> to vector<3x1xf32>
    %95 = vector.extract_strided_slice %84 {offsets = [1, 0], sizes = [1, 512], strides = [1, 1]} : vector<30x512xf32> to vector<1x512xf32>
    %96 = vector.broadcast %94 : vector<3x1xf32> to vector<3x512xf32>
    %97 = vector.broadcast %95 : vector<1x512xf32> to vector<3x512xf32>
    %98 = arith.mulf %96, %97 : vector<3x512xf32>
    %99 = arith.addf %93, %98 : vector<3x512xf32>
    %100 = vector.extract_strided_slice %85 {offsets = [0, 2], sizes = [3, 1], strides = [1, 1]} : vector<3x30xf32> to vector<3x1xf32>
    %101 = vector.extract_strided_slice %84 {offsets = [2, 0], sizes = [1, 512], strides = [1, 1]} : vector<30x512xf32> to vector<1x512xf32>
    %102 = vector.broadcast %100 : vector<3x1xf32> to vector<3x512xf32>
    %103 = vector.broadcast %101 : vector<1x512xf32> to vector<3x512xf32>
    %104 = arith.mulf %102, %103 : vector<3x512xf32>
    %105 = arith.addf %99, %104 : vector<3x512xf32>
    %106 = vector.extract_strided_slice %85 {offsets = [0, 3], sizes = [3, 1], strides = [1, 1]} : vector<3x30xf32> to vector<3x1xf32>
    %107 = vector.extract_strided_slice %84 {offsets = [3, 0], sizes = [1, 512], strides = [1, 1]} : vector<30x512xf32> to vector<1x512xf32>
    %108 = vector.broadcast %106 : vector<3x1xf32> to vector<3x512xf32>
    %109 = vector.broadcast %107 : vector<1x512xf32> to vector<3x512xf32>
    %110 = arith.mulf %108, %109 : vector<3x512xf32>
    %111 = arith.addf %105, %110 : vector<3x512xf32>
    %112 = vector.extract_strided_slice %85 {offsets = [0, 4], sizes = [3, 1], strides = [1, 1]} : vector<3x30xf32> to vector<3x1xf32>
    %113 = vector.extract_strided_slice %84 {offsets = [4, 0], sizes = [1, 512], strides = [1, 1]} : vector<30x512xf32> to vector<1x512xf32>
    %114 = vector.broadcast %112 : vector<3x1xf32> to vector<3x512xf32>
    %115 = vector.broadcast %113 : vector<1x512xf32> to vector<3x512xf32>
    %116 = arith.mulf %114, %115 : vector<3x512xf32>
    %117 = arith.addf %111, %116 : vector<3x512xf32>
    %118 = vector.extract_strided_slice %85 {offsets = [0, 5], sizes = [3, 1], strides = [1, 1]} : vector<3x30xf32> to vector<3x1xf32>
    %119 = vector.extract_strided_slice %84 {offsets = [5, 0], sizes = [1, 512], strides = [1, 1]} : vector<30x512xf32> to vector<1x512xf32>
    %120 = vector.broadcast %118 : vector<3x1xf32> to vector<3x512xf32>
    %121 = vector.broadcast %119 : vector<1x512xf32> to vector<3x512xf32>
    %122 = arith.mulf %120, %121 : vector<3x512xf32>
    %123 = arith.addf %117, %122 : vector<3x512xf32>
    %124 = vector.extract_strided_slice %85 {offsets = [0, 6], sizes = [3, 1], strides = [1, 1]} : vector<3x30xf32> to vector<3x1xf32>
    %125 = vector.extract_strided_slice %84 {offsets = [6, 0], sizes = [1, 512], strides = [1, 1]} : vector<30x512xf32> to vector<1x512xf32>
    %126 = vector.broadcast %124 : vector<3x1xf32> to vector<3x512xf32>
    %127 = vector.broadcast %125 : vector<1x512xf32> to vector<3x512xf32>
    %128 = arith.mulf %126, %127 : vector<3x512xf32>
    %129 = arith.addf %123, %128 : vector<3x512xf32>
    %130 = vector.extract_strided_slice %85 {offsets = [0, 7], sizes = [3, 1], strides = [1, 1]} : vector<3x30xf32> to vector<3x1xf32>
    %131 = vector.extract_strided_slice %84 {offsets = [7, 0], sizes = [1, 512], strides = [1, 1]} : vector<30x512xf32> to vector<1x512xf32>
    %132 = vector.broadcast %130 : vector<3x1xf32> to vector<3x512xf32>
    %133 = vector.broadcast %131 : vector<1x512xf32> to vector<3x512xf32>
    %134 = arith.mulf %132, %133 : vector<3x512xf32>
    %135 = arith.addf %129, %134 : vector<3x512xf32>
    %136 = vector.extract_strided_slice %85 {offsets = [0, 8], sizes = [3, 1], strides = [1, 1]} : vector<3x30xf32> to vector<3x1xf32>
    %137 = vector.extract_strided_slice %84 {offsets = [8, 0], sizes = [1, 512], strides = [1, 1]} : vector<30x512xf32> to vector<1x512xf32>
    %138 = vector.broadcast %136 : vector<3x1xf32> to vector<3x512xf32>
    %139 = vector.broadcast %137 : vector<1x512xf32> to vector<3x512xf32>
    %140 = arith.mulf %138, %139 : vector<3x512xf32>
    %141 = arith.addf %135, %140 : vector<3x512xf32>
    %142 = vector.extract_strided_slice %85 {offsets = [0, 9], sizes = [3, 1], strides = [1, 1]} : vector<3x30xf32> to vector<3x1xf32>
    %143 = vector.extract_strided_slice %84 {offsets = [9, 0], sizes = [1, 512], strides = [1, 1]} : vector<30x512xf32> to vector<1x512xf32>
    %144 = vector.broadcast %142 : vector<3x1xf32> to vector<3x512xf32>
    %145 = vector.broadcast %143 : vector<1x512xf32> to vector<3x512xf32>
    %146 = arith.mulf %144, %145 : vector<3x512xf32>
    %147 = arith.addf %141, %146 : vector<3x512xf32>
    %148 = vector.extract_strided_slice %85 {offsets = [0, 10], sizes = [3, 1], strides = [1, 1]} : vector<3x30xf32> to vector<3x1xf32>
    %149 = vector.extract_strided_slice %84 {offsets = [10, 0], sizes = [1, 512], strides = [1, 1]} : vector<30x512xf32> to vector<1x512xf32>
    %150 = vector.broadcast %148 : vector<3x1xf32> to vector<3x512xf32>
    %151 = vector.broadcast %149 : vector<1x512xf32> to vector<3x512xf32>
    %152 = arith.mulf %150, %151 : vector<3x512xf32>
    %153 = arith.addf %147, %152 : vector<3x512xf32>
    %154 = vector.extract_strided_slice %85 {offsets = [0, 11], sizes = [3, 1], strides = [1, 1]} : vector<3x30xf32> to vector<3x1xf32>
    %155 = vector.extract_strided_slice %84 {offsets = [11, 0], sizes = [1, 512], strides = [1, 1]} : vector<30x512xf32> to vector<1x512xf32>
    %156 = vector.broadcast %154 : vector<3x1xf32> to vector<3x512xf32>
    %157 = vector.broadcast %155 : vector<1x512xf32> to vector<3x512xf32>
    %158 = arith.mulf %156, %157 : vector<3x512xf32>
    %159 = arith.addf %153, %158 : vector<3x512xf32>
    %160 = vector.extract_strided_slice %85 {offsets = [0, 12], sizes = [3, 1], strides = [1, 1]} : vector<3x30xf32> to vector<3x1xf32>
    %161 = vector.extract_strided_slice %84 {offsets = [12, 0], sizes = [1, 512], strides = [1, 1]} : vector<30x512xf32> to vector<1x512xf32>
    %162 = vector.broadcast %160 : vector<3x1xf32> to vector<3x512xf32>
    %163 = vector.broadcast %161 : vector<1x512xf32> to vector<3x512xf32>
    %164 = arith.mulf %162, %163 : vector<3x512xf32>
    %165 = arith.addf %159, %164 : vector<3x512xf32>
    %166 = vector.extract_strided_slice %85 {offsets = [0, 13], sizes = [3, 1], strides = [1, 1]} : vector<3x30xf32> to vector<3x1xf32>
    %167 = vector.extract_strided_slice %84 {offsets = [13, 0], sizes = [1, 512], strides = [1, 1]} : vector<30x512xf32> to vector<1x512xf32>
    %168 = vector.broadcast %166 : vector<3x1xf32> to vector<3x512xf32>
    %169 = vector.broadcast %167 : vector<1x512xf32> to vector<3x512xf32>
    %170 = arith.mulf %168, %169 : vector<3x512xf32>
    %171 = arith.addf %165, %170 : vector<3x512xf32>
    %172 = vector.extract_strided_slice %85 {offsets = [0, 14], sizes = [3, 1], strides = [1, 1]} : vector<3x30xf32> to vector<3x1xf32>
    %173 = vector.extract_strided_slice %84 {offsets = [14, 0], sizes = [1, 512], strides = [1, 1]} : vector<30x512xf32> to vector<1x512xf32>
    %174 = vector.broadcast %172 : vector<3x1xf32> to vector<3x512xf32>
    %175 = vector.broadcast %173 : vector<1x512xf32> to vector<3x512xf32>
    %176 = arith.mulf %174, %175 : vector<3x512xf32>
    %177 = arith.addf %171, %176 : vector<3x512xf32>
    %178 = vector.extract_strided_slice %85 {offsets = [0, 15], sizes = [3, 1], strides = [1, 1]} : vector<3x30xf32> to vector<3x1xf32>
    %179 = vector.extract_strided_slice %84 {offsets = [15, 0], sizes = [1, 512], strides = [1, 1]} : vector<30x512xf32> to vector<1x512xf32>
    %180 = vector.broadcast %178 : vector<3x1xf32> to vector<3x512xf32>
    %181 = vector.broadcast %179 : vector<1x512xf32> to vector<3x512xf32>
    %182 = arith.mulf %180, %181 : vector<3x512xf32>
    %183 = arith.addf %177, %182 : vector<3x512xf32>
    %184 = vector.extract_strided_slice %85 {offsets = [0, 16], sizes = [3, 1], strides = [1, 1]} : vector<3x30xf32> to vector<3x1xf32>
    %185 = vector.extract_strided_slice %84 {offsets = [16, 0], sizes = [1, 512], strides = [1, 1]} : vector<30x512xf32> to vector<1x512xf32>
    %186 = vector.broadcast %184 : vector<3x1xf32> to vector<3x512xf32>
    %187 = vector.broadcast %185 : vector<1x512xf32> to vector<3x512xf32>
    %188 = arith.mulf %186, %187 : vector<3x512xf32>
    %189 = arith.addf %183, %188 : vector<3x512xf32>
    %190 = vector.extract_strided_slice %85 {offsets = [0, 17], sizes = [3, 1], strides = [1, 1]} : vector<3x30xf32> to vector<3x1xf32>
    %191 = vector.extract_strided_slice %84 {offsets = [17, 0], sizes = [1, 512], strides = [1, 1]} : vector<30x512xf32> to vector<1x512xf32>
    %192 = vector.broadcast %190 : vector<3x1xf32> to vector<3x512xf32>
    %193 = vector.broadcast %191 : vector<1x512xf32> to vector<3x512xf32>
    %194 = arith.mulf %192, %193 : vector<3x512xf32>
    %195 = arith.addf %189, %194 : vector<3x512xf32>
    %196 = vector.extract_strided_slice %85 {offsets = [0, 18], sizes = [3, 1], strides = [1, 1]} : vector<3x30xf32> to vector<3x1xf32>
    %197 = vector.extract_strided_slice %84 {offsets = [18, 0], sizes = [1, 512], strides = [1, 1]} : vector<30x512xf32> to vector<1x512xf32>
    %198 = vector.broadcast %196 : vector<3x1xf32> to vector<3x512xf32>
    %199 = vector.broadcast %197 : vector<1x512xf32> to vector<3x512xf32>
    %200 = arith.mulf %198, %199 : vector<3x512xf32>
    %201 = arith.addf %195, %200 : vector<3x512xf32>
    %202 = vector.extract_strided_slice %85 {offsets = [0, 19], sizes = [3, 1], strides = [1, 1]} : vector<3x30xf32> to vector<3x1xf32>
    %203 = vector.extract_strided_slice %84 {offsets = [19, 0], sizes = [1, 512], strides = [1, 1]} : vector<30x512xf32> to vector<1x512xf32>
    %204 = vector.broadcast %202 : vector<3x1xf32> to vector<3x512xf32>
    %205 = vector.broadcast %203 : vector<1x512xf32> to vector<3x512xf32>
    %206 = arith.mulf %204, %205 : vector<3x512xf32>
    %207 = arith.addf %201, %206 : vector<3x512xf32>
    %208 = vector.extract_strided_slice %85 {offsets = [0, 20], sizes = [3, 1], strides = [1, 1]} : vector<3x30xf32> to vector<3x1xf32>
    %209 = vector.extract_strided_slice %84 {offsets = [20, 0], sizes = [1, 512], strides = [1, 1]} : vector<30x512xf32> to vector<1x512xf32>
    %210 = vector.broadcast %208 : vector<3x1xf32> to vector<3x512xf32>
    %211 = vector.broadcast %209 : vector<1x512xf32> to vector<3x512xf32>
    %212 = arith.mulf %210, %211 : vector<3x512xf32>
    %213 = arith.addf %207, %212 : vector<3x512xf32>
    %214 = vector.extract_strided_slice %85 {offsets = [0, 21], sizes = [3, 1], strides = [1, 1]} : vector<3x30xf32> to vector<3x1xf32>
    %215 = vector.extract_strided_slice %84 {offsets = [21, 0], sizes = [1, 512], strides = [1, 1]} : vector<30x512xf32> to vector<1x512xf32>
    %216 = vector.broadcast %214 : vector<3x1xf32> to vector<3x512xf32>
    %217 = vector.broadcast %215 : vector<1x512xf32> to vector<3x512xf32>
    %218 = arith.mulf %216, %217 : vector<3x512xf32>
    %219 = arith.addf %213, %218 : vector<3x512xf32>
    %220 = vector.extract_strided_slice %85 {offsets = [0, 22], sizes = [3, 1], strides = [1, 1]} : vector<3x30xf32> to vector<3x1xf32>
    %221 = vector.extract_strided_slice %84 {offsets = [22, 0], sizes = [1, 512], strides = [1, 1]} : vector<30x512xf32> to vector<1x512xf32>
    %222 = vector.broadcast %220 : vector<3x1xf32> to vector<3x512xf32>
    %223 = vector.broadcast %221 : vector<1x512xf32> to vector<3x512xf32>
    %224 = arith.mulf %222, %223 : vector<3x512xf32>
    %225 = arith.addf %219, %224 : vector<3x512xf32>
    %226 = vector.extract_strided_slice %85 {offsets = [0, 23], sizes = [3, 1], strides = [1, 1]} : vector<3x30xf32> to vector<3x1xf32>
    %227 = vector.extract_strided_slice %84 {offsets = [23, 0], sizes = [1, 512], strides = [1, 1]} : vector<30x512xf32> to vector<1x512xf32>
    %228 = vector.broadcast %226 : vector<3x1xf32> to vector<3x512xf32>
    %229 = vector.broadcast %227 : vector<1x512xf32> to vector<3x512xf32>
    %230 = arith.mulf %228, %229 : vector<3x512xf32>
    %231 = arith.addf %225, %230 : vector<3x512xf32>
    %232 = vector.extract_strided_slice %85 {offsets = [0, 24], sizes = [3, 1], strides = [1, 1]} : vector<3x30xf32> to vector<3x1xf32>
    %233 = vector.extract_strided_slice %84 {offsets = [24, 0], sizes = [1, 512], strides = [1, 1]} : vector<30x512xf32> to vector<1x512xf32>
    %234 = vector.broadcast %232 : vector<3x1xf32> to vector<3x512xf32>
    %235 = vector.broadcast %233 : vector<1x512xf32> to vector<3x512xf32>
    %236 = arith.mulf %234, %235 : vector<3x512xf32>
    %237 = arith.addf %231, %236 : vector<3x512xf32>
    %238 = vector.extract_strided_slice %85 {offsets = [0, 25], sizes = [3, 1], strides = [1, 1]} : vector<3x30xf32> to vector<3x1xf32>
    %239 = vector.extract_strided_slice %84 {offsets = [25, 0], sizes = [1, 512], strides = [1, 1]} : vector<30x512xf32> to vector<1x512xf32>
    %240 = vector.broadcast %238 : vector<3x1xf32> to vector<3x512xf32>
    %241 = vector.broadcast %239 : vector<1x512xf32> to vector<3x512xf32>
    %242 = arith.mulf %240, %241 : vector<3x512xf32>
    %243 = arith.addf %237, %242 : vector<3x512xf32>
    %244 = vector.extract_strided_slice %85 {offsets = [0, 26], sizes = [3, 1], strides = [1, 1]} : vector<3x30xf32> to vector<3x1xf32>
    %245 = vector.extract_strided_slice %84 {offsets = [26, 0], sizes = [1, 512], strides = [1, 1]} : vector<30x512xf32> to vector<1x512xf32>
    %246 = vector.broadcast %244 : vector<3x1xf32> to vector<3x512xf32>
    %247 = vector.broadcast %245 : vector<1x512xf32> to vector<3x512xf32>
    %248 = arith.mulf %246, %247 : vector<3x512xf32>
    %249 = arith.addf %243, %248 : vector<3x512xf32>
    %250 = vector.extract_strided_slice %85 {offsets = [0, 27], sizes = [3, 1], strides = [1, 1]} : vector<3x30xf32> to vector<3x1xf32>
    %251 = vector.extract_strided_slice %84 {offsets = [27, 0], sizes = [1, 512], strides = [1, 1]} : vector<30x512xf32> to vector<1x512xf32>
    %252 = vector.broadcast %250 : vector<3x1xf32> to vector<3x512xf32>
    %253 = vector.broadcast %251 : vector<1x512xf32> to vector<3x512xf32>
    %254 = arith.mulf %252, %253 : vector<3x512xf32>
    %255 = arith.addf %249, %254 : vector<3x512xf32>
    %256 = vector.extract_strided_slice %85 {offsets = [0, 28], sizes = [3, 1], strides = [1, 1]} : vector<3x30xf32> to vector<3x1xf32>
    %257 = vector.extract_strided_slice %84 {offsets = [28, 0], sizes = [1, 512], strides = [1, 1]} : vector<30x512xf32> to vector<1x512xf32>
    %258 = vector.broadcast %256 : vector<3x1xf32> to vector<3x512xf32>
    %259 = vector.broadcast %257 : vector<1x512xf32> to vector<3x512xf32>
    %260 = arith.mulf %258, %259 : vector<3x512xf32>
    %261 = arith.addf %255, %260 : vector<3x512xf32>
    %262 = vector.extract_strided_slice %85 {offsets = [0, 29], sizes = [3, 1], strides = [1, 1]} : vector<3x30xf32> to vector<3x1xf32>
    %263 = vector.extract_strided_slice %84 {offsets = [29, 0], sizes = [1, 512], strides = [1, 1]} : vector<30x512xf32> to vector<1x512xf32>
    %264 = vector.broadcast %262 : vector<3x1xf32> to vector<3x512xf32>
    %265 = vector.broadcast %263 : vector<1x512xf32> to vector<3x512xf32>
    %266 = arith.mulf %264, %265 : vector<3x512xf32>
    %267 = arith.addf %261, %266 : vector<3x512xf32>
    %268 = arith.mulf %267, %267 : vector<3x512xf32>
    %cst_40 = arith.constant dense<0.000000e+00> : vector<512xf32>
    %269 = vector.multi_reduction <add>, %268, %cst_40 [0] : vector<3x512xf32> to vector<512xf32>
    %270 = vector.shape_cast %269 : vector<512xf32> to vector<1x512xf32>
    %cst_41 = arith.constant 1.000000e-24 : f32
    %271 = vector.broadcast %cst_41 : f32 to vector<1x512xf32>
    %272 = arith.maximumf %270, %271 : vector<1x512xf32>
    %273 = math.rsqrt %272 : vector<1x512xf32>
    %274 = vector.broadcast %273 : vector<1x512xf32> to vector<3x512xf32>
    %275 = arith.mulf %267, %274 : vector<3x512xf32>
    %c0_42 = arith.constant 0 : index
    %c0_43 = arith.constant 0 : index
    %276 = vector.load %arg8[%c0_42, %c0_43] : memref<3x512xf32, #tpu.memory_space<vmem>>, vector<3x512xf32>
    tpu.vector_store %arg8[%c0_42, %c0_43], %275 {strides = array<i32>} : memref<3x512xf32, #tpu.memory_space<vmem>>, vector<3x512xf32>,
    return
  }
  func.func @transform_0(%arg0: i32) -> (i32, i32) {
    %c0_i32 = arith.constant 0 : i32
    %c0_i32_0 = arith.constant 0 : i32
    return %c0_i32, %arg0 : i32, i32
  }
  func.func @transform_1(%arg0: i32) -> (i32, i32) {
    %c0_i32 = arith.constant 0 : i32
    %c0_i32_0 = arith.constant 0 : i32
    %c0_i32_1 = arith.constant 0 : i32
    return %c0_i32, %c0_i32_0 : i32, i32
  }
  func.func @transform_2(%arg0: i32) -> (i32, i32) {
    %c0_i32 = arith.constant 0 : i32
    %c0_i32_0 = arith.constant 0 : i32
    %c0_i32_1 = arith.constant 0 : i32
    return %c0_i32, %c0_i32_0 : i32, i32
  }
  func.func @transform_3(%arg0: i32) -> (i32, i32, i32) {
    %c0_i32 = arith.constant 0 : i32
    %c0_i32_0 = arith.constant 0 : i32
    %c0_i32_1 = arith.constant 0 : i32
    %c0_i32_2 = arith.constant 0 : i32
    return %c0_i32, %c0_i32_0, %c0_i32_1 : i32, i32, i32
  }
  func.func @transform_4(%arg0: i32) -> (i32, i32) {
    %c0_i32 = arith.constant 0 : i32
    %c0_i32_0 = arith.constant 0 : i32
    %c0_i32_1 = arith.constant 0 : i32
    return %c0_i32, %c0_i32_0 : i32, i32
  }
  func.func @transform_5(%arg0: i32) -> (i32, i32) {
    %c0_i32 = arith.constant 0 : i32
    %c0_i32_0 = arith.constant 0 : i32
    %c0_i32_1 = arith.constant 0 : i32
    return %c0_i32, %c0_i32_0 : i32, i32
  }
  func.func @transform_6(%arg0: i32) -> (i32, i32) {
    %c0_i32 = arith.constant 0 : i32
    %c0_i32_0 = arith.constant 0 : i32
    %c0_i32_1 = arith.constant 0 : i32
    return %c0_i32, %c0_i32_0 : i32, i32
  }
  func.func @transform_7(%arg0: i32) -> (i32, i32) {
    %c0_i32 = arith.constant 0 : i32
    %c0_i32_0 = arith.constant 0 : i32
    return %c0_i32, %arg0 : i32, i32
  }
}

</mosaic_0001>

<llo_original>
// kernel: tpu_custom_call.1
$region0: #{tpu_custom_call.1}
  #allocation0 [shape = 'u32[]', space=smem, size = 0x4, offset = 0x4, fixed_abs, tag = 'smem constant byte address 0x4 - core index']
  #allocation1 [shape = 'u32[144,128]{1,0:T(1,128)}', space=vmem, size = 0x12000, scoped, tag = 'internal scratch']
  %s0 = inlined_call_operand.vmem [shape: f32[3,1024], index: 0, kind: input, shape index: {}]
  %s1 = inlined_call_operand.vmem [shape: f32[30,3], index: 1, kind: input, shape index: {}]
  %s2 = inlined_call_operand.vmem [shape: bf16[150,30], index: 2, kind: input, shape index: {}]
  %s3 = inlined_call_operand.vmem [shape: bf16[3,150,150], index: 3, kind: input, shape index: {}]
  %s4 = inlined_call_operand.vmem [shape: bf16[30,150], index: 4, kind: input, shape index: {}]
  %s5 = inlined_call_operand.vmem [shape: f32[3,30], index: 5, kind: input, shape index: {}]
  %s6 = inlined_call_operand.vmem [shape: f32[680,1], index: 6, kind: input, shape index: {}]
  %s7 = inlined_call_operand.hbm [shape: f32[3,1024], index: 7, kind: output, shape index: {}]
  %s8 = sld [smem:[#allocation0]]
  $region61: #{tpu_custom_call.1} parent=0
    _
  %s10 = ssub.s32 1, %s8
  %s11 = scalar_select 0, %s10, %s8
  $region1: #{tpu_custom_call.1} parent=0
    #allocation2 [shape = 'u8[16384]{0}', space=vmem, size = 0x4000, scoped, tag = 'output window, operand 0']
    #allocation3 [shape = 's32[2]{0}', space=sflag, size = 0x8, scoped, tag = 'scoped memory for tpu_custom_call.1']
    %12 = vsyncpa [#allocation3], 0
    %s13 = scalar_lea.sflag [#allocation3], 1
    %14 = vsyncpa %s13, 0
    loop: start=0, step=1, limit=4
    $region2: #{tpu_custom_call.1} parent=1 // loop_pre_header
      _
    $region3: #{tpu_custom_call.1} parent=1 // loop_header
      %s16 = sphi 0, %s20
      %p17 = scmp.ge.s32.totalorder %s16, 4
      %s26 = sphi 0, %s28
      %s29 = sphi 0, %s26
      %s30 = sphi 0, %s29
      %s46 = sphi 0, %s30
      %s50 = sphi 0, %s50
      %s52 = sphi 0, %s50
      %s53 = sphi 0, %s52
      %s67 = sphi 0, %s53
      %s71 = sphi 0, %s71
      %s73 = sphi 0, %s71
      %s74 = sphi 0, %s73
      %s88 = sphi 0, %s74
      %s92 = sphi 0, %s92
      %s94 = sphi 0, %s92
      %s95 = sphi 0, %s94
      %s109 = sphi 0, %s95
      %s113 = sphi 0, %s113
      %s115 = sphi 0, %s113
      %s116 = sphi 0, %s115
      %s130 = sphi 0, %s116
      %s134 = sphi 0, %s134
      %s136 = sphi 0, %s134
      %s137 = sphi 0, %s136
      %s151 = sphi 0, %s137
      %s155 = sphi 0, %s155
      %s157 = sphi 0, %s155
      %s158 = sphi 0, %s157
      %s172 = sphi 0, %s158
      %s178 = sphi 0, %s180
      %s181 = sphi 0, %s178
      %s182 = sphi 0, %s181
      %s198 = sphi 0, %s182
    $region4: #{tpu_custom_call.1} parent=1 // loop_header_branch
      %19 = sbr.rel (%p17) target = $region8
    $region5: #{tpu_custom_call.1} parent=1 // loop_body
      %s21 = ssub.s32 %s16, 1
      %s22 = ssub.s32 %s16, 2
      %s23 = sadd.s32 %s16, 1
      %s24 = ssub.s32 %s16, %s23
      %p25 = scmp.eq.s32.totalorder %s24, 0
      %s27 = sadd.s32 %s26, 1
      %s28 = scalar_select %p25, %s26, %s27
      %p31 = pneg %p25
      %p32 = scmp.eq.s32.totalorder %s16, 1
      %p33 = por %p31, %p32
      %p34 = scmp.ne.s32.totalorder %s26, %s29
      %p35 = scmp.eq.s32.totalorder %s16, 0
      %p36 = por %p34, %p35
      %p37 = scmp.ne.s32.totalorder %s26, %s29
      %p38 = scmp.eq.s32.totalorder %s21, 1
      %p39 = por %p37, %p38
      %p40 = scmp.ne.s32.totalorder %s29, %s30
      %p41 = scmp.eq.s32.totalorder %s21, 0
      %p42 = por %p40, %p41
      %p43 = scmp.ne.s32.totalorder %s29, %s30
      %p44 = scmp.eq.s32.totalorder %s22, 1
      %p45 = por %p43, %p44
      %p47 = scmp.ne.s32.totalorder %s30, %s46
      %p48 = scmp.eq.s32.totalorder %s22, 0
      %p49 = por %p47, %p48
      %s51 = sadd.s32 %s50, 1
      %p54 = scmp.eq.s32.totalorder %s16, 1
      %p55 = scmp.ne.s32.totalorder %s50, %s52
      %p56 = scmp.eq.s32.totalorder %s16, 0
      %p57 = por %p55, %p56
      %p58 = scmp.ne.s32.totalorder %s50, %s52
      %p59 = scmp.eq.s32.totalorder %s21, 1
      %p60 = por %p58, %p59
      %p61 = scmp.ne.s32.totalorder %s52, %s53
      %p62 = scmp.eq.s32.totalorder %s21, 0
      %p63 = por %p61, %p62
      %p64 = scmp.ne.s32.totalorder %s52, %s53
      %p65 = scmp.eq.s32.totalorder %s22, 1
      %p66 = por %p64, %p65
      %p68 = scmp.ne.s32.totalorder %s53, %s67
      %p69 = scmp.eq.s32.totalorder %s22, 0
      %p70 = por %p68, %p69
      %s72 = sadd.s32 %s71, 1
      %p75 = scmp.eq.s32.totalorder %s16, 1
      %p76 = scmp.ne.s32.totalorder %s71, %s73
      %p77 = scmp.eq.s32.totalorder %s16, 0
      %p78 = por %p76, %p77
      %p79 = scmp.ne.s32.totalorder %s71, %s73
      %p80 = scmp.eq.s32.totalorder %s21, 1
      %p81 = por %p79, %p80
      %p82 = scmp.ne.s32.totalorder %s73, %s74
      %p83 = scmp.eq.s32.totalorder %s21, 0
      %p84 = por %p82, %p83
      %p85 = scmp.ne.s32.totalorder %s73, %s74
      %p86 = scmp.eq.s32.totalorder %s22, 1
      %p87 = por %p85, %p86
      %p89 = scmp.ne.s32.totalorder %s74, %s88
      %p90 = scmp.eq.s32.totalorder %s22, 0
      %p91 = por %p89, %p90
      %s93 = sadd.s32 %s92, 1
      %p96 = scmp.eq.s32.totalorder %s16, 1
      %p97 = scmp.ne.s32.totalorder %s92, %s94
      %p98 = scmp.eq.s32.totalorder %s16, 0
      %p99 = por %p97, %p98
      %p100 = scmp.ne.s32.totalorder %s92, %s94
      %p101 = scmp.eq.s32.totalorder %s21, 1
      %p102 = por %p100, %p101
      %p103 = scmp.ne.s32.totalorder %s94, %s95
      %p104 = scmp.eq.s32.totalorder %s21, 0
      %p105 = por %p103, %p104
      %p106 = scmp.ne.s32.totalorder %s94, %s95
      %p107 = scmp.eq.s32.totalorder %s22, 1
      %p108 = por %p106, %p107
      %p110 = scmp.ne.s32.totalorder %s95, %s109
      %p111 = scmp.eq.s32.totalorder %s22, 0
      %p112 = por %p110, %p111
      %s114 = sadd.s32 %s113, 1
      %p117 = scmp.eq.s32.totalorder %s16, 1
      %p118 = scmp.ne.s32.totalorder %s113, %s115
      %p119 = scmp.eq.s32.totalorder %s16, 0
      %p120 = por %p118, %p119
      %p121 = scmp.ne.s32.totalorder %s113, %s115
      %p122 = scmp.eq.s32.totalorder %s21, 1
      %p123 = por %p121, %p122
      %p124 = scmp.ne.s32.totalorder %s115, %s116
      %p125 = scmp.eq.s32.totalorder %s21, 0
      %p126 = por %p124, %p125
      %p127 = scmp.ne.s32.totalorder %s115, %s116
      %p128 = scmp.eq.s32.totalorder %s22, 1
      %p129 = por %p127, %p128
      %p131 = scmp.ne.s32.totalorder %s116, %s130
      %p132 = scmp.eq.s32.totalorder %s22, 0
      %p133 = por %p131, %p132
      %s135 = sadd.s32 %s134, 1
      %p138 = scmp.eq.s32.totalorder %s16, 1
      %p139 = scmp.ne.s32.totalorder %s134, %s136
      %p140 = scmp.eq.s32.totalorder %s16, 0
      %p141 = por %p139, %p140
      %p142 = scmp.ne.s32.totalorder %s134, %s136
      %p143 = scmp.eq.s32.totalorder %s21, 1
      %p144 = por %p142, %p143
      %p145 = scmp.ne.s32.totalorder %s136, %s137
      %p146 = scmp.eq.s32.totalorder %s21, 0
      %p147 = por %p145, %p146
      %p148 = scmp.ne.s32.totalorder %s136, %s137
      %p149 = scmp.eq.s32.totalorder %s22, 1
      %p150 = por %p148, %p149
      %p152 = scmp.ne.s32.totalorder %s137, %s151
      %p153 = scmp.eq.s32.totalorder %s22, 0
      %p154 = por %p152, %p153
      %s156 = sadd.s32 %s155, 1
      %p159 = scmp.eq.s32.totalorder %s16, 1
      %p160 = scmp.ne.s32.totalorder %s155, %s157
      %p161 = scmp.eq.s32.totalorder %s16, 0
      %p162 = por %p160, %p161
      %p163 = scmp.ne.s32.totalorder %s155, %s157
      %p164 = scmp.eq.s32.totalorder %s21, 1
      %p165 = por %p163, %p164
      %p166 = scmp.ne.s32.totalorder %s157, %s158
      %p167 = scmp.eq.s32.totalorder %s21, 0
      %p168 = por %p166, %p167
      %p169 = scmp.ne.s32.totalorder %s157, %s158
      %p170 = scmp.eq.s32.totalorder %s22, 1
      %p171 = por %p169, %p170
      %p173 = scmp.ne.s32.totalorder %s158, %s172
      %p174 = scmp.eq.s32.totalorder %s22, 0
      %p175 = por %p173, %p174
      %s176 = ssub.s32 %s16, %s23
      %p177 = scmp.eq.s32.totalorder %s176, 0
      %s179 = sadd.s32 %s178, 1
      %s180 = scalar_select %p177, %s178, %s179
      %p183 = pneg %p177
      %p184 = scmp.eq.s32.totalorder %s16, 1
      %p185 = por %p183, %p184
      %p186 = scmp.ne.s32.totalorder %s178, %s181
      %p187 = scmp.eq.s32.totalorder %s16, 0
      %p188 = por %p186, %p187
      %p189 = scmp.ne.s32.totalorder %s178, %s181
      %p190 = scmp.eq.s32.totalorder %s21, 1
      %p191 = por %p189, %p190
      %p192 = scmp.ne.s32.totalorder %s181, %s182
      %p193 = scmp.eq.s32.totalorder %s21, 0
      %p194 = por %p192, %p193
      %p195 = scmp.ne.s32.totalorder %s181, %s182
      %p196 = scmp.eq.s32.totalorder %s22, 1
      %p197 = por %p195, %p196
      %p199 = scmp.ne.s32.totalorder %s182, %s198
      %p200 = scmp.eq.s32.totalorder %s22, 0
      %p201 = por %p199, %p200
      %p202 = scmp.le.s32.totalorder 1, %s16
      %p203 = scmp.lt.s32.totalorder %s16, 3
      %p204 = pnand %p202, %p203
      %p205 = pneg %p204
      // Predicated region
      $region9: #{tpu_custom_call.1} parent=5 // pred_check
        _
      $region10: #{tpu_custom_call.1} parent=5 // pred_check_branch
        %207 = sbr.rel (%p204) target = $region12
      $region11: #{tpu_custom_call.1} parent=5 // pred_region
        %s208 = ssub.s32 %s16, 1
        // Predicated region
        $region13: #{tpu_custom_call.1} parent=11 // pred_check
          %p209 = pneg %p63
        $region14: #{tpu_custom_call.1} parent=11 // pred_check_branch
          %211 = sbr.rel (%p209) target = $region16
        $region15: #{tpu_custom_call.1} parent=11 // pred_region
          _
        $region16: #{tpu_custom_call.1} parent=11 // pred_fallthru
          _
        // Predicated region
        $region17: #{tpu_custom_call.1} parent=11 // pred_check
          %p212 = pneg %p84
        $region18: #{tpu_custom_call.1} parent=11 // pred_check_branch
          %214 = sbr.rel (%p212) target = $region20
        $region19: #{tpu_custom_call.1} parent=11 // pred_region
          _
        $region20: #{tpu_custom_call.1} parent=11 // pred_fallthru
          _
        // Predicated region
        $region21: #{tpu_custom_call.1} parent=11 // pred_check
          %p215 = pneg %p105
        $region22: #{tpu_custom_call.1} parent=11 // pred_check_branch
          %217 = sbr.rel (%p215) target = $region24
        $region23: #{tpu_custom_call.1} parent=11 // pred_region
          _
        $region24: #{tpu_custom_call.1} parent=11 // pred_fallthru
          _
        // Predicated region
        $region25: #{tpu_custom_call.1} parent=11 // pred_check
          %p218 = pneg %p126
        $region26: #{tpu_custom_call.1} parent=11 // pred_check_branch
          %220 = sbr.rel (%p218) target = $region28
        $region27: #{tpu_custom_call.1} parent=11 // pred_region
          _
        $region28: #{tpu_custom_call.1} parent=11 // pred_fallthru
          _
        // Predicated region
        $region29: #{tpu_custom_call.1} parent=11 // pred_check
          %p221 = pneg %p147
        $region30: #{tpu_custom_call.1} parent=11 // pred_check_branch
          %223 = sbr.rel (%p221) target = $region32
        $region31: #{tpu_custom_call.1} parent=11 // pred_region
          _
        $region32: #{tpu_custom_call.1} parent=11 // pred_fallthru
          _
        // Predicated region
        $region33: #{tpu_custom_call.1} parent=11 // pred_check
          %p224 = pneg %p168
        $region34: #{tpu_custom_call.1} parent=11 // pred_check_branch
          %226 = sbr.rel (%p224) target = $region36
        $region35: #{tpu_custom_call.1} parent=11 // pred_region
          _
        $region36: #{tpu_custom_call.1} parent=11 // pred_fallthru
          _
      $region12: #{tpu_custom_call.1} parent=5 // pred_fallthru
        _
      %p227 = scmp.lt.s32.totalorder %s16, 2
      // Predicated region
      $region37: #{tpu_custom_call.1} parent=5 // pred_check
        %p228 = pneg %p227
      $region38: #{tpu_custom_call.1} parent=5 // pred_check_branch
        %230 = sbr.rel (%p228) target = $region40
      $region39: #{tpu_custom_call.1} parent=5 // pred_region
        // Predicated region
        $region41: #{tpu_custom_call.1} parent=39 // pred_check
          %p231 = pneg %p36
        $region42: #{tpu_custom_call.1} parent=39 // pred_check_branch
          %233 = sbr.rel (%p231) target = $region44
        $region43: #{tpu_custom_call.1} parent=39 // pred_region
          %s234 = smul.u32 4, %s16
          %p235 = scmp.lt.s32.totalorder %s234, 7
          %s236 = scalar_select %p235, %s234, 7
          %s237 = smul.addr %s236, 4
          %s238 = scalar_lea.vmem %s0, %s237
          %s239 = smul.u32 4, %s16
        $region44: #{tpu_custom_call.1} parent=39 // pred_fallthru
          _
      $region40: #{tpu_custom_call.1} parent=5 // pred_fallthru
        _
      %p240 = scmp.le.s32.totalorder 1, %s16
      %p241 = scmp.lt.s32.totalorder %s16, 3
      %p242 = pnand %p240, %p241
      %p243 = pneg %p242
      // Predicated region
      $region45: #{tpu_custom_call.1} parent=5 // pred_check
        _
      $region46: #{tpu_custom_call.1} parent=5 // pred_check_branch
        %245 = sbr.rel (%p242) target = $region48
      $region47: #{tpu_custom_call.1} parent=5 // pred_region
        %s246 = ssub.s32 %s16, 1
        %s247 = smul.u32 4, %s21
        %p248 = scmp.lt.s32.totalorder %s247, 7
        %s249 = scalar_select %p248, %s247, 7
        %s250 = smul.addr %s249, 4
        %s251 = scalar_lea.vmem %s0, %s250
        %p252 = pneg %p42
        %p253 = pneg %p39
        %p254 = pneg %p63
        %p255 = pneg %p60
        %p256 = pneg %p84
        %p257 = pneg %p81
        %p258 = pneg %p105
        %p259 = pneg %p102
        %p260 = pneg %p126
        %p261 = pneg %p123
        %p262 = pneg %p147
        %p263 = pneg %p144
        %p264 = pneg %p168
        %p265 = pneg %p165
        %p266 = pneg %p194
        %p267 = pneg %p191
        %s268 = sand.u32 %s181, 1
        %s269 = scalar_lea.sflag [#allocation3], %s268
        %s270 = sand.u32 %s181, 1
        %s271 = smul.addr %s270, 16
        %s272 = scalar_lea.vmem [#allocation2], %s271
        %s273 = smul.u32 4, %s21
        %p274 = scmp.lt.s32.totalorder %s273, 7
        %s275 = scalar_select %p274, %s273, 7
        %s276 = smul.addr %s275, 4
        %s277 = scalar_lea.vmem %s0, %s276
        %s278 = smul.u32 4, %s21
        %s279 = smul.u32 4, %s21
        %v281 = vld [vmem:[%s277] sm:$0x77]
        %v282 = vld [vmem:[%s277 + $0x8] sm:$0x77]
        %v283 = vld [vmem:[%s1] sm:$0xff]
        %v284 = vld [vmem:[%s1 + $0x8] sm:$0xff]
        %v285 = vld [vmem:[%s1 + $0x10] sm:$0xff]
        %v286 = vld [vmem:[%s1 + $0x18] sm:$0x3f]
        %288 = vset.pattern.permute.xlu0 0
        %289 = vperm.xlu0 %288, %v283
        %v290 = vpop.permute.xlu0 %289
        %293 = vset.pattern.permute.xlu0 0
        %294 = vperm.xlu0 %293, %v284
        %v295 = vpop.permute.xlu0 %294
        %298 = vset.pattern.permute.xlu0 0
        %299 = vperm.xlu0 %298, %v285
        %v300 = vpop.permute.xlu0 %299
        %303 = vset.pattern.permute.xlu0 0
        %304 = vperm.xlu0 %303, %v286
        %v305 = vpop.permute.xlu0 %304
        %v309 = vlaneseq
        %v310 = vshrl.u32 %v309, 7
        %v311 = vsub.s32 0, %v310
        %v312 = vrot.slane %v281, %v311
        %v313 = vlaneseq
        %v314 = vshrl.u32 %v313, 7
        %v315 = vsub.s32 4, %v314
        %v316 = vrot.slane %v281, %v315
        %v317 = vlaneseq
        %v318 = vshrl.u32 %v317, 7
        %v319 = vsub.s32 0, %v318
        %v320 = vrot.slane %v282, %v319
        %v321 = vlaneseq
        %v322 = vshrl.u32 %v321, 7
        %v323 = vsub.s32 4, %v322
        %v324 = vrot.slane %v282, %v323
        %v329 = vlaneseq
        %v330 = vshrl.u32 %v329, 7
        %v331 = vsub.s32 0, %v330
        %v332 = vrot.slane %v312, %v331
        %v333 = vlaneseq
        %v334 = vshrl.u32 %v333, 7
        %v335 = vsub.s32 0, %v334
        %v336 = vrot.slane %v316, %v335
        %v337 = vlaneseq
        %v338 = vshrl.u32 %v337, 7
        %v339 = vsub.s32 0, %v338
        %v340 = vrot.slane %v320, %v339
        %v341 = vlaneseq
        %v342 = vshrl.u32 %v341, 7
        %v343 = vsub.s32 0, %v342
        %v344 = vrot.slane %v324, %v343
        %v345 = vmul.f32 %v290, %v332
        %v346 = vmul.f32 %v290, %v336
        %v347 = vmul.f32 %v290, %v340
        %v348 = vmul.f32 %v290, %v344
        %v349 = vmul.f32 %v295, %v332
        %v350 = vmul.f32 %v295, %v336
        %v351 = vmul.f32 %v295, %v340
        %v352 = vmul.f32 %v295, %v344
        %v353 = vmul.f32 %v300, %v332
        %v354 = vmul.f32 %v300, %v336
        %v355 = vmul.f32 %v300, %v340
        %v356 = vmul.f32 %v300, %v344
        %v357 = vmul.f32 %v305, %v332
        %v358 = vmul.f32 %v305, %v336
        %v359 = vmul.f32 %v305, %v340
        %v360 = vmul.f32 %v305, %v344
        %361 = vset.pattern.permute.xlu0 1
        %362 = vperm.xlu0 %361, %v283
        %v363 = vpop.permute.xlu0 %362
        %365 = vset.pattern.permute.xlu0 1
        %366 = vperm.xlu0 %365, %v284
        %v367 = vpop.permute.xlu0 %366
        %369 = vset.pattern.permute.xlu0 1
        %370 = vperm.xlu0 %369, %v285
        %v371 = vpop.permute.xlu0 %370
        %373 = vset.pattern.permute.xlu0 1
        %374 = vperm.xlu0 %373, %v286
        %v375 = vpop.permute.xlu0 %374
        %v377 = vlaneseq
        %v378 = vshrl.u32 %v377, 7
        %v379 = vsub.s32 1, %v378
        %v380 = vrot.slane %v281, %v379
        %v381 = vlaneseq
        %v382 = vshrl.u32 %v381, 7
        %v383 = vsub.s32 5, %v382
        %v384 = vrot.slane %v281, %v383
        %v385 = vlaneseq
        %v386 = vshrl.u32 %v385, 7
        %v387 = vsub.s32 1, %v386
        %v388 = vrot.slane %v282, %v387
        %v389 = vlaneseq
        %v390 = vshrl.u32 %v389, 7
        %v391 = vsub.s32 5, %v390
        %v392 = vrot.slane %v282, %v391
        %v397 = vlaneseq
        %v398 = vshrl.u32 %v397, 7
        %v399 = vsub.s32 1, %v398
        %v400 = vrot.slane %v380, %v399
        %v401 = vlaneseq
        %v402 = vshrl.u32 %v401, 7
        %v403 = vsub.s32 1, %v402
        %v404 = vrot.slane %v384, %v403
        %v405 = vlaneseq
        %v406 = vshrl.u32 %v405, 7
        %v407 = vsub.s32 1, %v406
        %v408 = vrot.slane %v388, %v407
        %v409 = vlaneseq
        %v410 = vshrl.u32 %v409, 7
        %v411 = vsub.s32 1, %v410
        %v412 = vrot.slane %v392, %v411
        %v413 = vmul.f32 %v363, %v400
        %v414 = vmul.f32 %v363, %v404
        %v415 = vmul.f32 %v363, %v408
        %v416 = vmul.f32 %v363, %v412
        %v417 = vmul.f32 %v367, %v400
        %v418 = vmul.f32 %v367, %v404
        %v419 = vmul.f32 %v367, %v408
        %v420 = vmul.f32 %v367, %v412
        %v421 = vmul.f32 %v371, %v400
        %v422 = vmul.f32 %v371, %v404
        %v423 = vmul.f32 %v371, %v408
        %v424 = vmul.f32 %v371, %v412
        %v425 = vmul.f32 %v375, %v400
        %v426 = vmul.f32 %v375, %v404
        %v427 = vmul.f32 %v375, %v408
        %v428 = vmul.f32 %v375, %v412
        %v429 = vadd.f32 %v345, %v413
        %v430 = vadd.f32 %v346, %v414
        %v431 = vadd.f32 %v347, %v415
        %v432 = vadd.f32 %v348, %v416
        %v433 = vadd.f32 %v349, %v417
        %v434 = vadd.f32 %v350, %v418
        %v435 = vadd.f32 %v351, %v419
        %v436 = vadd.f32 %v352, %v420
        %v437 = vadd.f32 %v353, %v421
        %v438 = vadd.f32 %v354, %v422
        %v439 = vadd.f32 %v355, %v423
        %v440 = vadd.f32 %v356, %v424
        %v441 = vadd.f32 %v357, %v425
        %v442 = vadd.f32 %v358, %v426
        %v443 = vadd.f32 %v359, %v427
        %v444 = vadd.f32 %v360, %v428
        %445 = vset.pattern.permute.xlu0 2
        %446 = vperm.xlu0 %445, %v283
        %v447 = vpop.permute.xlu0 %446
        %449 = vset.pattern.permute.xlu0 2
        %450 = vperm.xlu0 %449, %v284
        %v451 = vpop.permute.xlu0 %450
        %453 = vset.pattern.permute.xlu0 2
        %454 = vperm.xlu0 %453, %v285
        %v455 = vpop.permute.xlu0 %454
        %457 = vset.pattern.permute.xlu0 2
        %458 = vperm.xlu0 %457, %v286
        %v459 = vpop.permute.xlu0 %458
        %v461 = vlaneseq
        %v462 = vshrl.u32 %v461, 7
        %v463 = vsub.s32 2, %v462
        %v464 = vrot.slane %v281, %v463
        %v465 = vlaneseq
        %v466 = vshrl.u32 %v465, 7
        %v467 = vsub.s32 6, %v466
        %v468 = vrot.slane %v281, %v467
        %v469 = vlaneseq
        %v470 = vshrl.u32 %v469, 7
        %v471 = vsub.s32 2, %v470
        %v472 = vrot.slane %v282, %v471
        %v473 = vlaneseq
        %v474 = vshrl.u32 %v473, 7
        %v475 = vsub.s32 6, %v474
        %v476 = vrot.slane %v282, %v475
        %v481 = vlaneseq
        %v482 = vshrl.u32 %v481, 7
        %v483 = vsub.s32 2, %v482
        %v484 = vrot.slane %v464, %v483
        %v485 = vlaneseq
        %v486 = vshrl.u32 %v485, 7
        %v487 = vsub.s32 2, %v486
        %v488 = vrot.slane %v468, %v487
        %v489 = vlaneseq
        %v490 = vshrl.u32 %v489, 7
        %v491 = vsub.s32 2, %v490
        %v492 = vrot.slane %v472, %v491
        %v493 = vlaneseq
        %v494 = vshrl.u32 %v493, 7
        %v495 = vsub.s32 2, %v494
        %v496 = vrot.slane %v476, %v495
        %v497 = vmul.f32 %v447, %v484
        %v498 = vmul.f32 %v447, %v488
        %v499 = vmul.f32 %v447, %v492
        %v500 = vmul.f32 %v447, %v496
        %v501 = vmul.f32 %v451, %v484
        %v502 = vmul.f32 %v451, %v488
        %v503 = vmul.f32 %v451, %v492
        %v504 = vmul.f32 %v451, %v496
        %v505 = vmul.f32 %v455, %v484
        %v506 = vmul.f32 %v455, %v488
        %v507 = vmul.f32 %v455, %v492
        %v508 = vmul.f32 %v455, %v496
        %v509 = vmul.f32 %v459, %v484
        %v510 = vmul.f32 %v459, %v488
        %v511 = vmul.f32 %v459, %v492
        %v512 = vmul.f32 %v459, %v496
        %v513 = vadd.f32 %v429, %v497
        %v514 = vadd.f32 %v430, %v498
        %v515 = vadd.f32 %v431, %v499
        %v516 = vadd.f32 %v432, %v500
        %v517 = vadd.f32 %v433, %v501
        %v518 = vadd.f32 %v434, %v502
        %v519 = vadd.f32 %v435, %v503
        %v520 = vadd.f32 %v436, %v504
        %v521 = vadd.f32 %v437, %v505
        %v522 = vadd.f32 %v438, %v506
        %v523 = vadd.f32 %v439, %v507
        %v524 = vadd.f32 %v440, %v508
        %v525 = vadd.f32 %v441, %v509
        %v526 = vadd.f32 %v442, %v510
        %v527 = vadd.f32 %v443, %v511
        %v528 = vadd.f32 %v444, %v512
        %v529 = vld [vmem:[%s6] sm:$0xff]
        %v530 = vld [vmem:[%s6 + $0x8] sm:$0xff]
        %v531 = vld [vmem:[%s6 + $0x10] sm:$0xff]
        %v532 = vld [vmem:[%s6 + $0x18] sm:$0x3f]
        %534 = vset.pattern.permute.xlu0 0
        %535 = vperm.xlu0 %534, %v529
        %v536 = vpop.permute.xlu0 %535
        %539 = vset.pattern.permute.xlu0 0
        %540 = vperm.xlu0 %539, %v530
        %v541 = vpop.permute.xlu0 %540
        %544 = vset.pattern.permute.xlu0 0
        %545 = vperm.xlu0 %544, %v531
        %v546 = vpop.permute.xlu0 %545
        %549 = vset.pattern.permute.xlu0 0
        %550 = vperm.xlu0 %549, %v532
        %v551 = vpop.permute.xlu0 %550
        %v553 = vadd.f32 %v513, %v536
        %v554 = vadd.f32 %v514, %v536
        %v555 = vadd.f32 %v515, %v536
        %v556 = vadd.f32 %v516, %v536
        %v557 = vadd.f32 %v517, %v541
        %v558 = vadd.f32 %v518, %v541
        %v559 = vadd.f32 %v519, %v541
        %v560 = vadd.f32 %v520, %v541
        %v561 = vadd.f32 %v521, %v546
        %v562 = vadd.f32 %v522, %v546
        %v563 = vadd.f32 %v523, %v546
        %v564 = vadd.f32 %v524, %v546
        %v565 = vadd.f32 %v525, %v551
        %v566 = vadd.f32 %v526, %v551
        %v567 = vadd.f32 %v527, %v551
        %v568 = vadd.f32 %v528, %v551
        %vm569 = vcmp.ge.f32.partialorder %v553, 0.0
        %vm570 = vcmp.ge.f32.partialorder %v554, 0.0
        %vm571 = vcmp.ge.f32.partialorder %v555, 0.0
        %vm572 = vcmp.ge.f32.partialorder %v556, 0.0
        %vm573 = vcmp.ge.f32.partialorder %v557, 0.0
        %vm574 = vcmp.ge.f32.partialorder %v558, 0.0
        %vm575 = vcmp.ge.f32.partialorder %v559, 0.0
        %vm576 = vcmp.ge.f32.partialorder %v560, 0.0
        %vm577 = vcmp.ge.f32.partialorder %v561, 0.0
        %vm578 = vcmp.ge.f32.partialorder %v562, 0.0
        %vm579 = vcmp.ge.f32.partialorder %v563, 0.0
        %vm580 = vcmp.ge.f32.partialorder %v564, 0.0
        %vm581 = vcmp.ge.f32.partialorder %v565, 0.0
        %vm582 = vcmp.ge.f32.partialorder %v566, 0.0
        %vm583 = vcmp.ge.f32.partialorder %v567, 0.0
        %vm584 = vcmp.ge.f32.partialorder %v568, 0.0
        %v585 = vmul.f32 %v553, 0.01
        %v586 = vmul.f32 %v554, 0.01
        %v587 = vmul.f32 %v555, 0.01
        %v588 = vmul.f32 %v556, 0.01
        %v589 = vmul.f32 %v557, 0.01
        %v590 = vmul.f32 %v558, 0.01
        %v591 = vmul.f32 %v559, 0.01
        %v592 = vmul.f32 %v560, 0.01
        %v593 = vmul.f32 %v561, 0.01
        %v594 = vmul.f32 %v562, 0.01
        %v595 = vmul.f32 %v563, 0.01
        %v596 = vmul.f32 %v564, 0.01
        %v597 = vmul.f32 %v565, 0.01
        %v598 = vmul.f32 %v566, 0.01
        %v599 = vmul.f32 %v567, 0.01
        %v600 = vmul.f32 %v568, 0.01
        %v601 = vsel %vm569, %v553, %v585
        %v602 = vsel %vm570, %v554, %v586
        %v603 = vsel %vm571, %v555, %v587
        %v604 = vsel %vm572, %v556, %v588
        %v605 = vsel %vm573, %v557, %v589
        %v606 = vsel %vm574, %v558, %v590
        %v607 = vsel %vm575, %v559, %v591
        %v608 = vsel %vm576, %v560, %v592
        %v609 = vsel %vm577, %v561, %v593
        %v610 = vsel %vm578, %v562, %v594
        %v611 = vsel %vm579, %v563, %v595
        %v612 = vsel %vm580, %v564, %v596
        %v613 = vsel %vm581, %v565, %v597
        %v614 = vsel %vm582, %v566, %v598
        %v615 = vsel %vm583, %v567, %v599
        %v616 = vsel %vm584, %v568, %v600
        %v617 = vld [vmem:[%s2] sm:$0xf]
        %v618 = vld [vmem:[%s2 + $0x4] sm:$0xf]
        %v619 = vld [vmem:[%s2 + $0x8] sm:$0xf]
        %v620 = vld [vmem:[%s2 + $0xc] sm:$0xf]
        %v621 = vld [vmem:[%s2 + $0x10] sm:$0xf]
        %v622 = vld [vmem:[%s2 + $0x14] sm:$0xf]
        %v623 = vld [vmem:[%s2 + $0x18] sm:$0xf]
        %v624 = vld [vmem:[%s2 + $0x1c] sm:$0xf]
        %v625 = vld [vmem:[%s2 + $0x20] sm:$0xf]
        %v626 = vld [vmem:[%s2 + $0x24] sm:$0xf]
        %v627 = vld [vmem:[%s2 + $0x28] sm:$0xf]
        %v628 = vld [vmem:[%s2 + $0x2c] sm:$0xf]
        %v629 = vld [vmem:[%s2 + $0x30] sm:$0xf]
        %v630 = vld [vmem:[%s2 + $0x34] sm:$0xf]
        %v631 = vld [vmem:[%s2 + $0x38] sm:$0xf]
        %v632 = vld [vmem:[%s2 + $0x3c] sm:$0xf]
        %v633 = vld [vmem:[%s2 + $0x40] sm:$0xf]
        %v634 = vld [vmem:[%s2 + $0x44] sm:$0xf]
        %v635 = vld [vmem:[%s2 + $0x48] sm:$0x7]
        %v636 = vpack.c.bf16 %v605, %v601
        %v637 = vpack.c.bf16 %v606, %v602
        %v638 = vpack.c.bf16 %v607, %v603
        %v639 = vpack.c.bf16 %v608, %v604
        %v640 = vpack.c.bf16 %v613, %v609
        %v641 = vpack.c.bf16 %v614, %v610
        %v642 = vpack.c.bf16 %v615, %v611
        %v643 = vpack.c.bf16 %v616, %v612
        %v644 = vld [vmem:[%s6 + $0x20] sm:$0xff]
        %v645 = vld [vmem:[%s6 + $0x28] sm:$0xff]
        %v646 = vld [vmem:[%s6 + $0x30] sm:$0xff]
        %v647 = vld [vmem:[%s6 + $0x38] sm:$0xff]
        %v648 = vld [vmem:[%s6 + $0x40] sm:$0xff]
        %v649 = vld [vmem:[%s6 + $0x48] sm:$0xff]
        %v650 = vld [vmem:[%s6 + $0x50] sm:$0xff]
        %v651 = vld [vmem:[%s6 + $0x58] sm:$0xff]
        %v652 = vld [vmem:[%s6 + $0x60] sm:$0xff]
        %v653 = vld [vmem:[%s6 + $0x68] sm:$0xff]
        %v654 = vld [vmem:[%s6 + $0x70] sm:$0xff]
        %v655 = vld [vmem:[%s6 + $0x78] sm:$0xff]
        %v656 = vld [vmem:[%s6 + $0x80] sm:$0xff]
        %v657 = vld [vmem:[%s6 + $0x88] sm:$0xff]
        %v658 = vld [vmem:[%s6 + $0x90] sm:$0xff]
        %v659 = vld [vmem:[%s6 + $0x98] sm:$0xff]
        %v660 = vld [vmem:[%s6 + $0xa0] sm:$0xff]
        %v661 = vld [vmem:[%s6 + $0xa8] sm:$0xff]
        %v662 = vld [vmem:[%s6 + $0xb0] sm:$0x3f]
        %664 = vset.pattern.permute.xlu0 0
        %665 = vperm.xlu0 %664, %v644
        %v666 = vpop.permute.xlu0 %665
        %669 = vset.pattern.permute.xlu0 0
        %670 = vperm.xlu0 %669, %v645
        %v671 = vpop.permute.xlu0 %670
        %674 = vset.pattern.permute.xlu0 0
        %675 = vperm.xlu0 %674, %v646
        %v676 = vpop.permute.xlu0 %675
        %679 = vset.pattern.permute.xlu0 0
        %680 = vperm.xlu0 %679, %v647
        %v681 = vpop.permute.xlu0 %680
        %684 = vset.pattern.permute.xlu0 0
        %685 = vperm.xlu0 %684, %v648
        %v686 = vpop.permute.xlu0 %685
        %689 = vset.pattern.permute.xlu0 0
        %690 = vperm.xlu0 %689, %v649
        %v691 = vpop.permute.xlu0 %690
        %694 = vset.pattern.permute.xlu0 0
        %695 = vperm.xlu0 %694, %v650
        %v696 = vpop.permute.xlu0 %695
        %699 = vset.pattern.permute.xlu0 0
        %700 = vperm.xlu0 %699, %v651
        %v701 = vpop.permute.xlu0 %700
        %704 = vset.pattern.permute.xlu0 0
        %705 = vperm.xlu0 %704, %v652
        %v706 = vpop.permute.xlu0 %705
        %709 = vset.pattern.permute.xlu0 0
        %710 = vperm.xlu0 %709, %v653
        %v711 = vpop.permute.xlu0 %710
        %714 = vset.pattern.permute.xlu0 0
        %715 = vperm.xlu0 %714, %v654
        %v716 = vpop.permute.xlu0 %715
        %719 = vset.pattern.permute.xlu0 0
        %720 = vperm.xlu0 %719, %v655
        %v721 = vpop.permute.xlu0 %720
        %724 = vset.pattern.permute.xlu0 0
        %725 = vperm.xlu0 %724, %v656
        %v726 = vpop.permute.xlu0 %725
        %729 = vset.pattern.permute.xlu0 0
        %730 = vperm.xlu0 %729, %v657
        %v731 = vpop.permute.xlu0 %730
        %734 = vset.pattern.permute.xlu0 0
        %735 = vperm.xlu0 %734, %v658
        %v736 = vpop.permute.xlu0 %735
        %739 = vset.pattern.permute.xlu0 0
        %740 = vperm.xlu0 %739, %v659
        %v741 = vpop.permute.xlu0 %740
        %744 = vset.pattern.permute.xlu0 0
        %745 = vperm.xlu0 %744, %v660
        %v746 = vpop.permute.xlu0 %745
        %749 = vset.pattern.permute.xlu0 0
        %750 = vperm.xlu0 %749, %v661
        %v751 = vpop.permute.xlu0 %750
        %754 = vset.pattern.permute.xlu0 0
        %755 = vperm.xlu0 %754, %v662
        %v756 = vpop.permute.xlu0 %755
        %v777 = vunpack.c.l.b16 %v617
        %v778 = vunpack.c.l.b16 %v618
        %v779 = vunpack.c.l.b16 %v619
        %v780 = vunpack.c.l.b16 %v620
        %v781 = vunpack.c.l.b16 %v621
        %v782 = vunpack.c.l.b16 %v622
        %v783 = vunpack.c.l.b16 %v623
        %v784 = vunpack.c.l.b16 %v624
        %v785 = vunpack.c.l.b16 %v625
        %v786 = vunpack.c.l.b16 %v626
        %v787 = vunpack.c.l.b16 %v627
        %v788 = vunpack.c.l.b16 %v628
        %v789 = vunpack.c.l.b16 %v629
        %v790 = vunpack.c.l.b16 %v630
        %v791 = vunpack.c.l.b16 %v631
        %v792 = vunpack.c.l.b16 %v632
        %v793 = vunpack.c.l.b16 %v633
        %v794 = vunpack.c.l.b16 %v634
        %v795 = vunpack.c.l.b16 %v635
        %v796 = vpack.c.b16 %v778, %v777
        %v797 = vpack.c.b16 %v780, %v779
        %v798 = vpack.c.b16 %v782, %v781
        %v799 = vpack.c.b16 %v784, %v783
        %v800 = vpack.c.b16 %v786, %v785
        %v801 = vpack.c.b16 %v788, %v787
        %v802 = vpack.c.b16 %v790, %v789
        %v803 = vpack.c.b16 %v792, %v791
        %v804 = vpack.c.b16 %v794, %v793
        %v805 = vpack.c.b16 %v795, %v795
        %vm806 = vcmask 244736
        %v808 = vsel %vm806, %v796, 0
        %v811 = vsel %vm806, %v797, 0
        %v814 = vsel %vm806, %v798, 0
        %v817 = vsel %vm806, %v799, 0
        %v820 = vsel %vm806, %v800, 0
        %v823 = vsel %vm806, %v801, 0
        %v826 = vsel %vm806, %v802, 0
        %v829 = vsel %vm806, %v803, 0
        %v832 = vsel %vm806, %v804, 0
        %v835 = vsel %vm806, %v805, 0
        %vm837 = vcmask 1046528
        %v839 = vsel %vm837, %v640, 0
        %v842 = vsel %vm837, %v641, 0
        %v845 = vsel %vm837, %v642, 0
        %v848 = vsel %vm837, %v643, 0
        %850 = vmatprep.subr.bf16.mxu0 %v637
        %851 = vmatpush1.bf16.msra.mxu0 %v636
        %852 = vmatprep.subr.bf16.mxu0 %v842
        %853 = vmatpush1.bf16.msra.mxu0 %v839
        %854 = vmatprep.subr.bf16.mxu0 0
        %855 = vmatpush1.bf16.msra.mxu0 0
        %856 = vmatprep.subr.bf16.mxu0 0
        %857 = vmatpush1.bf16.msra.mxu0 0
        %858 = vmatprep.subr.bf16.mxu0 0
        %859 = vmatpush1.bf16.msra.mxu0 0
        %860 = vmatprep.subr.bf16.mxu0 0
        %861 = vmatpush1.bf16.msra.mxu0 0
        %862 = vmatprep.subr.bf16.mxu0 0
        %863 = vmatpush1.bf16.msra.mxu0 0
        %864 = vmatprep.subr.bf16.mxu0 0
        %865 = vmatpush1.bf16.msra.mxu0 0
        %866 = vmatprep.subr.bf16.mxu0 0
        %867 = vmatpush1.bf16.msra.mxu0 0
        %868 = vmatprep.subr.bf16.mxu0 0
        %869 = vmatpush1.bf16.msra.mxu0 0
        %870 = vmatprep.subr.bf16.mxu0 0
        %871 = vmatpush1.bf16.msra.mxu0 0
        %872 = vmatprep.subr.bf16.mxu0 0
        %873 = vmatpush1.bf16.msra.mxu0 0
        %874 = vmatprep.subr.bf16.mxu0 0
        %875 = vmatpush1.bf16.msra.mxu0 0
        %876 = vmatprep.subr.bf16.mxu0 0
        %877 = vmatpush1.bf16.msra.mxu0 0
        %878 = vmatprep.subr.bf16.mxu0 0
        %879 = vmatpush1.bf16.msra.mxu0 0
        %880 = vmatprep.subr.bf16.mxu0 0
        %881 = vmatpush1.bf16.msra.mxu0 0
        %882 = vmatprep.mubr.bf16.mxu0 0
        %883 = vmatmul.mubr.bf16.gmra.mrb[0].mxu0 %v808
        %v884 = vpop.f32.mrb[0].mxu0
        %v885 = vadd.f32 %v666, %v884
        %v886 = vpop.f32.mrb[0].mxu0
        %v887 = vadd.f32 %v666, %v886
        %v888 = vpop.f32.mrb[0].mxu0
        %v889 = vadd.f32 %v671, %v888
        %v890 = vpop.f32.mrb[0].mxu0
        %v891 = vadd.f32 %v671, %v890
        %892 = vmatprep.mubr.bf16.mxu0 0
        %893 = vmatmul.mubr.bf16.gmra.mrb[0].mxu0 %v811
        %v894 = vpop.f32.mrb[0].mxu0
        %v895 = vadd.f32 %v676, %v894
        %v896 = vpop.f32.mrb[0].mxu0
        %v897 = vadd.f32 %v676, %v896
        %v898 = vpop.f32.mrb[0].mxu0
        %v899 = vadd.f32 %v681, %v898
        %v900 = vpop.f32.mrb[0].mxu0
        %v901 = vadd.f32 %v681, %v900
        %902 = vmatprep.mubr.bf16.mxu0 0
        %903 = vmatmul.mubr.bf16.gmra.mrb[0].mxu0 %v814
        %v904 = vpop.f32.mrb[0].mxu0
        %v905 = vadd.f32 %v686, %v904
        %v906 = vpop.f32.mrb[0].mxu0
        %v907 = vadd.f32 %v686, %v906
        %v908 = vpop.f32.mrb[0].mxu0
        %v909 = vadd.f32 %v691, %v908
        %v910 = vpop.f32.mrb[0].mxu0
        %v911 = vadd.f32 %v691, %v910
        %912 = vmatprep.mubr.bf16.mxu0 0
        %913 = vmatmul.mubr.bf16.gmra.mrb[0].mxu0 %v817
        %v914 = vpop.f32.mrb[0].mxu0
        %v915 = vadd.f32 %v696, %v914
        %v916 = vpop.f32.mrb[0].mxu0
        %v917 = vadd.f32 %v696, %v916
        %v918 = vpop.f32.mrb[0].mxu0
        %v919 = vadd.f32 %v701, %v918
        %v920 = vpop.f32.mrb[0].mxu0
        %v921 = vadd.f32 %v701, %v920
        %922 = vmatprep.mubr.bf16.mxu0 0
        %923 = vmatmul.mubr.bf16.gmra.mrb[0].mxu0 %v820
        %v924 = vpop.f32.mrb[0].mxu0
        %v925 = vadd.f32 %v706, %v924
        %v926 = vpop.f32.mrb[0].mxu0
        %v927 = vadd.f32 %v706, %v926
        %v928 = vpop.f32.mrb[0].mxu0
        %v929 = vadd.f32 %v711, %v928
        %v930 = vpop.f32.mrb[0].mxu0
        %v931 = vadd.f32 %v711, %v930
        %932 = vmatprep.mubr.bf16.mxu0 0
        %933 = vmatmul.mubr.bf16.gmra.mrb[0].mxu0 %v823
        %v934 = vpop.f32.mrb[0].mxu0
        %v935 = vadd.f32 %v716, %v934
        %v936 = vpop.f32.mrb[0].mxu0
        %v937 = vadd.f32 %v716, %v936
        %v938 = vpop.f32.mrb[0].mxu0
        %v939 = vadd.f32 %v721, %v938
        %v940 = vpop.f32.mrb[0].mxu0
        %v941 = vadd.f32 %v721, %v940
        %942 = vmatprep.mubr.bf16.mxu0 0
        %943 = vmatmul.mubr.bf16.gmra.mrb[0].mxu0 %v826
        %v944 = vpop.f32.mrb[0].mxu0
        %v945 = vadd.f32 %v726, %v944
        %v946 = vpop.f32.mrb[0].mxu0
        %v947 = vadd.f32 %v726, %v946
        %v948 = vpop.f32.mrb[0].mxu0
        %v949 = vadd.f32 %v731, %v948
        %v950 = vpop.f32.mrb[0].mxu0
        %v951 = vadd.f32 %v731, %v950
        %952 = vmatprep.mubr.bf16.mxu0 0
        %953 = vmatmul.mubr.bf16.gmra.mrb[0].mxu0 %v829
        %v954 = vpop.f32.mrb[0].mxu0
        %v955 = vadd.f32 %v736, %v954
        %v956 = vpop.f32.mrb[0].mxu0
        %v957 = vadd.f32 %v736, %v956
        %v958 = vpop.f32.mrb[0].mxu0
        %v959 = vadd.f32 %v741, %v958
        %v960 = vpop.f32.mrb[0].mxu0
        %v961 = vadd.f32 %v741, %v960
        %962 = vmatprep.mubr.bf16.mxu0 0
        %963 = vmatmul.mubr.bf16.gmra.mrb[0].mxu0 %v832
        %v964 = vpop.f32.mrb[0].mxu0
        %v965 = vadd.f32 %v746, %v964
        %v966 = vpop.f32.mrb[0].mxu0
        %v967 = vadd.f32 %v746, %v966
        %v968 = vpop.f32.mrb[0].mxu0
        %v969 = vadd.f32 %v751, %v968
        %v970 = vpop.f32.mrb[0].mxu0
        %v971 = vadd.f32 %v751, %v970
        %972 = vmatprep.mubr.bf16.mxu0 0
        %973 = vmatmul.mubr.bf16.gmra.mrb[0].mxu0 %v835
        %v974 = vpop.f32.mrb[0].mxu0
        %v975 = vadd.f32 %v756, %v974
        %v976 = vpop.f32.mrb[0].mxu0
        %v977 = vadd.f32 %v756, %v976
        %v978 = vpop.f32.mrb[0].mxu0
        %v979 = vpop.f32.mrb[0].mxu0
        %980 = vdwg.mxu0
        %981 = vmatprep.subr.bf16.mxu0 %v639
        %982 = vmatpush1.bf16.msra.mxu0 %v638
        %983 = vmatprep.subr.bf16.mxu0 %v848
        %984 = vmatpush1.bf16.msra.mxu0 %v845
        %985 = vmatprep.subr.bf16.mxu0 0
        %986 = vmatpush1.bf16.msra.mxu0 0
        %987 = vmatprep.subr.bf16.mxu0 0
        %988 = vmatpush1.bf16.msra.mxu0 0
        %989 = vmatprep.subr.bf16.mxu0 0
        %990 = vmatpush1.bf16.msra.mxu0 0
        %991 = vmatprep.subr.bf16.mxu0 0
        %992 = vmatpush1.bf16.msra.mxu0 0
        %993 = vmatprep.subr.bf16.mxu0 0
        %994 = vmatpush1.bf16.msra.mxu0 0
        %995 = vmatprep.subr.bf16.mxu0 0
        %996 = vmatpush1.bf16.msra.mxu0 0
        %997 = vmatprep.subr.bf16.mxu0 0
        %998 = vmatpush1.bf16.msra.mxu0 0
        %999 = vmatprep.subr.bf16.mxu0 0
        %1000 = vmatpush1.bf16.msra.mxu0 0
        %1001 = vmatprep.subr.bf16.mxu0 0
        %1002 = vmatpush1.bf16.msra.mxu0 0
        %1003 = vmatprep.subr.bf16.mxu0 0
        %1004 = vmatpush1.bf16.msra.mxu0 0
        %1005 = vmatprep.subr.bf16.mxu0 0
        %1006 = vmatpush1.bf16.msra.mxu0 0
        %1007 = vmatprep.subr.bf16.mxu0 0
        %1008 = vmatpush1.bf16.msra.mxu0 0
        %1009 = vmatprep.subr.bf16.mxu0 0
        %1010 = vmatpush1.bf16.msra.mxu0 0
        %1011 = vmatprep.subr.bf16.mxu0 0
        %1012 = vmatpush1.bf16.msra.mxu0 0
        %1013 = vmatprep.mubr.bf16.mxu0 0
        %1014 = vmatmul.mubr.bf16.gmra.mrb[0].mxu0 %v808
        %v1015 = vpop.f32.mrb[0].mxu0
        %v1016 = vadd.f32 %v666, %v1015
        %v1017 = vpop.f32.mrb[0].mxu0
        %v1018 = vadd.f32 %v666, %v1017
        %v1019 = vpop.f32.mrb[0].mxu0
        %v1020 = vadd.f32 %v671, %v1019
        %v1021 = vpop.f32.mrb[0].mxu0
        %v1022 = vadd.f32 %v671, %v1021
        %1023 = vmatprep.mubr.bf16.mxu0 0
        %1024 = vmatmul.mubr.bf16.gmra.mrb[0].mxu0 %v811
        %v1025 = vpop.f32.mrb[0].mxu0
        %v1026 = vadd.f32 %v676, %v1025
        %v1027 = vpop.f32.mrb[0].mxu0
        %v1028 = vadd.f32 %v676, %v1027
        %v1029 = vpop.f32.mrb[0].mxu0
        %v1030 = vadd.f32 %v681, %v1029
        %v1031 = vpop.f32.mrb[0].mxu0
        %v1032 = vadd.f32 %v681, %v1031
        %1033 = vmatprep.mubr.bf16.mxu0 0
        %1034 = vmatmul.mubr.bf16.gmra.mrb[0].mxu0 %v814
        %v1035 = vpop.f32.mrb[0].mxu0
        %v1036 = vadd.f32 %v686, %v1035
        %v1037 = vpop.f32.mrb[0].mxu0
        %v1038 = vadd.f32 %v686, %v1037
        %v1039 = vpop.f32.mrb[0].mxu0
        %v1040 = vadd.f32 %v691, %v1039
        %v1041 = vpop.f32.mrb[0].mxu0
        %v1042 = vadd.f32 %v691, %v1041
        %1043 = vmatprep.mubr.bf16.mxu0 0
        %1044 = vmatmul.mubr.bf16.gmra.mrb[0].mxu0 %v817
        %v1045 = vpop.f32.mrb[0].mxu0
        %v1046 = vadd.f32 %v696, %v1045
        %v1047 = vpop.f32.mrb[0].mxu0
        %v1048 = vadd.f32 %v696, %v1047
        %v1049 = vpop.f32.mrb[0].mxu0
        %v1050 = vadd.f32 %v701, %v1049
        %v1051 = vpop.f32.mrb[0].mxu0
        %v1052 = vadd.f32 %v701, %v1051
        %1053 = vmatprep.mubr.bf16.mxu0 0
        %1054 = vmatmul.mubr.bf16.gmra.mrb[0].mxu0 %v820
        %v1055 = vpop.f32.mrb[0].mxu0
        %v1056 = vadd.f32 %v706, %v1055
        %v1057 = vpop.f32.mrb[0].mxu0
        %v1058 = vadd.f32 %v706, %v1057
        %v1059 = vpop.f32.mrb[0].mxu0
        %v1060 = vadd.f32 %v711, %v1059
        %v1061 = vpop.f32.mrb[0].mxu0
        %v1062 = vadd.f32 %v711, %v1061
        %1063 = vmatprep.mubr.bf16.mxu0 0
        %1064 = vmatmul.mubr.bf16.gmra.mrb[0].mxu0 %v823
        %v1065 = vpop.f32.mrb[0].mxu0
        %v1066 = vadd.f32 %v716, %v1065
        %v1067 = vpop.f32.mrb[0].mxu0
        %v1068 = vadd.f32 %v716, %v1067
        %v1069 = vpop.f32.mrb[0].mxu0
        %v1070 = vadd.f32 %v721, %v1069
        %v1071 = vpop.f32.mrb[0].mxu0
        %v1072 = vadd.f32 %v721, %v1071
        %1073 = vmatprep.mubr.bf16.mxu0 0
        %1074 = vmatmul.mubr.bf16.gmra.mrb[0].mxu0 %v826
        %v1075 = vpop.f32.mrb[0].mxu0
        %v1076 = vadd.f32 %v726, %v1075
        %v1077 = vpop.f32.mrb[0].mxu0
        %v1078 = vadd.f32 %v726, %v1077
        %v1079 = vpop.f32.mrb[0].mxu0
        %v1080 = vadd.f32 %v731, %v1079
        %v1081 = vpop.f32.mrb[0].mxu0
        %v1082 = vadd.f32 %v731, %v1081
        %1083 = vmatprep.mubr.bf16.mxu0 0
        %1084 = vmatmul.mubr.bf16.gmra.mrb[0].mxu0 %v829
        %v1085 = vpop.f32.mrb[0].mxu0
        %v1086 = vadd.f32 %v736, %v1085
        %v1087 = vpop.f32.mrb[0].mxu0
        %v1088 = vadd.f32 %v736, %v1087
        %v1089 = vpop.f32.mrb[0].mxu0
        %v1090 = vadd.f32 %v741, %v1089
        %v1091 = vpop.f32.mrb[0].mxu0
        %v1092 = vadd.f32 %v741, %v1091
        %1093 = vmatprep.mubr.bf16.mxu0 0
        %1094 = vmatmul.mubr.bf16.gmra.mrb[0].mxu0 %v832
        %v1095 = vpop.f32.mrb[0].mxu0
        %v1096 = vadd.f32 %v746, %v1095
        %v1097 = vpop.f32.mrb[0].mxu0
        %v1098 = vadd.f32 %v746, %v1097
        %v1099 = vpop.f32.mrb[0].mxu0
        %v1100 = vadd.f32 %v751, %v1099
        %v1101 = vpop.f32.mrb[0].mxu0
        %v1102 = vadd.f32 %v751, %v1101
        %1103 = vmatprep.mubr.bf16.mxu0 0
        %1104 = vmatmul.mubr.bf16.gmra.mrb[0].mxu0 %v835
        %v1105 = vpop.f32.mrb[0].mxu0
        %v1106 = vadd.f32 %v756, %v1105
        %v1107 = vpop.f32.mrb[0].mxu0
        %v1108 = vadd.f32 %v756, %v1107
        %v1109 = vpop.f32.mrb[0].mxu0
        %v1110 = vpop.f32.mrb[0].mxu0
        %1111 = vdwg.mxu0
        %vm1112 = vcmp.ge.f32.partialorder %v885, 0.0
        %vm1113 = vcmp.ge.f32.partialorder %v887, 0.0
        %vm1114 = vcmp.ge.f32.partialorder %v1016, 0.0
        %vm1115 = vcmp.ge.f32.partialorder %v1018, 0.0
        %vm1116 = vcmp.ge.f32.partialorder %v889, 0.0
        %vm1117 = vcmp.ge.f32.partialorder %v891, 0.0
        %vm1118 = vcmp.ge.f32.partialorder %v1020, 0.0
        %vm1119 = vcmp.ge.f32.partialorder %v1022, 0.0
        %vm1120 = vcmp.ge.f32.partialorder %v895, 0.0
        %vm1121 = vcmp.ge.f32.partialorder %v897, 0.0
        %vm1122 = vcmp.ge.f32.partialorder %v1026, 0.0
        %vm1123 = vcmp.ge.f32.partialorder %v1028, 0.0
        %vm1124 = vcmp.ge.f32.partialorder %v899, 0.0
        %vm1125 = vcmp.ge.f32.partialorder %v901, 0.0
        %vm1126 = vcmp.ge.f32.partialorder %v1030, 0.0
        %vm1127 = vcmp.ge.f32.partialorder %v1032, 0.0
        %vm1128 = vcmp.ge.f32.partialorder %v905, 0.0
        %vm1129 = vcmp.ge.f32.partialorder %v907, 0.0
        %vm1130 = vcmp.ge.f32.partialorder %v1036, 0.0
        %vm1131 = vcmp.ge.f32.partialorder %v1038, 0.0
        %vm1132 = vcmp.ge.f32.partialorder %v909, 0.0
        %vm1133 = vcmp.ge.f32.partialorder %v911, 0.0
        %vm1134 = vcmp.ge.f32.partialorder %v1040, 0.0
        %vm1135 = vcmp.ge.f32.partialorder %v1042, 0.0
        %vm1136 = vcmp.ge.f32.partialorder %v915, 0.0
        %vm1137 = vcmp.ge.f32.partialorder %v917, 0.0
        %vm1138 = vcmp.ge.f32.partialorder %v1046, 0.0
        %vm1139 = vcmp.ge.f32.partialorder %v1048, 0.0
        %vm1140 = vcmp.ge.f32.partialorder %v919, 0.0
        %vm1141 = vcmp.ge.f32.partialorder %v921, 0.0
        %vm1142 = vcmp.ge.f32.partialorder %v1050, 0.0
        %vm1143 = vcmp.ge.f32.partialorder %v1052, 0.0
        %vm1144 = vcmp.ge.f32.partialorder %v925, 0.0
        %vm1145 = vcmp.ge.f32.partialorder %v927, 0.0
        %vm1146 = vcmp.ge.f32.partialorder %v1056, 0.0
        %vm1147 = vcmp.ge.f32.partialorder %v1058, 0.0
        %vm1148 = vcmp.ge.f32.partialorder %v929, 0.0
        %vm1149 = vcmp.ge.f32.partialorder %v931, 0.0
        %vm1150 = vcmp.ge.f32.partialorder %v1060, 0.0
        %vm1151 = vcmp.ge.f32.partialorder %v1062, 0.0
        %vm1152 = vcmp.ge.f32.partialorder %v935, 0.0
        %vm1153 = vcmp.ge.f32.partialorder %v937, 0.0
        %vm1154 = vcmp.ge.f32.partialorder %v1066, 0.0
        %vm1155 = vcmp.ge.f32.partialorder %v1068, 0.0
        %vm1156 = vcmp.ge.f32.partialorder %v939, 0.0
        %vm1157 = vcmp.ge.f32.partialorder %v941, 0.0
        %vm1158 = vcmp.ge.f32.partialorder %v1070, 0.0
        %vm1159 = vcmp.ge.f32.partialorder %v1072, 0.0
        %vm1160 = vcmp.ge.f32.partialorder %v945, 0.0
        %vm1161 = vcmp.ge.f32.partialorder %v947, 0.0
        %vm1162 = vcmp.ge.f32.partialorder %v1076, 0.0
        %vm1163 = vcmp.ge.f32.partialorder %v1078, 0.0
        %vm1164 = vcmp.ge.f32.partialorder %v949, 0.0
        %vm1165 = vcmp.ge.f32.partialorder %v951, 0.0
        %vm1166 = vcmp.ge.f32.partialorder %v1080, 0.0
        %vm1167 = vcmp.ge.f32.partialorder %v1082, 0.0
        %vm1168 = vcmp.ge.f32.partialorder %v955, 0.0
        %vm1169 = vcmp.ge.f32.partialorder %v957, 0.0
        %vm1170 = vcmp.ge.f32.partialorder %v1086, 0.0
        %vm1171 = vcmp.ge.f32.partialorder %v1088, 0.0
        %vm1172 = vcmp.ge.f32.partialorder %v959, 0.0
        %vm1173 = vcmp.ge.f32.partialorder %v961, 0.0
        %vm1174 = vcmp.ge.f32.partialorder %v1090, 0.0
        %vm1175 = vcmp.ge.f32.partialorder %v1092, 0.0
        %vm1176 = vcmp.ge.f32.partialorder %v965, 0.0
        %vm1177 = vcmp.ge.f32.partialorder %v967, 0.0
        %vm1178 = vcmp.ge.f32.partialorder %v1096, 0.0
        %vm1179 = vcmp.ge.f32.partialorder %v1098, 0.0
        %vm1180 = vcmp.ge.f32.partialorder %v969, 0.0
        %vm1181 = vcmp.ge.f32.partialorder %v971, 0.0
        %vm1182 = vcmp.ge.f32.partialorder %v1100, 0.0
        %vm1183 = vcmp.ge.f32.partialorder %v1102, 0.0
        %vm1184 = vcmp.ge.f32.partialorder %v975, 0.0
        %vm1185 = vcmp.ge.f32.partialorder %v977, 0.0
        %vm1186 = vcmp.ge.f32.partialorder %v1106, 0.0
        %vm1187 = vcmp.ge.f32.partialorder %v1108, 0.0
        %v1188 = vmul.f32 %v885, 0.01
        %v1189 = vmul.f32 %v887, 0.01
        %v1190 = vmul.f32 %v1016, 0.01
        %v1191 = vmul.f32 %v1018, 0.01
        %v1192 = vmul.f32 %v889, 0.01
        %v1193 = vmul.f32 %v891, 0.01
        %v1194 = vmul.f32 %v1020, 0.01
        %v1195 = vmul.f32 %v1022, 0.01
        %v1196 = vmul.f32 %v895, 0.01
        %v1197 = vmul.f32 %v897, 0.01
        %v1198 = vmul.f32 %v1026, 0.01
        %v1199 = vmul.f32 %v1028, 0.01
        %v1200 = vmul.f32 %v899, 0.01
        %v1201 = vmul.f32 %v901, 0.01
        %v1202 = vmul.f32 %v1030, 0.01
        %v1203 = vmul.f32 %v1032, 0.01
        %v1204 = vmul.f32 %v905, 0.01
        %v1205 = vmul.f32 %v907, 0.01
        %v1206 = vmul.f32 %v1036, 0.01
        %v1207 = vmul.f32 %v1038, 0.01
        %v1208 = vmul.f32 %v909, 0.01
        %v1209 = vmul.f32 %v911, 0.01
        %v1210 = vmul.f32 %v1040, 0.01
        %v1211 = vmul.f32 %v1042, 0.01
        %v1212 = vmul.f32 %v915, 0.01
        %v1213 = vmul.f32 %v917, 0.01
        %v1214 = vmul.f32 %v1046, 0.01
        %v1215 = vmul.f32 %v1048, 0.01
        %v1216 = vmul.f32 %v919, 0.01
        %v1217 = vmul.f32 %v921, 0.01
        %v1218 = vmul.f32 %v1050, 0.01
        %v1219 = vmul.f32 %v1052, 0.01
        %v1220 = vmul.f32 %v925, 0.01
        %v1221 = vmul.f32 %v927, 0.01
        %v1222 = vmul.f32 %v1056, 0.01
        %v1223 = vmul.f32 %v1058, 0.01
        %v1224 = vmul.f32 %v929, 0.01
        %v1225 = vmul.f32 %v931, 0.01
        %v1226 = vmul.f32 %v1060, 0.01
        %v1227 = vmul.f32 %v1062, 0.01
        %v1228 = vmul.f32 %v935, 0.01
        %v1229 = vmul.f32 %v937, 0.01
        %v1230 = vmul.f32 %v1066, 0.01
        %v1231 = vmul.f32 %v1068, 0.01
        %v1232 = vmul.f32 %v939, 0.01
        %v1233 = vmul.f32 %v941, 0.01
        %v1234 = vmul.f32 %v1070, 0.01
        %v1235 = vmul.f32 %v1072, 0.01
        %v1236 = vmul.f32 %v945, 0.01
        %v1237 = vmul.f32 %v947, 0.01
        %v1238 = vmul.f32 %v1076, 0.01
        %v1239 = vmul.f32 %v1078, 0.01
        %v1240 = vmul.f32 %v949, 0.01
        %v1241 = vmul.f32 %v951, 0.01
        %v1242 = vmul.f32 %v1080, 0.01
        %v1243 = vmul.f32 %v1082, 0.01
        %v1244 = vmul.f32 %v955, 0.01
        %v1245 = vmul.f32 %v957, 0.01
        %v1246 = vmul.f32 %v1086, 0.01
        %v1247 = vmul.f32 %v1088, 0.01
        %v1248 = vmul.f32 %v959, 0.01
        %v1249 = vmul.f32 %v961, 0.01
        %v1250 = vmul.f32 %v1090, 0.01
        %v1251 = vmul.f32 %v1092, 0.01
        %v1252 = vmul.f32 %v965, 0.01
        %v1253 = vmul.f32 %v967, 0.01
        %v1254 = vmul.f32 %v1096, 0.01
        %v1255 = vmul.f32 %v1098, 0.01
        %v1256 = vmul.f32 %v969, 0.01
        %v1257 = vmul.f32 %v971, 0.01
        %v1258 = vmul.f32 %v1100, 0.01
        %v1259 = vmul.f32 %v1102, 0.01
        %v1260 = vmul.f32 %v975, 0.01
        %v1261 = vmul.f32 %v977, 0.01
        %v1262 = vmul.f32 %v1106, 0.01
        %v1263 = vmul.f32 %v1108, 0.01
        %v1264 = vsel %vm1112, %v885, %v1188
        %v1265 = vsel %vm1113, %v887, %v1189
        %v1266 = vsel %vm1114, %v1016, %v1190
        %v1267 = vsel %vm1115, %v1018, %v1191
        %v1268 = vsel %vm1116, %v889, %v1192
        %v1269 = vsel %vm1117, %v891, %v1193
        %v1270 = vsel %vm1118, %v1020, %v1194
        %v1271 = vsel %vm1119, %v1022, %v1195
        %v1272 = vsel %vm1120, %v895, %v1196
        %v1273 = vsel %vm1121, %v897, %v1197
        %v1274 = vsel %vm1122, %v1026, %v1198
        %v1275 = vsel %vm1123, %v1028, %v1199
        %v1276 = vsel %vm1124, %v899, %v1200
        %v1277 = vsel %vm1125, %v901, %v1201
        %v1278 = vsel %vm1126, %v1030, %v1202
        %v1279 = vsel %vm1127, %v1032, %v1203
        %v1280 = vsel %vm1128, %v905, %v1204
        %v1281 = vsel %vm1129, %v907, %v1205
        %v1282 = vsel %vm1130, %v1036, %v1206
        %v1283 = vsel %vm1131, %v1038, %v1207
        %v1284 = vsel %vm1132, %v909, %v1208
        %v1285 = vsel %vm1133, %v911, %v1209
        %v1286 = vsel %vm1134, %v1040, %v1210
        %v1287 = vsel %vm1135, %v1042, %v1211
        %v1288 = vsel %vm1136, %v915, %v1212
        %v1289 = vsel %vm1137, %v917, %v1213
        %v1290 = vsel %vm1138, %v1046, %v1214
        %v1291 = vsel %vm1139, %v1048, %v1215
        %v1292 = vsel %vm1140, %v919, %v1216
        %v1293 = vsel %vm1141, %v921, %v1217
        %v1294 = vsel %vm1142, %v1050, %v1218
        %v1295 = vsel %vm1143, %v1052, %v1219
        %v1296 = vsel %vm1144, %v925, %v1220
        %v1297 = vsel %vm1145, %v927, %v1221
        %v1298 = vsel %vm1146, %v1056, %v1222
        %v1299 = vsel %vm1147, %v1058, %v1223
        %v1300 = vsel %vm1148, %v929, %v1224
        %v1301 = vsel %vm1149, %v931, %v1225
        %v1302 = vsel %vm1150, %v1060, %v1226
        %v1303 = vsel %vm1151, %v1062, %v1227
        %v1304 = vsel %vm1152, %v935, %v1228
        %v1305 = vsel %vm1153, %v937, %v1229
        %v1306 = vsel %vm1154, %v1066, %v1230
        %v1307 = vsel %vm1155, %v1068, %v1231
        %v1308 = vsel %vm1156, %v939, %v1232
        %v1309 = vsel %vm1157, %v941, %v1233
        %v1310 = vsel %vm1158, %v1070, %v1234
        %v1311 = vsel %vm1159, %v1072, %v1235
        %v1312 = vsel %vm1160, %v945, %v1236
        %v1313 = vsel %vm1161, %v947, %v1237
        %v1314 = vsel %vm1162, %v1076, %v1238
        %v1315 = vsel %vm1163, %v1078, %v1239
        %v1316 = vsel %vm1164, %v949, %v1240
        %v1317 = vsel %vm1165, %v951, %v1241
        %v1318 = vsel %vm1166, %v1080, %v1242
        %v1319 = vsel %vm1167, %v1082, %v1243
        %v1320 = vsel %vm1168, %v955, %v1244
        %v1321 = vsel %vm1169, %v957, %v1245
        %v1322 = vsel %vm1170, %v1086, %v1246
        %v1323 = vsel %vm1171, %v1088, %v1247
        %v1324 = vsel %vm1172, %v959, %v1248
        %v1325 = vsel %vm1173, %v961, %v1249
        %v1326 = vsel %vm1174, %v1090, %v1250
        %v1327 = vsel %vm1175, %v1092, %v1251
        %v1328 = vsel %vm1176, %v965, %v1252
        %v1329 = vsel %vm1177, %v967, %v1253
        %v1330 = vsel %vm1178, %v1096, %v1254
        %v1331 = vsel %vm1179, %v1098, %v1255
        %v1332 = vsel %vm1180, %v969, %v1256
        %v1333 = vsel %vm1181, %v971, %v1257
        %v1334 = vsel %vm1182, %v1100, %v1258
        %v1335 = vsel %vm1183, %v1102, %v1259
        %v1336 = vsel %vm1184, %v975, %v1260
        %v1337 = vsel %vm1185, %v977, %v1261
        %v1338 = vsel %vm1186, %v1106, %v1262
        %v1339 = vsel %vm1187, %v1108, %v1263
        %v1340 = vld [vmem:[%s3] sm:$0xff]
        %v1341 = vld [vmem:[%s3 + $0x8] sm:$0xff]
        %v1342 = vld [vmem:[%s3 + $0x10] sm:$0xff]
        %v1343 = vld [vmem:[%s3 + $0x18] sm:$0xff]
        %v1344 = vld [vmem:[%s3 + $0x20] sm:$0xff]
        %v1345 = vld [vmem:[%s3 + $0x28] sm:$0xff]
        %v1346 = vld [vmem:[%s3 + $0x30] sm:$0xff]
        %v1347 = vld [vmem:[%s3 + $0x38] sm:$0xff]
        %v1348 = vld [vmem:[%s3 + $0x40] sm:$0xff]
        %v1349 = vld [vmem:[%s3 + $0x48] sm:$0xff]
        %v1350 = vld [vmem:[%s3 + $0x50] sm:$0xff]
        %v1351 = vld [vmem:[%s3 + $0x58] sm:$0xff]
        %v1352 = vld [vmem:[%s3 + $0x60] sm:$0xff]
        %v1353 = vld [vmem:[%s3 + $0x68] sm:$0xff]
        %v1354 = vld [vmem:[%s3 + $0x70] sm:$0xff]
        %v1355 = vld [vmem:[%s3 + $0x78] sm:$0xff]
        %v1356 = vld [vmem:[%s3 + $0x80] sm:$0xff]
        %v1357 = vld [vmem:[%s3 + $0x88] sm:$0xff]
        %v1358 = vld [vmem:[%s3 + $0x90] sm:$0x77]
        %v1359 = vpack.c.bf16 %v1268, %v1264
        %v1360 = vpack.c.bf16 %v1269, %v1265
        %v1361 = vpack.c.bf16 %v1270, %v1266
        %v1362 = vpack.c.bf16 %v1271, %v1267
        %v1363 = vpack.c.bf16 %v1276, %v1272
        %v1364 = vpack.c.bf16 %v1277, %v1273
        %v1365 = vpack.c.bf16 %v1278, %v1274
        %v1366 = vpack.c.bf16 %v1279, %v1275
        %v1367 = vpack.c.bf16 %v1284, %v1280
        %v1368 = vpack.c.bf16 %v1285, %v1281
        %v1369 = vpack.c.bf16 %v1286, %v1282
        %v1370 = vpack.c.bf16 %v1287, %v1283
        %v1371 = vpack.c.bf16 %v1292, %v1288
        %v1372 = vpack.c.bf16 %v1293, %v1289
        %v1373 = vpack.c.bf16 %v1294, %v1290
        %v1374 = vpack.c.bf16 %v1295, %v1291
        %v1375 = vpack.c.bf16 %v1300, %v1296
        %v1376 = vpack.c.bf16 %v1301, %v1297
        %v1377 = vpack.c.bf16 %v1302, %v1298
        %v1378 = vpack.c.bf16 %v1303, %v1299
        %v1379 = vpack.c.bf16 %v1308, %v1304
        %v1380 = vpack.c.bf16 %v1309, %v1305
        %v1381 = vpack.c.bf16 %v1310, %v1306
        %v1382 = vpack.c.bf16 %v1311, %v1307
        %v1383 = vpack.c.bf16 %v1316, %v1312
        %v1384 = vpack.c.bf16 %v1317, %v1313
        %v1385 = vpack.c.bf16 %v1318, %v1314
        %v1386 = vpack.c.bf16 %v1319, %v1315
        %v1387 = vpack.c.bf16 %v1324, %v1320
        %v1388 = vpack.c.bf16 %v1325, %v1321
        %v1389 = vpack.c.bf16 %v1326, %v1322
        %v1390 = vpack.c.bf16 %v1327, %v1323
        %v1391 = vpack.c.bf16 %v1332, %v1328
        %v1392 = vpack.c.bf16 %v1333, %v1329
        %v1393 = vpack.c.bf16 %v1334, %v1330
        %v1394 = vpack.c.bf16 %v1335, %v1331
        %v1395 = vpack.c.bf16 %v1336, %v1336
        %v1396 = vpack.c.bf16 %v1337, %v1337
        %v1397 = vpack.c.bf16 %v1338, %v1338
        %v1398 = vpack.c.bf16 %v1339, %v1339
        %v1399 = vld [vmem:[%s6 + $0xb8] sm:$0xff]
        %v1400 = vld [vmem:[%s6 + $0xc0] sm:$0xff]
        %v1401 = vld [vmem:[%s6 + $0xc8] sm:$0xff]
        %v1402 = vld [vmem:[%s6 + $0xd0] sm:$0xff]
        %v1403 = vld [vmem:[%s6 + $0xd8] sm:$0xff]
        %v1404 = vld [vmem:[%s6 + $0xe0] sm:$0xff]
        %v1405 = vld [vmem:[%s6 + $0xe8] sm:$0xff]
        %v1406 = vld [vmem:[%s6 + $0xf0] sm:$0xff]
        %v1407 = vld [vmem:[%s6 + $0xf8] sm:$0xff]
        %v1408 = vld [vmem:[%s6 + $0x100] sm:$0xff]
        %v1409 = vld [vmem:[%s6 + $0x108] sm:$0xff]
        %v1410 = vld [vmem:[%s6 + $0x110] sm:$0xff]
        %v1411 = vld [vmem:[%s6 + $0x118] sm:$0xff]
        %v1412 = vld [vmem:[%s6 + $0x120] sm:$0xff]
        %v1413 = vld [vmem:[%s6 + $0x128] sm:$0xff]
        %v1414 = vld [vmem:[%s6 + $0x130] sm:$0xff]
        %v1415 = vld [vmem:[%s6 + $0x138] sm:$0xff]
        %v1416 = vld [vmem:[%s6 + $0x140] sm:$0xff]
        %v1417 = vld [vmem:[%s6 + $0x148] sm:$0x3f]
        %1419 = vset.pattern.permute.xlu0 0
        %1420 = vperm.xlu0 %1419, %v1399
        %v1421 = vpop.permute.xlu0 %1420
        %1424 = vset.pattern.permute.xlu0 0
        %1425 = vperm.xlu0 %1424, %v1400
        %v1426 = vpop.permute.xlu0 %1425
        %1429 = vset.pattern.permute.xlu0 0
        %1430 = vperm.xlu0 %1429, %v1401
        %v1431 = vpop.permute.xlu0 %1430
        %1434 = vset.pattern.permute.xlu0 0
        %1435 = vperm.xlu0 %1434, %v1402
        %v1436 = vpop.permute.xlu0 %1435
        %1439 = vset.pattern.permute.xlu0 0
        %1440 = vperm.xlu0 %1439, %v1403
        %v1441 = vpop.permute.xlu0 %1440
        %1444 = vset.pattern.permute.xlu0 0
        %1445 = vperm.xlu0 %1444, %v1404
        %v1446 = vpop.permute.xlu0 %1445
        %1449 = vset.pattern.permute.xlu0 0
        %1450 = vperm.xlu0 %1449, %v1405
        %v1451 = vpop.permute.xlu0 %1450
        %1454 = vset.pattern.permute.xlu0 0
        %1455 = vperm.xlu0 %1454, %v1406
        %v1456 = vpop.permute.xlu0 %1455
        %1459 = vset.pattern.permute.xlu0 0
        %1460 = vperm.xlu0 %1459, %v1407
        %v1461 = vpop.permute.xlu0 %1460
        %1464 = vset.pattern.permute.xlu0 0
        %1465 = vperm.xlu0 %1464, %v1408
        %v1466 = vpop.permute.xlu0 %1465
        %1469 = vset.pattern.permute.xlu0 0
        %1470 = vperm.xlu0 %1469, %v1409
        %v1471 = vpop.permute.xlu0 %1470
        %1474 = vset.pattern.permute.xlu0 0
        %1475 = vperm.xlu0 %1474, %v1410
        %v1476 = vpop.permute.xlu0 %1475
        %1479 = vset.pattern.permute.xlu0 0
        %1480 = vperm.xlu0 %1479, %v1411
        %v1481 = vpop.permute.xlu0 %1480
        %1484 = vset.pattern.permute.xlu0 0
        %1485 = vperm.xlu0 %1484, %v1412
        %v1486 = vpop.permute.xlu0 %1485
        %1489 = vset.pattern.permute.xlu0 0
        %1490 = vperm.xlu0 %1489, %v1413
        %v1491 = vpop.permute.xlu0 %1490
        %1494 = vset.pattern.permute.xlu0 0
        %1495 = vperm.xlu0 %1494, %v1414
        %v1496 = vpop.permute.xlu0 %1495
        %1499 = vset.pattern.permute.xlu0 0
        %1500 = vperm.xlu0 %1499, %v1415
        %v1501 = vpop.permute.xlu0 %1500
        %1504 = vset.pattern.permute.xlu0 0
        %1505 = vperm.xlu0 %1504, %v1416
        %v1506 = vpop.permute.xlu0 %1505
        %1509 = vset.pattern.permute.xlu0 0
        %1510 = vperm.xlu0 %1509, %v1417
        %v1511 = vpop.permute.xlu0 %1510
        %v1532 = vunpack.c.l.b16 %v1340
        %v1533 = vunpack.c.h.b16 %v1340
        %v1534 = vunpack.c.l.b16 %v1341
        %v1535 = vunpack.c.h.b16 %v1341
        %v1536 = vunpack.c.l.b16 %v1342
        %v1537 = vunpack.c.h.b16 %v1342
        %v1538 = vunpack.c.l.b16 %v1343
        %v1539 = vunpack.c.h.b16 %v1343
        %v1540 = vunpack.c.l.b16 %v1344
        %v1541 = vunpack.c.h.b16 %v1344
        %v1542 = vunpack.c.l.b16 %v1345
        %v1543 = vunpack.c.h.b16 %v1345
        %v1544 = vunpack.c.l.b16 %v1346
        %v1545 = vunpack.c.h.b16 %v1346
        %v1546 = vunpack.c.l.b16 %v1347
        %v1547 = vunpack.c.h.b16 %v1347
        %v1548 = vunpack.c.l.b16 %v1348
        %v1549 = vunpack.c.h.b16 %v1348
        %v1550 = vunpack.c.l.b16 %v1349
        %v1551 = vunpack.c.h.b16 %v1349
        %v1552 = vunpack.c.l.b16 %v1350
        %v1553 = vunpack.c.h.b16 %v1350
        %v1554 = vunpack.c.l.b16 %v1351
        %v1555 = vunpack.c.h.b16 %v1351
        %v1556 = vunpack.c.l.b16 %v1352
        %v1557 = vunpack.c.h.b16 %v1352
        %v1558 = vunpack.c.l.b16 %v1353
        %v1559 = vunpack.c.h.b16 %v1353
        %v1560 = vunpack.c.l.b16 %v1354
        %v1561 = vunpack.c.h.b16 %v1354
        %v1562 = vunpack.c.l.b16 %v1355
        %v1563 = vunpack.c.h.b16 %v1355
        %v1564 = vunpack.c.l.b16 %v1356
        %v1565 = vunpack.c.h.b16 %v1356
        %v1566 = vunpack.c.l.b16 %v1357
        %v1567 = vunpack.c.h.b16 %v1357
        %v1568 = vunpack.c.l.b16 %v1358
        %v1569 = vunpack.c.h.b16 %v1358
        %v1570 = vpack.c.b16 %v1534, %v1532
        %v1571 = vpack.c.b16 %v1535, %v1533
        %v1572 = vpack.c.b16 %v1538, %v1536
        %v1573 = vpack.c.b16 %v1539, %v1537
        %v1574 = vpack.c.b16 %v1542, %v1540
        %v1575 = vpack.c.b16 %v1543, %v1541
        %v1576 = vpack.c.b16 %v1546, %v1544
        %v1577 = vpack.c.b16 %v1547, %v1545
        %v1578 = vpack.c.b16 %v1550, %v1548
        %v1579 = vpack.c.b16 %v1551, %v1549
        %v1580 = vpack.c.b16 %v1554, %v1552
        %v1581 = vpack.c.b16 %v1555, %v1553
        %v1582 = vpack.c.b16 %v1558, %v1556
        %v1583 = vpack.c.b16 %v1559, %v1557
        %v1584 = vpack.c.b16 %v1562, %v1560
        %v1585 = vpack.c.b16 %v1563, %v1561
        %v1586 = vpack.c.b16 %v1566, %v1564
        %v1587 = vpack.c.b16 %v1567, %v1565
        %v1588 = vpack.c.b16 %v1568, %v1568
        %v1589 = vpack.c.b16 %v1569, %v1569
        %vm1600 = vcmask 179200
        %v1602 = vsel %vm1600, %v1571, 0
        %v1605 = vsel %vm1600, %v1573, 0
        %v1608 = vsel %vm1600, %v1575, 0
        %v1611 = vsel %vm1600, %v1577, 0
        %v1614 = vsel %vm1600, %v1579, 0
        %v1617 = vsel %vm1600, %v1581, 0
        %v1620 = vsel %vm1600, %v1583, 0
        %v1623 = vsel %vm1600, %v1585, 0
        %v1626 = vsel %vm1600, %v1587, 0
        %v1629 = vsel %vm1600, %v1589, 0
        %vm1631 = vcmask 1042432
        %v1633 = vsel %vm1631, %v1395, 0
        %v1636 = vsel %vm1631, %v1396, 0
        %v1639 = vsel %vm1631, %v1397, 0
        %v1642 = vsel %vm1631, %v1398, 0
        %1644 = vmatprep.subr.bf16.mxu0 %v1360
        %1645 = vmatpush1.bf16.msra.mxu0 %v1359
        %1646 = vmatprep.subr.bf16.mxu0 %v1364
        %1647 = vmatpush1.bf16.msra.mxu0 %v1363
        %1648 = vmatprep.subr.bf16.mxu0 %v1368
        %1649 = vmatpush1.bf16.msra.mxu0 %v1367
        %1650 = vmatprep.subr.bf16.mxu0 %v1372
        %1651 = vmatpush1.bf16.msra.mxu0 %v1371
        %1652 = vmatprep.subr.bf16.mxu0 %v1376
        %1653 = vmatpush1.bf16.msra.mxu0 %v1375
        %1654 = vmatprep.subr.bf16.mxu0 %v1380
        %1655 = vmatpush1.bf16.msra.mxu0 %v1379
        %1656 = vmatprep.subr.bf16.mxu0 %v1384
        %1657 = vmatpush1.bf16.msra.mxu0 %v1383
        %1658 = vmatprep.subr.bf16.mxu0 %v1388
        %1659 = vmatpush1.bf16.msra.mxu0 %v1387
        %1660 = vmatprep.subr.bf16.mxu0 %v1392
        %1661 = vmatpush1.bf16.msra.mxu0 %v1391
        %1662 = vmatprep.subr.bf16.mxu0 %v1636
        %1663 = vmatpush1.bf16.msra.mxu0 %v1633
        %1664 = vmatprep.subr.bf16.mxu0 0
        %1665 = vmatpush1.bf16.msra.mxu0 0
        %1666 = vmatprep.subr.bf16.mxu0 0
        %1667 = vmatpush1.bf16.msra.mxu0 0
        %1668 = vmatprep.subr.bf16.mxu0 0
        %1669 = vmatpush1.bf16.msra.mxu0 0
        %1670 = vmatprep.subr.bf16.mxu0 0
        %1671 = vmatpush1.bf16.msra.mxu0 0
        %1672 = vmatprep.subr.bf16.mxu0 0
        %1673 = vmatpush1.bf16.msra.mxu0 0
        %1674 = vmatprep.subr.bf16.mxu0 0
        %1675 = vmatpush1.bf16.msra.mxu0 0
        %1676 = vmatprep.mubr.bf16.mxu0 %v1602
        %1677 = vmatmul.mubr.bf16.gmra.mrb[0].mxu0 %v1570
        %v1678 = vpop.f32.mrb[0].mxu0
        %v1679 = vadd.f32 %v1421, %v1678
        %v1680 = vpop.f32.mrb[0].mxu0
        %v1681 = vadd.f32 %v1421, %v1680
        %v1682 = vpop.f32.mrb[0].mxu0
        %v1683 = vadd.f32 %v1426, %v1682
        %v1684 = vpop.f32.mrb[0].mxu0
        %v1685 = vadd.f32 %v1426, %v1684
        %1686 = vmatprep.mubr.bf16.mxu0 %v1605
        %1687 = vmatmul.mubr.bf16.gmra.mrb[0].mxu0 %v1572
        %v1688 = vpop.f32.mrb[0].mxu0
        %v1689 = vadd.f32 %v1431, %v1688
        %v1690 = vpop.f32.mrb[0].mxu0
        %v1691 = vadd.f32 %v1431, %v1690
        %v1692 = vpop.f32.mrb[0].mxu0
        %v1693 = vadd.f32 %v1436, %v1692
        %v1694 = vpop.f32.mrb[0].mxu0
        %v1695 = vadd.f32 %v1436, %v1694
        %1696 = vmatprep.mubr.bf16.mxu0 %v1608
        %1697 = vmatmul.mubr.bf16.gmra.mrb[0].mxu0 %v1574
        %v1698 = vpop.f32.mrb[0].mxu0
        %v1699 = vadd.f32 %v1441, %v1698
        %v1700 = vpop.f32.mrb[0].mxu0
        %v1701 = vadd.f32 %v1441, %v1700
        %v1702 = vpop.f32.mrb[0].mxu0
        %v1703 = vadd.f32 %v1446, %v1702
        %v1704 = vpop.f32.mrb[0].mxu0
        %v1705 = vadd.f32 %v1446, %v1704
        %1706 = vmatprep.mubr.bf16.mxu0 %v1611
        %1707 = vmatmul.mubr.bf16.gmra.mrb[0].mxu0 %v1576
        %v1708 = vpop.f32.mrb[0].mxu0
        %v1709 = vadd.f32 %v1451, %v1708
        %v1710 = vpop.f32.mrb[0].mxu0
        %v1711 = vadd.f32 %v1451, %v1710
        %v1712 = vpop.f32.mrb[0].mxu0
        %v1713 = vadd.f32 %v1456, %v1712
        %v1714 = vpop.f32.mrb[0].mxu0
        %v1715 = vadd.f32 %v1456, %v1714
        %1716 = vmatprep.mubr.bf16.mxu0 %v1614
        %1717 = vmatmul.mubr.bf16.gmra.mrb[0].mxu0 %v1578
        %v1718 = vpop.f32.mrb[0].mxu0
        %v1719 = vadd.f32 %v1461, %v1718
        %v1720 = vpop.f32.mrb[0].mxu0
        %v1721 = vadd.f32 %v1461, %v1720
        %v1722 = vpop.f32.mrb[0].mxu0
        %v1723 = vadd.f32 %v1466, %v1722
        %v1724 = vpop.f32.mrb[0].mxu0
        %v1725 = vadd.f32 %v1466, %v1724
        %1726 = vmatprep.mubr.bf16.mxu0 %v1617
        %1727 = vmatmul.mubr.bf16.gmra.mrb[0].mxu0 %v1580
        %v1728 = vpop.f32.mrb[0].mxu0
        %v1729 = vadd.f32 %v1471, %v1728
        %v1730 = vpop.f32.mrb[0].mxu0
        %v1731 = vadd.f32 %v1471, %v1730
        %v1732 = vpop.f32.mrb[0].mxu0
        %v1733 = vadd.f32 %v1476, %v1732
        %v1734 = vpop.f32.mrb[0].mxu0
        %v1735 = vadd.f32 %v1476, %v1734
        %1736 = vmatprep.mubr.bf16.mxu0 %v1620
        %1737 = vmatmul.mubr.bf16.gmra.mrb[0].mxu0 %v1582
        %v1738 = vpop.f32.mrb[0].mxu0
        %v1739 = vadd.f32 %v1481, %v1738
        %v1740 = vpop.f32.mrb[0].mxu0
        %v1741 = vadd.f32 %v1481, %v1740
        %v1742 = vpop.f32.mrb[0].mxu0
        %v1743 = vadd.f32 %v1486, %v1742
        %v1744 = vpop.f32.mrb[0].mxu0
        %v1745 = vadd.f32 %v1486, %v1744
        %1746 = vmatprep.mubr.bf16.mxu0 %v1623
        %1747 = vmatmul.mubr.bf16.gmra.mrb[0].mxu0 %v1584
        %v1748 = vpop.f32.mrb[0].mxu0
        %v1749 = vadd.f32 %v1491, %v1748
        %v1750 = vpop.f32.mrb[0].mxu0
        %v1751 = vadd.f32 %v1491, %v1750
        %v1752 = vpop.f32.mrb[0].mxu0
        %v1753 = vadd.f32 %v1496, %v1752
        %v1754 = vpop.f32.mrb[0].mxu0
        %v1755 = vadd.f32 %v1496, %v1754
        %1756 = vmatprep.mubr.bf16.mxu0 %v1626
        %1757 = vmatmul.mubr.bf16.gmra.mrb[0].mxu0 %v1586
        %v1758 = vpop.f32.mrb[0].mxu0
        %v1759 = vadd.f32 %v1501, %v1758
        %v1760 = vpop.f32.mrb[0].mxu0
        %v1761 = vadd.f32 %v1501, %v1760
        %v1762 = vpop.f32.mrb[0].mxu0
        %v1763 = vadd.f32 %v1506, %v1762
        %v1764 = vpop.f32.mrb[0].mxu0
        %v1765 = vadd.f32 %v1506, %v1764
        %1766 = vmatprep.mubr.bf16.mxu0 %v1629
        %1767 = vmatmul.mubr.bf16.gmra.mrb[0].mxu0 %v1588
        %v1768 = vpop.f32.mrb[0].mxu0
        %v1769 = vadd.f32 %v1511, %v1768
        %v1770 = vpop.f32.mrb[0].mxu0
        %v1771 = vadd.f32 %v1511, %v1770
        %v1772 = vpop.f32.mrb[0].mxu0
        %v1773 = vpop.f32.mrb[0].mxu0
        %1774 = vdwg.mxu0
        %1775 = vmatprep.subr.bf16.mxu0 %v1362
        %1776 = vmatpush1.bf16.msra.mxu0 %v1361
        %1777 = vmatprep.subr.bf16.mxu0 %v1366
        %1778 = vmatpush1.bf16.msra.mxu0 %v1365
        %1779 = vmatprep.subr.bf16.mxu0 %v1370
        %1780 = vmatpush1.bf16.msra.mxu0 %v1369
        %1781 = vmatprep.subr.bf16.mxu0 %v1374
        %1782 = vmatpush1.bf16.msra.mxu0 %v1373
        %1783 = vmatprep.subr.bf16.mxu0 %v1378
        %1784 = vmatpush1.bf16.msra.mxu0 %v1377
        %1785 = vmatprep.subr.bf16.mxu0 %v1382
        %1786 = vmatpush1.bf16.msra.mxu0 %v1381
        %1787 = vmatprep.subr.bf16.mxu0 %v1386
        %1788 = vmatpush1.bf16.msra.mxu0 %v1385
        %1789 = vmatprep.subr.bf16.mxu0 %v1390
        %1790 = vmatpush1.bf16.msra.mxu0 %v1389
        %1791 = vmatprep.subr.bf16.mxu0 %v1394
        %1792 = vmatpush1.bf16.msra.mxu0 %v1393
        %1793 = vmatprep.subr.bf16.mxu0 %v1642
        %1794 = vmatpush1.bf16.msra.mxu0 %v1639
        %1795 = vmatprep.subr.bf16.mxu0 0
        %1796 = vmatpush1.bf16.msra.mxu0 0
        %1797 = vmatprep.subr.bf16.mxu0 0
        %1798 = vmatpush1.bf16.msra.mxu0 0
        %1799 = vmatprep.subr.bf16.mxu0 0
        %1800 = vmatpush1.bf16.msra.mxu0 0
        %1801 = vmatprep.subr.bf16.mxu0 0
        %1802 = vmatpush1.bf16.msra.mxu0 0
        %1803 = vmatprep.subr.bf16.mxu0 0
        %1804 = vmatpush1.bf16.msra.mxu0 0
        %1805 = vmatprep.subr.bf16.mxu0 0
        %1806 = vmatpush1.bf16.msra.mxu0 0
        %1807 = vmatprep.mubr.bf16.mxu0 %v1602
        %1808 = vmatmul.mubr.bf16.gmra.mrb[0].mxu0 %v1570
        %v1809 = vpop.f32.mrb[0].mxu0
        %v1810 = vadd.f32 %v1421, %v1809
        %v1811 = vpop.f32.mrb[0].mxu0
        %v1812 = vadd.f32 %v1421, %v1811
        %v1813 = vpop.f32.mrb[0].mxu0
        %v1814 = vadd.f32 %v1426, %v1813
        %v1815 = vpop.f32.mrb[0].mxu0
        %v1816 = vadd.f32 %v1426, %v1815
        %1817 = vmatprep.mubr.bf16.mxu0 %v1605
        %1818 = vmatmul.mubr.bf16.gmra.mrb[0].mxu0 %v1572
        %v1819 = vpop.f32.mrb[0].mxu0
        %v1820 = vadd.f32 %v1431, %v1819
        %v1821 = vpop.f32.mrb[0].mxu0
        %v1822 = vadd.f32 %v1431, %v1821
        %v1823 = vpop.f32.mrb[0].mxu0
        %v1824 = vadd.f32 %v1436, %v1823
        %v1825 = vpop.f32.mrb[0].mxu0
        %v1826 = vadd.f32 %v1436, %v1825
        %1827 = vmatprep.mubr.bf16.mxu0 %v1608
        %1828 = vmatmul.mubr.bf16.gmra.mrb[0].mxu0 %v1574
        %v1829 = vpop.f32.mrb[0].mxu0
        %v1830 = vadd.f32 %v1441, %v1829
        %v1831 = vpop.f32.mrb[0].mxu0
        %v1832 = vadd.f32 %v1441, %v1831
        %v1833 = vpop.f32.mrb[0].mxu0
        %v1834 = vadd.f32 %v1446, %v1833
        %v1835 = vpop.f32.mrb[0].mxu0
        %v1836 = vadd.f32 %v1446, %v1835
        %1837 = vmatprep.mubr.bf16.mxu0 %v1611
        %1838 = vmatmul.mubr.bf16.gmra.mrb[0].mxu0 %v1576
        %v1839 = vpop.f32.mrb[0].mxu0
        %v1840 = vadd.f32 %v1451, %v1839
        %v1841 = vpop.f32.mrb[0].mxu0
        %v1842 = vadd.f32 %v1451, %v1841
        %v1843 = vpop.f32.mrb[0].mxu0
        %v1844 = vadd.f32 %v1456, %v1843
        %v1845 = vpop.f32.mrb[0].mxu0
        %v1846 = vadd.f32 %v1456, %v1845
        %1847 = vmatprep.mubr.bf16.mxu0 %v1614
        %1848 = vmatmul.mubr.bf16.gmra.mrb[0].mxu0 %v1578
        %v1849 = vpop.f32.mrb[0].mxu0
        %v1850 = vadd.f32 %v1461, %v1849
        %v1851 = vpop.f32.mrb[0].mxu0
        %v1852 = vadd.f32 %v1461, %v1851
        %v1853 = vpop.f32.mrb[0].mxu0
        %v1854 = vadd.f32 %v1466, %v1853
        %v1855 = vpop.f32.mrb[0].mxu0
        %v1856 = vadd.f32 %v1466, %v1855
        %1857 = vmatprep.mubr.bf16.mxu0 %v1617
        %1858 = vmatmul.mubr.bf16.gmra.mrb[0].mxu0 %v1580
        %v1859 = vpop.f32.mrb[0].mxu0
        %v1860 = vadd.f32 %v1471, %v1859
        %v1861 = vpop.f32.mrb[0].mxu0
        %v1862 = vadd.f32 %v1471, %v1861
        %v1863 = vpop.f32.mrb[0].mxu0
        %v1864 = vadd.f32 %v1476, %v1863
        %v1865 = vpop.f32.mrb[0].mxu0
        %v1866 = vadd.f32 %v1476, %v1865
        %1867 = vmatprep.mubr.bf16.mxu0 %v1620
        %1868 = vmatmul.mubr.bf16.gmra.mrb[0].mxu0 %v1582
        %v1869 = vpop.f32.mrb[0].mxu0
        %v1870 = vadd.f32 %v1481, %v1869
        %v1871 = vpop.f32.mrb[0].mxu0
        %v1872 = vadd.f32 %v1481, %v1871
        %v1873 = vpop.f32.mrb[0].mxu0
        %v1874 = vadd.f32 %v1486, %v1873
        %v1875 = vpop.f32.mrb[0].mxu0
        %v1876 = vadd.f32 %v1486, %v1875
        %1877 = vmatprep.mubr.bf16.mxu0 %v1623
        %1878 = vmatmul.mubr.bf16.gmra.mrb[0].mxu0 %v1584
        %v1879 = vpop.f32.mrb[0].mxu0
        %v1880 = vadd.f32 %v1491, %v1879
        %v1881 = vpop.f32.mrb[0].mxu0
        %v1882 = vadd.f32 %v1491, %v1881
        %v1883 = vpop.f32.mrb[0].mxu0
        %v1884 = vadd.f32 %v1496, %v1883
        %v1885 = vpop.f32.mrb[0].mxu0
        %v1886 = vadd.f32 %v1496, %v1885
        %1887 = vmatprep.mubr.bf16.mxu0 %v1626
        %1888 = vmatmul.mubr.bf16.gmra.mrb[0].mxu0 %v1586
        %v1889 = vpop.f32.mrb[0].mxu0
        %v1890 = vadd.f32 %v1501, %v1889
        %v1891 = vpop.f32.mrb[0].mxu0
        %v1892 = vadd.f32 %v1501, %v1891
        %v1893 = vpop.f32.mrb[0].mxu0
        %v1894 = vadd.f32 %v1506, %v1893
        %v1895 = vpop.f32.mrb[0].mxu0
        %v1896 = vadd.f32 %v1506, %v1895
        %1897 = vmatprep.mubr.bf16.mxu0 %v1629
        %1898 = vmatmul.mubr.bf16.gmra.mrb[0].mxu0 %v1588
        %v1899 = vpop.f32.mrb[0].mxu0
        %v1900 = vadd.f32 %v1511, %v1899
        %v1901 = vpop.f32.mrb[0].mxu0
        %v1902 = vadd.f32 %v1511, %v1901
        %v1903 = vpop.f32.mrb[0].mxu0
        %v1904 = vpop.f32.mrb[0].mxu0
        %1905 = vdwg.mxu0
        %vm1906 = vcmp.ge.f32.partialorder %v1679, 0.0
        %vm1907 = vcmp.ge.f32.partialorder %v1681, 0.0
        %vm1908 = vcmp.ge.f32.partialorder %v1810, 0.0
        %vm1909 = vcmp.ge.f32.partialorder %v1812, 0.0
        %vm1910 = vcmp.ge.f32.partialorder %v1683, 0.0
        %vm1911 = vcmp.ge.f32.partialorder %v1685, 0.0
        %vm1912 = vcmp.ge.f32.partialorder %v1814, 0.0
        %vm1913 = vcmp.ge.f32.partialorder %v1816, 0.0
        %vm1914 = vcmp.ge.f32.partialorder %v1689, 0.0
        %vm1915 = vcmp.ge.f32.partialorder %v1691, 0.0
        %vm1916 = vcmp.ge.f32.partialorder %v1820, 0.0
        %vm1917 = vcmp.ge.f32.partialorder %v1822, 0.0
        %vm1918 = vcmp.ge.f32.partialorder %v1693, 0.0
        %vm1919 = vcmp.ge.f32.partialorder %v1695, 0.0
        %vm1920 = vcmp.ge.f32.partialorder %v1824, 0.0
        %vm1921 = vcmp.ge.f32.partialorder %v1826, 0.0
        %vm1922 = vcmp.ge.f32.partialorder %v1699, 0.0
        %vm1923 = vcmp.ge.f32.partialorder %v1701, 0.0
        %vm1924 = vcmp.ge.f32.partialorder %v1830, 0.0
        %vm1925 = vcmp.ge.f32.partialorder %v1832, 0.0
        %vm1926 = vcmp.ge.f32.partialorder %v1703, 0.0
        %vm1927 = vcmp.ge.f32.partialorder %v1705, 0.0
        %vm1928 = vcmp.ge.f32.partialorder %v1834, 0.0
        %vm1929 = vcmp.ge.f32.partialorder %v1836, 0.0
        %vm1930 = vcmp.ge.f32.partialorder %v1709, 0.0
        %vm1931 = vcmp.ge.f32.partialorder %v1711, 0.0
        %vm1932 = vcmp.ge.f32.partialorder %v1840, 0.0
        %vm1933 = vcmp.ge.f32.partialorder %v1842, 0.0
        %vm1934 = vcmp.ge.f32.partialorder %v1713, 0.0
        %vm1935 = vcmp.ge.f32.partialorder %v1715, 0.0
        %vm1936 = vcmp.ge.f32.partialorder %v1844, 0.0
        %vm1937 = vcmp.ge.f32.partialorder %v1846, 0.0
        %vm1938 = vcmp.ge.f32.partialorder %v1719, 0.0
        %vm1939 = vcmp.ge.f32.partialorder %v1721, 0.0
        %vm1940 = vcmp.ge.f32.partialorder %v1850, 0.0
        %vm1941 = vcmp.ge.f32.partialorder %v1852, 0.0
        %vm1942 = vcmp.ge.f32.partialorder %v1723, 0.0
        %vm1943 = vcmp.ge.f32.partialorder %v1725, 0.0
        %vm1944 = vcmp.ge.f32.partialorder %v1854, 0.0
        %vm1945 = vcmp.ge.f32.partialorder %v1856, 0.0
        %vm1946 = vcmp.ge.f32.partialorder %v1729, 0.0
        %vm1947 = vcmp.ge.f32.partialorder %v1731, 0.0
        %vm1948 = vcmp.ge.f32.partialorder %v1860, 0.0
        %vm1949 = vcmp.ge.f32.partialorder %v1862, 0.0
        %vm1950 = vcmp.ge.f32.partialorder %v1733, 0.0
        %vm1951 = vcmp.ge.f32.partialorder %v1735, 0.0
        %vm1952 = vcmp.ge.f32.partialorder %v1864, 0.0
        %vm1953 = vcmp.ge.f32.partialorder %v1866, 0.0
        %vm1954 = vcmp.ge.f32.partialorder %v1739, 0.0
        %vm1955 = vcmp.ge.f32.partialorder %v1741, 0.0
        %vm1956 = vcmp.ge.f32.partialorder %v1870, 0.0
        %vm1957 = vcmp.ge.f32.partialorder %v1872, 0.0
        %vm1958 = vcmp.ge.f32.partialorder %v1743, 0.0
        %vm1959 = vcmp.ge.f32.partialorder %v1745, 0.0
        %vm1960 = vcmp.ge.f32.partialorder %v1874, 0.0
        %vm1961 = vcmp.ge.f32.partialorder %v1876, 0.0
        %vm1962 = vcmp.ge.f32.partialorder %v1749, 0.0
        %vm1963 = vcmp.ge.f32.partialorder %v1751, 0.0
        %vm1964 = vcmp.ge.f32.partialorder %v1880, 0.0
        %vm1965 = vcmp.ge.f32.partialorder %v1882, 0.0
        %vm1966 = vcmp.ge.f32.partialorder %v1753, 0.0
        %vm1967 = vcmp.ge.f32.partialorder %v1755, 0.0
        %vm1968 = vcmp.ge.f32.partialorder %v1884, 0.0
        %vm1969 = vcmp.ge.f32.partialorder %v1886, 0.0
        %vm1970 = vcmp.ge.f32.partialorder %v1759, 0.0
        %vm1971 = vcmp.ge.f32.partialorder %v1761, 0.0
        %vm1972 = vcmp.ge.f32.partialorder %v1890, 0.0
        %vm1973 = vcmp.ge.f32.partialorder %v1892, 0.0
        %vm1974 = vcmp.ge.f32.partialorder %v1763, 0.0
        %vm1975 = vcmp.ge.f32.partialorder %v1765, 0.0
        %vm1976 = vcmp.ge.f32.partialorder %v1894, 0.0
        %vm1977 = vcmp.ge.f32.partialorder %v1896, 0.0
        %vm1978 = vcmp.ge.f32.partialorder %v1769, 0.0
        %vm1979 = vcmp.ge.f32.partialorder %v1771, 0.0
        %vm1980 = vcmp.ge.f32.partialorder %v1900, 0.0
        %vm1981 = vcmp.ge.f32.partialorder %v1902, 0.0
        %v1982 = vmul.f32 %v1679, 0.01
        %v1983 = vmul.f32 %v1681, 0.01
        %v1984 = vmul.f32 %v1810, 0.01
        %v1985 = vmul.f32 %v1812, 0.01
        %v1986 = vmul.f32 %v1683, 0.01
        %v1987 = vmul.f32 %v1685, 0.01
        %v1988 = vmul.f32 %v1814, 0.01
        %v1989 = vmul.f32 %v1816, 0.01
        %v1990 = vmul.f32 %v1689, 0.01
        %v1991 = vmul.f32 %v1691, 0.01
        %v1992 = vmul.f32 %v1820, 0.01
        %v1993 = vmul.f32 %v1822, 0.01
        %v1994 = vmul.f32 %v1693, 0.01
        %v1995 = vmul.f32 %v1695, 0.01
        %v1996 = vmul.f32 %v1824, 0.01
        %v1997 = vmul.f32 %v1826, 0.01
        %v1998 = vmul.f32 %v1699, 0.01
        %v1999 = vmul.f32 %v1701, 0.01
        %v2000 = vmul.f32 %v1830, 0.01
        %v2001 = vmul.f32 %v1832, 0.01
        %v2002 = vmul.f32 %v1703, 0.01
        %v2003 = vmul.f32 %v1705, 0.01
        %v2004 = vmul.f32 %v1834, 0.01
        %v2005 = vmul.f32 %v1836, 0.01
        %v2006 = vmul.f32 %v1709, 0.01
        %v2007 = vmul.f32 %v1711, 0.01
        %v2008 = vmul.f32 %v1840, 0.01
        %v2009 = vmul.f32 %v1842, 0.01
        %v2010 = vmul.f32 %v1713, 0.01
        %v2011 = vmul.f32 %v1715, 0.01
        %v2012 = vmul.f32 %v1844, 0.01
        %v2013 = vmul.f32 %v1846, 0.01
        %v2014 = vmul.f32 %v1719, 0.01
        %v2015 = vmul.f32 %v1721, 0.01
        %v2016 = vmul.f32 %v1850, 0.01
        %v2017 = vmul.f32 %v1852, 0.01
        %v2018 = vmul.f32 %v1723, 0.01
        %v2019 = vmul.f32 %v1725, 0.01
        %v2020 = vmul.f32 %v1854, 0.01
        %v2021 = vmul.f32 %v1856, 0.01
        %v2022 = vmul.f32 %v1729, 0.01
        %v2023 = vmul.f32 %v1731, 0.01
        %v2024 = vmul.f32 %v1860, 0.01
        %v2025 = vmul.f32 %v1862, 0.01
        %v2026 = vmul.f32 %v1733, 0.01
        %v2027 = vmul.f32 %v1735, 0.01
        %v2028 = vmul.f32 %v1864, 0.01
        %v2029 = vmul.f32 %v1866, 0.01
        %v2030 = vmul.f32 %v1739, 0.01
        %v2031 = vmul.f32 %v1741, 0.01
        %v2032 = vmul.f32 %v1870, 0.01
        %v2033 = vmul.f32 %v1872, 0.01
        %v2034 = vmul.f32 %v1743, 0.01
        %v2035 = vmul.f32 %v1745, 0.01
        %v2036 = vmul.f32 %v1874, 0.01
        %v2037 = vmul.f32 %v1876, 0.01
        %v2038 = vmul.f32 %v1749, 0.01
        %v2039 = vmul.f32 %v1751, 0.01
        %v2040 = vmul.f32 %v1880, 0.01
        %v2041 = vmul.f32 %v1882, 0.01
        %v2042 = vmul.f32 %v1753, 0.01
        %v2043 = vmul.f32 %v1755, 0.01
        %v2044 = vmul.f32 %v1884, 0.01
        %v2045 = vmul.f32 %v1886, 0.01
        %v2046 = vmul.f32 %v1759, 0.01
        %v2047 = vmul.f32 %v1761, 0.01
        %v2048 = vmul.f32 %v1890, 0.01
        %v2049 = vmul.f32 %v1892, 0.01
        %v2050 = vmul.f32 %v1763, 0.01
        %v2051 = vmul.f32 %v1765, 0.01
        %v2052 = vmul.f32 %v1894, 0.01
        %v2053 = vmul.f32 %v1896, 0.01
        %v2054 = vmul.f32 %v1769, 0.01
        %v2055 = vmul.f32 %v1771, 0.01
        %v2056 = vmul.f32 %v1900, 0.01
        %v2057 = vmul.f32 %v1902, 0.01
        %v2058 = vsel %vm1906, %v1679, %v1982
        %v2059 = vsel %vm1907, %v1681, %v1983
        %v2060 = vsel %vm1908, %v1810, %v1984
        %v2061 = vsel %vm1909, %v1812, %v1985
        %v2062 = vsel %vm1910, %v1683, %v1986
        %v2063 = vsel %vm1911, %v1685, %v1987
        %v2064 = vsel %vm1912, %v1814, %v1988
        %v2065 = vsel %vm1913, %v1816, %v1989
        %v2066 = vsel %vm1914, %v1689, %v1990
        %v2067 = vsel %vm1915, %v1691, %v1991
        %v2068 = vsel %vm1916, %v1820, %v1992
        %v2069 = vsel %vm1917, %v1822, %v1993
        %v2070 = vsel %vm1918, %v1693, %v1994
        %v2071 = vsel %vm1919, %v1695, %v1995
        %v2072 = vsel %vm1920, %v1824, %v1996
        %v2073 = vsel %vm1921, %v1826, %v1997
        %v2074 = vsel %vm1922, %v1699, %v1998
        %v2075 = vsel %vm1923, %v1701, %v1999
        %v2076 = vsel %vm1924, %v1830, %v2000
        %v2077 = vsel %vm1925, %v1832, %v2001
        %v2078 = vsel %vm1926, %v1703, %v2002
        %v2079 = vsel %vm1927, %v1705, %v2003
        %v2080 = vsel %vm1928, %v1834, %v2004
        %v2081 = vsel %vm1929, %v1836, %v2005
        %v2082 = vsel %vm1930, %v1709, %v2006
        %v2083 = vsel %vm1931, %v1711, %v2007
        %v2084 = vsel %vm1932, %v1840, %v2008
        %v2085 = vsel %vm1933, %v1842, %v2009
        %v2086 = vsel %vm1934, %v1713, %v2010
        %v2087 = vsel %vm1935, %v1715, %v2011
        %v2088 = vsel %vm1936, %v1844, %v2012
        %v2089 = vsel %vm1937, %v1846, %v2013
        %v2090 = vsel %vm1938, %v1719, %v2014
        %v2091 = vsel %vm1939, %v1721, %v2015
        %v2092 = vsel %vm1940, %v1850, %v2016
        %v2093 = vsel %vm1941, %v1852, %v2017
        %v2094 = vsel %vm1942, %v1723, %v2018
        %v2095 = vsel %vm1943, %v1725, %v2019
        %v2096 = vsel %vm1944, %v1854, %v2020
        %v2097 = vsel %vm1945, %v1856, %v2021
        %v2098 = vsel %vm1946, %v1729, %v2022
        %v2099 = vsel %vm1947, %v1731, %v2023
        %v2100 = vsel %vm1948, %v1860, %v2024
        %v2101 = vsel %vm1949, %v1862, %v2025
        %v2102 = vsel %vm1950, %v1733, %v2026
        %v2103 = vsel %vm1951, %v1735, %v2027
        %v2104 = vsel %vm1952, %v1864, %v2028
        %v2105 = vsel %vm1953, %v1866, %v2029
        %v2106 = vsel %vm1954, %v1739, %v2030
        %v2107 = vsel %vm1955, %v1741, %v2031
        %v2108 = vsel %vm1956, %v1870, %v2032
        %v2109 = vsel %vm1957, %v1872, %v2033
        %v2110 = vsel %vm1958, %v1743, %v2034
        %v2111 = vsel %vm1959, %v1745, %v2035
        %v2112 = vsel %vm1960, %v1874, %v2036
        %v2113 = vsel %vm1961, %v1876, %v2037
        %v2114 = vsel %vm1962, %v1749, %v2038
        %v2115 = vsel %vm1963, %v1751, %v2039
        %v2116 = vsel %vm1964, %v1880, %v2040
        %v2117 = vsel %vm1965, %v1882, %v2041
        %v2118 = vsel %vm1966, %v1753, %v2042
        %v2119 = vsel %vm1967, %v1755, %v2043
        %v2120 = vsel %vm1968, %v1884, %v2044
        %v2121 = vsel %vm1969, %v1886, %v2045
        %v2122 = vsel %vm1970, %v1759, %v2046
        %v2123 = vsel %vm1971, %v1761, %v2047
        %v2124 = vsel %vm1972, %v1890, %v2048
        %v2125 = vsel %vm1973, %v1892, %v2049
        %v2126 = vsel %vm1974, %v1763, %v2050
        %v2127 = vsel %vm1975, %v1765, %v2051
        %v2128 = vsel %vm1976, %v1894, %v2052
        %v2129 = vsel %vm1977, %v1896, %v2053
        %v2130 = vsel %vm1978, %v1769, %v2054
        %v2131 = vsel %vm1979, %v1771, %v2055
        %v2132 = vsel %vm1980, %v1900, %v2056
        %v2133 = vsel %vm1981, %v1902, %v2057
        %s2134 = scalar_lea.vmem %s3, 152
        %v2135 = vld [vmem:[%s2134] sm:$0xff]
        %v2136 = vld [vmem:[%s2134 + $0x8] sm:$0xff]
        %v2137 = vld [vmem:[%s2134 + $0x10] sm:$0xff]
        %v2138 = vld [vmem:[%s2134 + $0x18] sm:$0xff]
        %v2139 = vld [vmem:[%s2134 + $0x20] sm:$0xff]
        %v2140 = vld [vmem:[%s2134 + $0x28] sm:$0xff]
        %v2141 = vld [vmem:[%s2134 + $0x30] sm:$0xff]
        %v2142 = vld [vmem:[%s2134 + $0x38] sm:$0xff]
        %v2143 = vld [vmem:[%s2134 + $0x40] sm:$0xff]
        %v2144 = vld [vmem:[%s2134 + $0x48] sm:$0xff]
        %v2145 = vld [vmem:[%s2134 + $0x50] sm:$0xff]
        %v2146 = vld [vmem:[%s2134 + $0x58] sm:$0xff]
        %v2147 = vld [vmem:[%s2134 + $0x60] sm:$0xff]
        %v2148 = vld [vmem:[%s2134 + $0x68] sm:$0xff]
        %v2149 = vld [vmem:[%s2134 + $0x70] sm:$0xff]
        %v2150 = vld [vmem:[%s2134 + $0x78] sm:$0xff]
        %v2151 = vld [vmem:[%s2134 + $0x80] sm:$0xff]
        %v2152 = vld [vmem:[%s2134 + $0x88] sm:$0xff]
        %v2153 = vld [vmem:[%s2134 + $0x90] sm:$0x77]
        %v2154 = vpack.c.bf16 %v2062, %v2058
        %v2155 = vpack.c.bf16 %v2063, %v2059
        %v2156 = vpack.c.bf16 %v2064, %v2060
        %v2157 = vpack.c.bf16 %v2065, %v2061
        %v2158 = vpack.c.bf16 %v2070, %v2066
        %v2159 = vpack.c.bf16 %v2071, %v2067
        %v2160 = vpack.c.bf16 %v2072, %v2068
        %v2161 = vpack.c.bf16 %v2073, %v2069
        %v2162 = vpack.c.bf16 %v2078, %v2074
        %v2163 = vpack.c.bf16 %v2079, %v2075
        %v2164 = vpack.c.bf16 %v2080, %v2076
        %v2165 = vpack.c.bf16 %v2081, %v2077
        %v2166 = vpack.c.bf16 %v2086, %v2082
        %v2167 = vpack.c.bf16 %v2087, %v2083
        %v2168 = vpack.c.bf16 %v2088, %v2084
        %v2169 = vpack.c.bf16 %v2089, %v2085
        %v2170 = vpack.c.bf16 %v2094, %v2090
        %v2171 = vpack.c.bf16 %v2095, %v2091
        %v2172 = vpack.c.bf16 %v2096, %v2092
        %v2173 = vpack.c.bf16 %v2097, %v2093
        %v2174 = vpack.c.bf16 %v2102, %v2098
        %v2175 = vpack.c.bf16 %v2103, %v2099
        %v2176 = vpack.c.bf16 %v2104, %v2100
        %v2177 = vpack.c.bf16 %v2105, %v2101
        %v2178 = vpack.c.bf16 %v2110, %v2106
        %v2179 = vpack.c.bf16 %v2111, %v2107
        %v2180 = vpack.c.bf16 %v2112, %v2108
        %v2181 = vpack.c.bf16 %v2113, %v2109
        %v2182 = vpack.c.bf16 %v2118, %v2114
        %v2183 = vpack.c.bf16 %v2119, %v2115
        %v2184 = vpack.c.bf16 %v2120, %v2116
        %v2185 = vpack.c.bf16 %v2121, %v2117
        %v2186 = vpack.c.bf16 %v2126, %v2122
        %v2187 = vpack.c.bf16 %v2127, %v2123
        %v2188 = vpack.c.bf16 %v2128, %v2124
        %v2189 = vpack.c.bf16 %v2129, %v2125
        %v2190 = vpack.c.bf16 %v2130, %v2130
        %v2191 = vpack.c.bf16 %v2131, %v2131
        %v2192 = vpack.c.bf16 %v2132, %v2132
        %v2193 = vpack.c.bf16 %v2133, %v2133
        %v2194 = vld [vmem:[%s6 + $0x150] sm:$0xff]
        %v2195 = vld [vmem:[%s6 + $0x158] sm:$0xff]
        %v2196 = vld [vmem:[%s6 + $0x160] sm:$0xff]
        %v2197 = vld [vmem:[%s6 + $0x168] sm:$0xff]
        %v2198 = vld [vmem:[%s6 + $0x170] sm:$0xff]
        %v2199 = vld [vmem:[%s6 + $0x178] sm:$0xff]
        %v2200 = vld [vmem:[%s6 + $0x180] sm:$0xff]
        %v2201 = vld [vmem:[%s6 + $0x188] sm:$0xff]
        %v2202 = vld [vmem:[%s6 + $0x190] sm:$0xff]
        %v2203 = vld [vmem:[%s6 + $0x198] sm:$0xff]
        %v2204 = vld [vmem:[%s6 + $0x1a0] sm:$0xff]
        %v2205 = vld [vmem:[%s6 + $0x1a8] sm:$0xff]
        %v2206 = vld [vmem:[%s6 + $0x1b0] sm:$0xff]
        %v2207 = vld [vmem:[%s6 + $0x1b8] sm:$0xff]
        %v2208 = vld [vmem:[%s6 + $0x1c0] sm:$0xff]
        %v2209 = vld [vmem:[%s6 + $0x1c8] sm:$0xff]
        %v2210 = vld [vmem:[%s6 + $0x1d0] sm:$0xff]
        %v2211 = vld [vmem:[%s6 + $0x1d8] sm:$0xff]
        %v2212 = vld [vmem:[%s6 + $0x1e0] sm:$0x3f]
        %2214 = vset.pattern.permute.xlu0 0
        %2215 = vperm.xlu0 %2214, %v2194
        %v2216 = vpop.permute.xlu0 %2215
        %2219 = vset.pattern.permute.xlu0 0
        %2220 = vperm.xlu0 %2219, %v2195
        %v2221 = vpop.permute.xlu0 %2220
        %2224 = vset.pattern.permute.xlu0 0
        %2225 = vperm.xlu0 %2224, %v2196
        %v2226 = vpop.permute.xlu0 %2225
        %2229 = vset.pattern.permute.xlu0 0
        %2230 = vperm.xlu0 %2229, %v2197
        %v2231 = vpop.permute.xlu0 %2230
        %2234 = vset.pattern.permute.xlu0 0
        %2235 = vperm.xlu0 %2234, %v2198
        %v2236 = vpop.permute.xlu0 %2235
        %2239 = vset.pattern.permute.xlu0 0
        %2240 = vperm.xlu0 %2239, %v2199
        %v2241 = vpop.permute.xlu0 %2240
        %2244 = vset.pattern.permute.xlu0 0
        %2245 = vperm.xlu0 %2244, %v2200
        %v2246 = vpop.permute.xlu0 %2245
        %2249 = vset.pattern.permute.xlu0 0
        %2250 = vperm.xlu0 %2249, %v2201
        %v2251 = vpop.permute.xlu0 %2250
        %2254 = vset.pattern.permute.xlu0 0
        %2255 = vperm.xlu0 %2254, %v2202
        %v2256 = vpop.permute.xlu0 %2255
        %2259 = vset.pattern.permute.xlu0 0
        %2260 = vperm.xlu0 %2259, %v2203
        %v2261 = vpop.permute.xlu0 %2260
        %2264 = vset.pattern.permute.xlu0 0
        %2265 = vperm.xlu0 %2264, %v2204
        %v2266 = vpop.permute.xlu0 %2265
        %2269 = vset.pattern.permute.xlu0 0
        %2270 = vperm.xlu0 %2269, %v2205
        %v2271 = vpop.permute.xlu0 %2270
        %2274 = vset.pattern.permute.xlu0 0
        %2275 = vperm.xlu0 %2274, %v2206
        %v2276 = vpop.permute.xlu0 %2275
        %2279 = vset.pattern.permute.xlu0 0
        %2280 = vperm.xlu0 %2279, %v2207
        %v2281 = vpop.permute.xlu0 %2280
        %2284 = vset.pattern.permute.xlu0 0
        %2285 = vperm.xlu0 %2284, %v2208
        %v2286 = vpop.permute.xlu0 %2285
        %2289 = vset.pattern.permute.xlu0 0
        %2290 = vperm.xlu0 %2289, %v2209
        %v2291 = vpop.permute.xlu0 %2290
        %2294 = vset.pattern.permute.xlu0 0
        %2295 = vperm.xlu0 %2294, %v2210
        %v2296 = vpop.permute.xlu0 %2295
        %2299 = vset.pattern.permute.xlu0 0
        %2300 = vperm.xlu0 %2299, %v2211
        %v2301 = vpop.permute.xlu0 %2300
        %2304 = vset.pattern.permute.xlu0 0
        %2305 = vperm.xlu0 %2304, %v2212
        %v2306 = vpop.permute.xlu0 %2305
        %v2327 = vunpack.c.l.b16 %v2135
        %v2328 = vunpack.c.h.b16 %v2135
        %v2329 = vunpack.c.l.b16 %v2136
        %v2330 = vunpack.c.h.b16 %v2136
        %v2331 = vunpack.c.l.b16 %v2137
        %v2332 = vunpack.c.h.b16 %v2137
        %v2333 = vunpack.c.l.b16 %v2138
        %v2334 = vunpack.c.h.b16 %v2138
        %v2335 = vunpack.c.l.b16 %v2139
        %v2336 = vunpack.c.h.b16 %v2139
        %v2337 = vunpack.c.l.b16 %v2140
        %v2338 = vunpack.c.h.b16 %v2140
        %v2339 = vunpack.c.l.b16 %v2141
        %v2340 = vunpack.c.h.b16 %v2141
        %v2341 = vunpack.c.l.b16 %v2142
        %v2342 = vunpack.c.h.b16 %v2142
        %v2343 = vunpack.c.l.b16 %v2143
        %v2344 = vunpack.c.h.b16 %v2143
        %v2345 = vunpack.c.l.b16 %v2144
        %v2346 = vunpack.c.h.b16 %v2144
        %v2347 = vunpack.c.l.b16 %v2145
        %v2348 = vunpack.c.h.b16 %v2145
        %v2349 = vunpack.c.l.b16 %v2146
        %v2350 = vunpack.c.h.b16 %v2146
        %v2351 = vunpack.c.l.b16 %v2147
        %v2352 = vunpack.c.h.b16 %v2147
        %v2353 = vunpack.c.l.b16 %v2148
        %v2354 = vunpack.c.h.b16 %v2148
        %v2355 = vunpack.c.l.b16 %v2149
        %v2356 = vunpack.c.h.b16 %v2149
        %v2357 = vunpack.c.l.b16 %v2150
        %v2358 = vunpack.c.h.b16 %v2150
        %v2359 = vunpack.c.l.b16 %v2151
        %v2360 = vunpack.c.h.b16 %v2151
        %v2361 = vunpack.c.l.b16 %v2152
        %v2362 = vunpack.c.h.b16 %v2152
        %v2363 = vunpack.c.l.b16 %v2153
        %v2364 = vunpack.c.h.b16 %v2153
        %v2365 = vpack.c.b16 %v2329, %v2327
        %v2366 = vpack.c.b16 %v2330, %v2328
        %v2367 = vpack.c.b16 %v2333, %v2331
        %v2368 = vpack.c.b16 %v2334, %v2332
        %v2369 = vpack.c.b16 %v2337, %v2335
        %v2370 = vpack.c.b16 %v2338, %v2336
        %v2371 = vpack.c.b16 %v2341, %v2339
        %v2372 = vpack.c.b16 %v2342, %v2340
        %v2373 = vpack.c.b16 %v2345, %v2343
        %v2374 = vpack.c.b16 %v2346, %v2344
        %v2375 = vpack.c.b16 %v2349, %v2347
        %v2376 = vpack.c.b16 %v2350, %v2348
        %v2377 = vpack.c.b16 %v2353, %v2351
        %v2378 = vpack.c.b16 %v2354, %v2352
        %v2379 = vpack.c.b16 %v2357, %v2355
        %v2380 = vpack.c.b16 %v2358, %v2356
        %v2381 = vpack.c.b16 %v2361, %v2359
        %v2382 = vpack.c.b16 %v2362, %v2360
        %v2383 = vpack.c.b16 %v2363, %v2363
        %v2384 = vpack.c.b16 %v2364, %v2364
        %v2396 = vsel %vm1600, %v2366, 0
        %v2399 = vsel %vm1600, %v2368, 0
        %v2402 = vsel %vm1600, %v2370, 0
        %v2405 = vsel %vm1600, %v2372, 0
        %v2408 = vsel %vm1600, %v2374, 0
        %v2411 = vsel %vm1600, %v2376, 0
        %v2414 = vsel %vm1600, %v2378, 0
        %v2417 = vsel %vm1600, %v2380, 0
        %v2420 = vsel %vm1600, %v2382, 0
        %v2423 = vsel %vm1600, %v2384, 0
        %v2426 = vsel %vm1631, %v2190, 0
        %v2429 = vsel %vm1631, %v2191, 0
        %v2432 = vsel %vm1631, %v2192, 0
        %v2435 = vsel %vm1631, %v2193, 0
        %2437 = vmatprep.subr.bf16.mxu0 %v2155
        %2438 = vmatpush1.bf16.msra.mxu0 %v2154
        %2439 = vmatprep.subr.bf16.mxu0 %v2159
        %2440 = vmatpush1.bf16.msra.mxu0 %v2158
        %2441 = vmatprep.subr.bf16.mxu0 %v2163
        %2442 = vmatpush1.bf16.msra.mxu0 %v2162
        %2443 = vmatprep.subr.bf16.mxu0 %v2167
        %2444 = vmatpush1.bf16.msra.mxu0 %v2166
        %2445 = vmatprep.subr.bf16.mxu0 %v2171
        %2446 = vmatpush1.bf16.msra.mxu0 %v2170
        %2447 = vmatprep.subr.bf16.mxu0 %v2175
        %2448 = vmatpush1.bf16.msra.mxu0 %v2174
        %2449 = vmatprep.subr.bf16.mxu0 %v2179
        %2450 = vmatpush1.bf16.msra.mxu0 %v2178
        %2451 = vmatprep.subr.bf16.mxu0 %v2183
        %2452 = vmatpush1.bf16.msra.mxu0 %v2182
        %2453 = vmatprep.subr.bf16.mxu0 %v2187
        %2454 = vmatpush1.bf16.msra.mxu0 %v2186
        %2455 = vmatprep.subr.bf16.mxu0 %v2429
        %2456 = vmatpush1.bf16.msra.mxu0 %v2426
        %2457 = vmatprep.subr.bf16.mxu0 0
        %2458 = vmatpush1.bf16.msra.mxu0 0
        %2459 = vmatprep.subr.bf16.mxu0 0
        %2460 = vmatpush1.bf16.msra.mxu0 0
        %2461 = vmatprep.subr.bf16.mxu0 0
        %2462 = vmatpush1.bf16.msra.mxu0 0
        %2463 = vmatprep.subr.bf16.mxu0 0
        %2464 = vmatpush1.bf16.msra.mxu0 0
        %2465 = vmatprep.subr.bf16.mxu0 0
        %2466 = vmatpush1.bf16.msra.mxu0 0
        %2467 = vmatprep.subr.bf16.mxu0 0
        %2468 = vmatpush1.bf16.msra.mxu0 0
        %2469 = vmatprep.mubr.bf16.mxu0 %v2396
        %2470 = vmatmul.mubr.bf16.gmra.mrb[0].mxu0 %v2365
        %v2471 = vpop.f32.mrb[0].mxu0
        %v2472 = vadd.f32 %v2216, %v2471
        %v2473 = vpop.f32.mrb[0].mxu0
        %v2474 = vadd.f32 %v2216, %v2473
        %v2475 = vpop.f32.mrb[0].mxu0
        %v2476 = vadd.f32 %v2221, %v2475
        %v2477 = vpop.f32.mrb[0].mxu0
        %v2478 = vadd.f32 %v2221, %v2477
        %2479 = vmatprep.mubr.bf16.mxu0 %v2399
        %2480 = vmatmul.mubr.bf16.gmra.mrb[0].mxu0 %v2367
        %v2481 = vpop.f32.mrb[0].mxu0
        %v2482 = vadd.f32 %v2226, %v2481
        %v2483 = vpop.f32.mrb[0].mxu0
        %v2484 = vadd.f32 %v2226, %v2483
        %v2485 = vpop.f32.mrb[0].mxu0
        %v2486 = vadd.f32 %v2231, %v2485
        %v2487 = vpop.f32.mrb[0].mxu0
        %v2488 = vadd.f32 %v2231, %v2487
        %2489 = vmatprep.mubr.bf16.mxu0 %v2402
        %2490 = vmatmul.mubr.bf16.gmra.mrb[0].mxu0 %v2369
        %v2491 = vpop.f32.mrb[0].mxu0
        %v2492 = vadd.f32 %v2236, %v2491
        %v2493 = vpop.f32.mrb[0].mxu0
        %v2494 = vadd.f32 %v2236, %v2493
        %v2495 = vpop.f32.mrb[0].mxu0
        %v2496 = vadd.f32 %v2241, %v2495
        %v2497 = vpop.f32.mrb[0].mxu0
        %v2498 = vadd.f32 %v2241, %v2497
        %2499 = vmatprep.mubr.bf16.mxu0 %v2405
        %2500 = vmatmul.mubr.bf16.gmra.mrb[0].mxu0 %v2371
        %v2501 = vpop.f32.mrb[0].mxu0
        %v2502 = vadd.f32 %v2246, %v2501
        %v2503 = vpop.f32.mrb[0].mxu0
        %v2504 = vadd.f32 %v2246, %v2503
        %v2505 = vpop.f32.mrb[0].mxu0
        %v2506 = vadd.f32 %v2251, %v2505
        %v2507 = vpop.f32.mrb[0].mxu0
        %v2508 = vadd.f32 %v2251, %v2507
        %2509 = vmatprep.mubr.bf16.mxu0 %v2408
        %2510 = vmatmul.mubr.bf16.gmra.mrb[0].mxu0 %v2373
        %v2511 = vpop.f32.mrb[0].mxu0
        %v2512 = vadd.f32 %v2256, %v2511
        %v2513 = vpop.f32.mrb[0].mxu0
        %v2514 = vadd.f32 %v2256, %v2513
        %v2515 = vpop.f32.mrb[0].mxu0
        %v2516 = vadd.f32 %v2261, %v2515
        %v2517 = vpop.f32.mrb[0].mxu0
        %v2518 = vadd.f32 %v2261, %v2517
        %2519 = vmatprep.mubr.bf16.mxu0 %v2411
        %2520 = vmatmul.mubr.bf16.gmra.mrb[0].mxu0 %v2375
        %v2521 = vpop.f32.mrb[0].mxu0
        %v2522 = vadd.f32 %v2266, %v2521
        %v2523 = vpop.f32.mrb[0].mxu0
        %v2524 = vadd.f32 %v2266, %v2523
        %v2525 = vpop.f32.mrb[0].mxu0
        %v2526 = vadd.f32 %v2271, %v2525
        %v2527 = vpop.f32.mrb[0].mxu0
        %v2528 = vadd.f32 %v2271, %v2527
        %2529 = vmatprep.mubr.bf16.mxu0 %v2414
        %2530 = vmatmul.mubr.bf16.gmra.mrb[0].mxu0 %v2377
        %v2531 = vpop.f32.mrb[0].mxu0
        %v2532 = vadd.f32 %v2276, %v2531
        %v2533 = vpop.f32.mrb[0].mxu0
        %v2534 = vadd.f32 %v2276, %v2533
        %v2535 = vpop.f32.mrb[0].mxu0
        %v2536 = vadd.f32 %v2281, %v2535
        %v2537 = vpop.f32.mrb[0].mxu0
        %v2538 = vadd.f32 %v2281, %v2537
        %2539 = vmatprep.mubr.bf16.mxu0 %v2417
        %2540 = vmatmul.mubr.bf16.gmra.mrb[0].mxu0 %v2379
        %v2541 = vpop.f32.mrb[0].mxu0
        %v2542 = vadd.f32 %v2286, %v2541
        %v2543 = vpop.f32.mrb[0].mxu0
        %v2544 = vadd.f32 %v2286, %v2543
        %v2545 = vpop.f32.mrb[0].mxu0
        %v2546 = vadd.f32 %v2291, %v2545
        %v2547 = vpop.f32.mrb[0].mxu0
        %v2548 = vadd.f32 %v2291, %v2547
        %2549 = vmatprep.mubr.bf16.mxu0 %v2420
        %2550 = vmatmul.mubr.bf16.gmra.mrb[0].mxu0 %v2381
        %v2551 = vpop.f32.mrb[0].mxu0
        %v2552 = vadd.f32 %v2296, %v2551
        %v2553 = vpop.f32.mrb[0].mxu0
        %v2554 = vadd.f32 %v2296, %v2553
        %v2555 = vpop.f32.mrb[0].mxu0
        %v2556 = vadd.f32 %v2301, %v2555
        %v2557 = vpop.f32.mrb[0].mxu0
        %v2558 = vadd.f32 %v2301, %v2557
        %2559 = vmatprep.mubr.bf16.mxu0 %v2423
        %2560 = vmatmul.mubr.bf16.gmra.mrb[0].mxu0 %v2383
        %v2561 = vpop.f32.mrb[0].mxu0
        %v2562 = vadd.f32 %v2306, %v2561
        %v2563 = vpop.f32.mrb[0].mxu0
        %v2564 = vadd.f32 %v2306, %v2563
        %v2565 = vpop.f32.mrb[0].mxu0
        %v2566 = vpop.f32.mrb[0].mxu0
        %2567 = vdwg.mxu0
        %2568 = vmatprep.subr.bf16.mxu0 %v2157
        %2569 = vmatpush1.bf16.msra.mxu0 %v2156
        %2570 = vmatprep.subr.bf16.mxu0 %v2161
        %2571 = vmatpush1.bf16.msra.mxu0 %v2160
        %2572 = vmatprep.subr.bf16.mxu0 %v2165
        %2573 = vmatpush1.bf16.msra.mxu0 %v2164
        %2574 = vmatprep.subr.bf16.mxu0 %v2169
        %2575 = vmatpush1.bf16.msra.mxu0 %v2168
        %2576 = vmatprep.subr.bf16.mxu0 %v2173
        %2577 = vmatpush1.bf16.msra.mxu0 %v2172
        %2578 = vmatprep.subr.bf16.mxu0 %v2177
        %2579 = vmatpush1.bf16.msra.mxu0 %v2176
        %2580 = vmatprep.subr.bf16.mxu0 %v2181
        %2581 = vmatpush1.bf16.msra.mxu0 %v2180
        %2582 = vmatprep.subr.bf16.mxu0 %v2185
        %2583 = vmatpush1.bf16.msra.mxu0 %v2184
        %2584 = vmatprep.subr.bf16.mxu0 %v2189
        %2585 = vmatpush1.bf16.msra.mxu0 %v2188
        %2586 = vmatprep.subr.bf16.mxu0 %v2435
        %2587 = vmatpush1.bf16.msra.mxu0 %v2432
        %2588 = vmatprep.subr.bf16.mxu0 0
        %2589 = vmatpush1.bf16.msra.mxu0 0
        %2590 = vmatprep.subr.bf16.mxu0 0
        %2591 = vmatpush1.bf16.msra.mxu0 0
        %2592 = vmatprep.subr.bf16.mxu0 0
        %2593 = vmatpush1.bf16.msra.mxu0 0
        %2594 = vmatprep.subr.bf16.mxu0 0
        %2595 = vmatpush1.bf16.msra.mxu0 0
        %2596 = vmatprep.subr.bf16.mxu0 0
        %2597 = vmatpush1.bf16.msra.mxu0 0
        %2598 = vmatprep.subr.bf16.mxu0 0
        %2599 = vmatpush1.bf16.msra.mxu0 0
        %2600 = vmatprep.mubr.bf16.mxu0 %v2396
        %2601 = vmatmul.mubr.bf16.gmra.mrb[0].mxu0 %v2365
        %v2602 = vpop.f32.mrb[0].mxu0
        %v2603 = vadd.f32 %v2216, %v2602
        %v2604 = vpop.f32.mrb[0].mxu0
        %v2605 = vadd.f32 %v2216, %v2604
        %v2606 = vpop.f32.mrb[0].mxu0
        %v2607 = vadd.f32 %v2221, %v2606
        %v2608 = vpop.f32.mrb[0].mxu0
        %v2609 = vadd.f32 %v2221, %v2608
        %2610 = vmatprep.mubr.bf16.mxu0 %v2399
        %2611 = vmatmul.mubr.bf16.gmra.mrb[0].mxu0 %v2367
        %v2612 = vpop.f32.mrb[0].mxu0
        %v2613 = vadd.f32 %v2226, %v2612
        %v2614 = vpop.f32.mrb[0].mxu0
        %v2615 = vadd.f32 %v2226, %v2614
        %v2616 = vpop.f32.mrb[0].mxu0
        %v2617 = vadd.f32 %v2231, %v2616
        %v2618 = vpop.f32.mrb[0].mxu0
        %v2619 = vadd.f32 %v2231, %v2618
        %2620 = vmatprep.mubr.bf16.mxu0 %v2402
        %2621 = vmatmul.mubr.bf16.gmra.mrb[0].mxu0 %v2369
        %v2622 = vpop.f32.mrb[0].mxu0
        %v2623 = vadd.f32 %v2236, %v2622
        %v2624 = vpop.f32.mrb[0].mxu0
        %v2625 = vadd.f32 %v2236, %v2624
        %v2626 = vpop.f32.mrb[0].mxu0
        %v2627 = vadd.f32 %v2241, %v2626
        %v2628 = vpop.f32.mrb[0].mxu0
        %v2629 = vadd.f32 %v2241, %v2628
        %2630 = vmatprep.mubr.bf16.mxu0 %v2405
        %2631 = vmatmul.mubr.bf16.gmra.mrb[0].mxu0 %v2371
        %v2632 = vpop.f32.mrb[0].mxu0
        %v2633 = vadd.f32 %v2246, %v2632
        %v2634 = vpop.f32.mrb[0].mxu0
        %v2635 = vadd.f32 %v2246, %v2634
        %v2636 = vpop.f32.mrb[0].mxu0
        %v2637 = vadd.f32 %v2251, %v2636
        %v2638 = vpop.f32.mrb[0].mxu0
        %v2639 = vadd.f32 %v2251, %v2638
        %2640 = vmatprep.mubr.bf16.mxu0 %v2408
        %2641 = vmatmul.mubr.bf16.gmra.mrb[0].mxu0 %v2373
        %v2642 = vpop.f32.mrb[0].mxu0
        %v2643 = vadd.f32 %v2256, %v2642
        %v2644 = vpop.f32.mrb[0].mxu0
        %v2645 = vadd.f32 %v2256, %v2644
        %v2646 = vpop.f32.mrb[0].mxu0
        %v2647 = vadd.f32 %v2261, %v2646
        %v2648 = vpop.f32.mrb[0].mxu0
        %v2649 = vadd.f32 %v2261, %v2648
        %2650 = vmatprep.mubr.bf16.mxu0 %v2411
        %2651 = vmatmul.mubr.bf16.gmra.mrb[0].mxu0 %v2375
        %v2652 = vpop.f32.mrb[0].mxu0
        %v2653 = vadd.f32 %v2266, %v2652
        %v2654 = vpop.f32.mrb[0].mxu0
        %v2655 = vadd.f32 %v2266, %v2654
        %v2656 = vpop.f32.mrb[0].mxu0
        %v2657 = vadd.f32 %v2271, %v2656
        %v2658 = vpop.f32.mrb[0].mxu0
        %v2659 = vadd.f32 %v2271, %v2658
        %2660 = vmatprep.mubr.bf16.mxu0 %v2414
        %2661 = vmatmul.mubr.bf16.gmra.mrb[0].mxu0 %v2377
        %v2662 = vpop.f32.mrb[0].mxu0
        %v2663 = vadd.f32 %v2276, %v2662
        %v2664 = vpop.f32.mrb[0].mxu0
        %v2665 = vadd.f32 %v2276, %v2664
        %v2666 = vpop.f32.mrb[0].mxu0
        %v2667 = vadd.f32 %v2281, %v2666
        %v2668 = vpop.f32.mrb[0].mxu0
        %v2669 = vadd.f32 %v2281, %v2668
        %2670 = vmatprep.mubr.bf16.mxu0 %v2417
        %2671 = vmatmul.mubr.bf16.gmra.mrb[0].mxu0 %v2379
        %v2672 = vpop.f32.mrb[0].mxu0
        %v2673 = vadd.f32 %v2286, %v2672
        %v2674 = vpop.f32.mrb[0].mxu0
        %v2675 = vadd.f32 %v2286, %v2674
        %v2676 = vpop.f32.mrb[0].mxu0
        %v2677 = vadd.f32 %v2291, %v2676
        %v2678 = vpop.f32.mrb[0].mxu0
        %v2679 = vadd.f32 %v2291, %v2678
        %2680 = vmatprep.mubr.bf16.mxu0 %v2420
        %2681 = vmatmul.mubr.bf16.gmra.mrb[0].mxu0 %v2381
        %v2682 = vpop.f32.mrb[0].mxu0
        %v2683 = vadd.f32 %v2296, %v2682
        %v2684 = vpop.f32.mrb[0].mxu0
        %v2685 = vadd.f32 %v2296, %v2684
        %v2686 = vpop.f32.mrb[0].mxu0
        %v2687 = vadd.f32 %v2301, %v2686
        %v2688 = vpop.f32.mrb[0].mxu0
        %v2689 = vadd.f32 %v2301, %v2688
        %2690 = vmatprep.mubr.bf16.mxu0 %v2423
        %2691 = vmatmul.mubr.bf16.gmra.mrb[0].mxu0 %v2383
        %v2692 = vpop.f32.mrb[0].mxu0
        %v2693 = vadd.f32 %v2306, %v2692
        %v2694 = vpop.f32.mrb[0].mxu0
        %v2695 = vadd.f32 %v2306, %v2694
        %v2696 = vpop.f32.mrb[0].mxu0
        %v2697 = vpop.f32.mrb[0].mxu0
        %2698 = vdwg.mxu0
        %vm2699 = vcmp.ge.f32.partialorder %v2472, 0.0
        %vm2700 = vcmp.ge.f32.partialorder %v2474, 0.0
        %vm2701 = vcmp.ge.f32.partialorder %v2603, 0.0
        %vm2702 = vcmp.ge.f32.partialorder %v2605, 0.0
        %vm2703 = vcmp.ge.f32.partialorder %v2476, 0.0
        %vm2704 = vcmp.ge.f32.partialorder %v2478, 0.0
        %vm2705 = vcmp.ge.f32.partialorder %v2607, 0.0
        %vm2706 = vcmp.ge.f32.partialorder %v2609, 0.0
        %vm2707 = vcmp.ge.f32.partialorder %v2482, 0.0
        %vm2708 = vcmp.ge.f32.partialorder %v2484, 0.0
        %vm2709 = vcmp.ge.f32.partialorder %v2613, 0.0
        %vm2710 = vcmp.ge.f32.partialorder %v2615, 0.0
        %vm2711 = vcmp.ge.f32.partialorder %v2486, 0.0
        %vm2712 = vcmp.ge.f32.partialorder %v2488, 0.0
        %vm2713 = vcmp.ge.f32.partialorder %v2617, 0.0
        %vm2714 = vcmp.ge.f32.partialorder %v2619, 0.0
        %vm2715 = vcmp.ge.f32.partialorder %v2492, 0.0
        %vm2716 = vcmp.ge.f32.partialorder %v2494, 0.0
        %vm2717 = vcmp.ge.f32.partialorder %v2623, 0.0
        %vm2718 = vcmp.ge.f32.partialorder %v2625, 0.0
        %vm2719 = vcmp.ge.f32.partialorder %v2496, 0.0
        %vm2720 = vcmp.ge.f32.partialorder %v2498, 0.0
        %vm2721 = vcmp.ge.f32.partialorder %v2627, 0.0
        %vm2722 = vcmp.ge.f32.partialorder %v2629, 0.0
        %vm2723 = vcmp.ge.f32.partialorder %v2502, 0.0
        %vm2724 = vcmp.ge.f32.partialorder %v2504, 0.0
        %vm2725 = vcmp.ge.f32.partialorder %v2633, 0.0
        %vm2726 = vcmp.ge.f32.partialorder %v2635, 0.0
        %vm2727 = vcmp.ge.f32.partialorder %v2506, 0.0
        %vm2728 = vcmp.ge.f32.partialorder %v2508, 0.0
        %vm2729 = vcmp.ge.f32.partialorder %v2637, 0.0
        %vm2730 = vcmp.ge.f32.partialorder %v2639, 0.0
        %vm2731 = vcmp.ge.f32.partialorder %v2512, 0.0
        %vm2732 = vcmp.ge.f32.partialorder %v2514, 0.0
        %vm2733 = vcmp.ge.f32.partialorder %v2643, 0.0
        %vm2734 = vcmp.ge.f32.partialorder %v2645, 0.0
        %vm2735 = vcmp.ge.f32.partialorder %v2516, 0.0
        %vm2736 = vcmp.ge.f32.partialorder %v2518, 0.0
        %vm2737 = vcmp.ge.f32.partialorder %v2647, 0.0
        %vm2738 = vcmp.ge.f32.partialorder %v2649, 0.0
        %vm2739 = vcmp.ge.f32.partialorder %v2522, 0.0
        %vm2740 = vcmp.ge.f32.partialorder %v2524, 0.0
        %vm2741 = vcmp.ge.f32.partialorder %v2653, 0.0
        %vm2742 = vcmp.ge.f32.partialorder %v2655, 0.0
        %vm2743 = vcmp.ge.f32.partialorder %v2526, 0.0
        %vm2744 = vcmp.ge.f32.partialorder %v2528, 0.0
        %vm2745 = vcmp.ge.f32.partialorder %v2657, 0.0
        %vm2746 = vcmp.ge.f32.partialorder %v2659, 0.0
        %vm2747 = vcmp.ge.f32.partialorder %v2532, 0.0
        %vm2748 = vcmp.ge.f32.partialorder %v2534, 0.0
        %vm2749 = vcmp.ge.f32.partialorder %v2663, 0.0
        %vm2750 = vcmp.ge.f32.partialorder %v2665, 0.0
        %vm2751 = vcmp.ge.f32.partialorder %v2536, 0.0
        %vm2752 = vcmp.ge.f32.partialorder %v2538, 0.0
        %vm2753 = vcmp.ge.f32.partialorder %v2667, 0.0
        %vm2754 = vcmp.ge.f32.partialorder %v2669, 0.0
        %vm2755 = vcmp.ge.f32.partialorder %v2542, 0.0
        %vm2756 = vcmp.ge.f32.partialorder %v2544, 0.0
        %vm2757 = vcmp.ge.f32.partialorder %v2673, 0.0
        %vm2758 = vcmp.ge.f32.partialorder %v2675, 0.0
        %vm2759 = vcmp.ge.f32.partialorder %v2546, 0.0
        %vm2760 = vcmp.ge.f32.partialorder %v2548, 0.0
        %vm2761 = vcmp.ge.f32.partialorder %v2677, 0.0
        %vm2762 = vcmp.ge.f32.partialorder %v2679, 0.0
        %vm2763 = vcmp.ge.f32.partialorder %v2552, 0.0
        %vm2764 = vcmp.ge.f32.partialorder %v2554, 0.0
        %vm2765 = vcmp.ge.f32.partialorder %v2683, 0.0
        %vm2766 = vcmp.ge.f32.partialorder %v2685, 0.0
        %vm2767 = vcmp.ge.f32.partialorder %v2556, 0.0
        %vm2768 = vcmp.ge.f32.partialorder %v2558, 0.0
        %vm2769 = vcmp.ge.f32.partialorder %v2687, 0.0
        %vm2770 = vcmp.ge.f32.partialorder %v2689, 0.0
        %vm2771 = vcmp.ge.f32.partialorder %v2562, 0.0
        %vm2772 = vcmp.ge.f32.partialorder %v2564, 0.0
        %vm2773 = vcmp.ge.f32.partialorder %v2693, 0.0
        %vm2774 = vcmp.ge.f32.partialorder %v2695, 0.0
        %v2775 = vmul.f32 %v2472, 0.01
        %v2776 = vmul.f32 %v2474, 0.01
        %v2777 = vmul.f32 %v2603, 0.01
        %v2778 = vmul.f32 %v2605, 0.01
        %v2779 = vmul.f32 %v2476, 0.01
        %v2780 = vmul.f32 %v2478, 0.01
        %v2781 = vmul.f32 %v2607, 0.01
        %v2782 = vmul.f32 %v2609, 0.01
        %v2783 = vmul.f32 %v2482, 0.01
        %v2784 = vmul.f32 %v2484, 0.01
        %v2785 = vmul.f32 %v2613, 0.01
        %v2786 = vmul.f32 %v2615, 0.01
        %v2787 = vmul.f32 %v2486, 0.01
        %v2788 = vmul.f32 %v2488, 0.01
        %v2789 = vmul.f32 %v2617, 0.01
        %v2790 = vmul.f32 %v2619, 0.01
        %v2791 = vmul.f32 %v2492, 0.01
        %v2792 = vmul.f32 %v2494, 0.01
        %v2793 = vmul.f32 %v2623, 0.01
        %v2794 = vmul.f32 %v2625, 0.01
        %v2795 = vmul.f32 %v2496, 0.01
        %v2796 = vmul.f32 %v2498, 0.01
        %v2797 = vmul.f32 %v2627, 0.01
        %v2798 = vmul.f32 %v2629, 0.01
        %v2799 = vmul.f32 %v2502, 0.01
        %v2800 = vmul.f32 %v2504, 0.01
        %v2801 = vmul.f32 %v2633, 0.01
        %v2802 = vmul.f32 %v2635, 0.01
        %v2803 = vmul.f32 %v2506, 0.01
        %v2804 = vmul.f32 %v2508, 0.01
        %v2805 = vmul.f32 %v2637, 0.01
        %v2806 = vmul.f32 %v2639, 0.01
        %v2807 = vmul.f32 %v2512, 0.01
        %v2808 = vmul.f32 %v2514, 0.01
        %v2809 = vmul.f32 %v2643, 0.01
        %v2810 = vmul.f32 %v2645, 0.01
        %v2811 = vmul.f32 %v2516, 0.01
        %v2812 = vmul.f32 %v2518, 0.01
        %v2813 = vmul.f32 %v2647, 0.01
        %v2814 = vmul.f32 %v2649, 0.01
        %v2815 = vmul.f32 %v2522, 0.01
        %v2816 = vmul.f32 %v2524, 0.01
        %v2817 = vmul.f32 %v2653, 0.01
        %v2818 = vmul.f32 %v2655, 0.01
        %v2819 = vmul.f32 %v2526, 0.01
        %v2820 = vmul.f32 %v2528, 0.01
        %v2821 = vmul.f32 %v2657, 0.01
        %v2822 = vmul.f32 %v2659, 0.01
        %v2823 = vmul.f32 %v2532, 0.01
        %v2824 = vmul.f32 %v2534, 0.01
        %v2825 = vmul.f32 %v2663, 0.01
        %v2826 = vmul.f32 %v2665, 0.01
        %v2827 = vmul.f32 %v2536, 0.01
        %v2828 = vmul.f32 %v2538, 0.01
        %v2829 = vmul.f32 %v2667, 0.01
        %v2830 = vmul.f32 %v2669, 0.01
        %v2831 = vmul.f32 %v2542, 0.01
        %v2832 = vmul.f32 %v2544, 0.01
        %v2833 = vmul.f32 %v2673, 0.01
        %v2834 = vmul.f32 %v2675, 0.01
        %v2835 = vmul.f32 %v2546, 0.01
        %v2836 = vmul.f32 %v2548, 0.01
        %v2837 = vmul.f32 %v2677, 0.01
        %v2838 = vmul.f32 %v2679, 0.01
        %v2839 = vmul.f32 %v2552, 0.01
        %v2840 = vmul.f32 %v2554, 0.01
        %v2841 = vmul.f32 %v2683, 0.01
        %v2842 = vmul.f32 %v2685, 0.01
        %v2843 = vmul.f32 %v2556, 0.01
        %v2844 = vmul.f32 %v2558, 0.01
        %v2845 = vmul.f32 %v2687, 0.01
        %v2846 = vmul.f32 %v2689, 0.01
        %v2847 = vmul.f32 %v2562, 0.01
        %v2848 = vmul.f32 %v2564, 0.01
        %v2849 = vmul.f32 %v2693, 0.01
        %v2850 = vmul.f32 %v2695, 0.01
        %v2851 = vsel %vm2699, %v2472, %v2775
        %v2852 = vsel %vm2700, %v2474, %v2776
        %v2853 = vsel %vm2701, %v2603, %v2777
        %v2854 = vsel %vm2702, %v2605, %v2778
        %v2855 = vsel %vm2703, %v2476, %v2779
        %v2856 = vsel %vm2704, %v2478, %v2780
        %v2857 = vsel %vm2705, %v2607, %v2781
        %v2858 = vsel %vm2706, %v2609, %v2782
        %v2859 = vsel %vm2707, %v2482, %v2783
        %v2860 = vsel %vm2708, %v2484, %v2784
        %v2861 = vsel %vm2709, %v2613, %v2785
        %v2862 = vsel %vm2710, %v2615, %v2786
        %v2863 = vsel %vm2711, %v2486, %v2787
        %v2864 = vsel %vm2712, %v2488, %v2788
        %v2865 = vsel %vm2713, %v2617, %v2789
        %v2866 = vsel %vm2714, %v2619, %v2790
        %v2867 = vsel %vm2715, %v2492, %v2791
        %v2868 = vsel %vm2716, %v2494, %v2792
        %v2869 = vsel %vm2717, %v2623, %v2793
        %v2870 = vsel %vm2718, %v2625, %v2794
        %v2871 = vsel %vm2719, %v2496, %v2795
        %v2872 = vsel %vm2720, %v2498, %v2796
        %v2873 = vsel %vm2721, %v2627, %v2797
        %v2874 = vsel %vm2722, %v2629, %v2798
        %v2875 = vsel %vm2723, %v2502, %v2799
        %v2876 = vsel %vm2724, %v2504, %v2800
        %v2877 = vsel %vm2725, %v2633, %v2801
        %v2878 = vsel %vm2726, %v2635, %v2802
        %v2879 = vsel %vm2727, %v2506, %v2803
        %v2880 = vsel %vm2728, %v2508, %v2804
        %v2881 = vsel %vm2729, %v2637, %v2805
        %v2882 = vsel %vm2730, %v2639, %v2806
        %v2883 = vsel %vm2731, %v2512, %v2807
        %v2884 = vsel %vm2732, %v2514, %v2808
        %v2885 = vsel %vm2733, %v2643, %v2809
        %v2886 = vsel %vm2734, %v2645, %v2810
        %v2887 = vsel %vm2735, %v2516, %v2811
        %v2888 = vsel %vm2736, %v2518, %v2812
        %v2889 = vsel %vm2737, %v2647, %v2813
        %v2890 = vsel %vm2738, %v2649, %v2814
        %v2891 = vsel %vm2739, %v2522, %v2815
        %v2892 = vsel %vm2740, %v2524, %v2816
        %v2893 = vsel %vm2741, %v2653, %v2817
        %v2894 = vsel %vm2742, %v2655, %v2818
        %v2895 = vsel %vm2743, %v2526, %v2819
        %v2896 = vsel %vm2744, %v2528, %v2820
        %v2897 = vsel %vm2745, %v2657, %v2821
        %v2898 = vsel %vm2746, %v2659, %v2822
        %v2899 = vsel %vm2747, %v2532, %v2823
        %v2900 = vsel %vm2748, %v2534, %v2824
        %v2901 = vsel %vm2749, %v2663, %v2825
        %v2902 = vsel %vm2750, %v2665, %v2826
        %v2903 = vsel %vm2751, %v2536, %v2827
        %v2904 = vsel %vm2752, %v2538, %v2828
        %v2905 = vsel %vm2753, %v2667, %v2829
        %v2906 = vsel %vm2754, %v2669, %v2830
        %v2907 = vsel %vm2755, %v2542, %v2831
        %v2908 = vsel %vm2756, %v2544, %v2832
        %v2909 = vsel %vm2757, %v2673, %v2833
        %v2910 = vsel %vm2758, %v2675, %v2834
        %v2911 = vsel %vm2759, %v2546, %v2835
        %v2912 = vsel %vm2760, %v2548, %v2836
        %v2913 = vsel %vm2761, %v2677, %v2837
        %v2914 = vsel %vm2762, %v2679, %v2838
        %v2915 = vsel %vm2763, %v2552, %v2839
        %v2916 = vsel %vm2764, %v2554, %v2840
        %v2917 = vsel %vm2765, %v2683, %v2841
        %v2918 = vsel %vm2766, %v2685, %v2842
        %v2919 = vsel %vm2767, %v2556, %v2843
        %v2920 = vsel %vm2768, %v2558, %v2844
        %v2921 = vsel %vm2769, %v2687, %v2845
        %v2922 = vsel %vm2770, %v2689, %v2846
        %v2923 = vsel %vm2771, %v2562, %v2847
        %v2924 = vsel %vm2772, %v2564, %v2848
        %v2925 = vsel %vm2773, %v2693, %v2849
        %v2926 = vsel %vm2774, %v2695, %v2850
        %s2927 = scalar_lea.vmem %s3, 304
        %v2928 = vld [vmem:[%s2927] sm:$0xff]
        %v2929 = vld [vmem:[%s2927 + $0x8] sm:$0xff]
        %v2930 = vld [vmem:[%s2927 + $0x10] sm:$0xff]
        %v2931 = vld [vmem:[%s2927 + $0x18] sm:$0xff]
        %v2932 = vld [vmem:[%s2927 + $0x20] sm:$0xff]
        %v2933 = vld [vmem:[%s2927 + $0x28] sm:$0xff]
        %v2934 = vld [vmem:[%s2927 + $0x30] sm:$0xff]
        %v2935 = vld [vmem:[%s2927 + $0x38] sm:$0xff]
        %v2936 = vld [vmem:[%s2927 + $0x40] sm:$0xff]
        %v2937 = vld [vmem:[%s2927 + $0x48] sm:$0xff]
        %v2938 = vld [vmem:[%s2927 + $0x50] sm:$0xff]
        %v2939 = vld [vmem:[%s2927 + $0x58] sm:$0xff]
        %v2940 = vld [vmem:[%s2927 + $0x60] sm:$0xff]
        %v2941 = vld [vmem:[%s2927 + $0x68] sm:$0xff]
        %v2942 = vld [vmem:[%s2927 + $0x70] sm:$0xff]
        %v2943 = vld [vmem:[%s2927 + $0x78] sm:$0xff]
        %v2944 = vld [vmem:[%s2927 + $0x80] sm:$0xff]
        %v2945 = vld [vmem:[%s2927 + $0x88] sm:$0xff]
        %v2946 = vld [vmem:[%s2927 + $0x90] sm:$0x77]
        %v2947 = vpack.c.bf16 %v2855, %v2851
        %v2948 = vpack.c.bf16 %v2856, %v2852
        %v2949 = vpack.c.bf16 %v2857, %v2853
        %v2950 = vpack.c.bf16 %v2858, %v2854
        %v2951 = vpack.c.bf16 %v2863, %v2859
        %v2952 = vpack.c.bf16 %v2864, %v2860
        %v2953 = vpack.c.bf16 %v2865, %v2861
        %v2954 = vpack.c.bf16 %v2866, %v2862
        %v2955 = vpack.c.bf16 %v2871, %v2867
        %v2956 = vpack.c.bf16 %v2872, %v2868
        %v2957 = vpack.c.bf16 %v2873, %v2869
        %v2958 = vpack.c.bf16 %v2874, %v2870
        %v2959 = vpack.c.bf16 %v2879, %v2875
        %v2960 = vpack.c.bf16 %v2880, %v2876
        %v2961 = vpack.c.bf16 %v2881, %v2877
        %v2962 = vpack.c.bf16 %v2882, %v2878
        %v2963 = vpack.c.bf16 %v2887, %v2883
        %v2964 = vpack.c.bf16 %v2888, %v2884
        %v2965 = vpack.c.bf16 %v2889, %v2885
        %v2966 = vpack.c.bf16 %v2890, %v2886
        %v2967 = vpack.c.bf16 %v2895, %v2891
        %v2968 = vpack.c.bf16 %v2896, %v2892
        %v2969 = vpack.c.bf16 %v2897, %v2893
        %v2970 = vpack.c.bf16 %v2898, %v2894
        %v2971 = vpack.c.bf16 %v2903, %v2899
        %v2972 = vpack.c.bf16 %v2904, %v2900
        %v2973 = vpack.c.bf16 %v2905, %v2901
        %v2974 = vpack.c.bf16 %v2906, %v2902
        %v2975 = vpack.c.bf16 %v2911, %v2907
        %v2976 = vpack.c.bf16 %v2912, %v2908
        %v2977 = vpack.c.bf16 %v2913, %v2909
        %v2978 = vpack.c.bf16 %v2914, %v2910
        %v2979 = vpack.c.bf16 %v2919, %v2915
        %v2980 = vpack.c.bf16 %v2920, %v2916
        %v2981 = vpack.c.bf16 %v2921, %v2917
        %v2982 = vpack.c.bf16 %v2922, %v2918
        %v2983 = vpack.c.bf16 %v2923, %v2923
        %v2984 = vpack.c.bf16 %v2924, %v2924
        %v2985 = vpack.c.bf16 %v2925, %v2925
        %v2986 = vpack.c.bf16 %v2926, %v2926
        %v2987 = vld [vmem:[%s6 + $0x1e8] sm:$0xff]
        %v2988 = vld [vmem:[%s6 + $0x1f0] sm:$0xff]
        %v2989 = vld [vmem:[%s6 + $0x1f8] sm:$0xff]
        %v2990 = vld [vmem:[%s6 + $0x200] sm:$0xff]
        %v2991 = vld [vmem:[%s6 + $0x208] sm:$0xff]
        %v2992 = vld [vmem:[%s6 + $0x210] sm:$0xff]
        %v2993 = vld [vmem:[%s6 + $0x218] sm:$0xff]
        %v2994 = vld [vmem:[%s6 + $0x220] sm:$0xff]
        %v2995 = vld [vmem:[%s6 + $0x228] sm:$0xff]
        %v2996 = vld [vmem:[%s6 + $0x230] sm:$0xff]
        %v2997 = vld [vmem:[%s6 + $0x238] sm:$0xff]
        %v2998 = vld [vmem:[%s6 + $0x240] sm:$0xff]
        %v2999 = vld [vmem:[%s6 + $0x248] sm:$0xff]
        %v3000 = vld [vmem:[%s6 + $0x250] sm:$0xff]
        %v3001 = vld [vmem:[%s6 + $0x258] sm:$0xff]
        %v3002 = vld [vmem:[%s6 + $0x260] sm:$0xff]
        %v3003 = vld [vmem:[%s6 + $0x268] sm:$0xff]
        %v3004 = vld [vmem:[%s6 + $0x270] sm:$0xff]
        %v3005 = vld [vmem:[%s6 + $0x278] sm:$0x3f]
        %3007 = vset.pattern.permute.xlu0 0
        %3008 = vperm.xlu0 %3007, %v2987
        %v3009 = vpop.permute.xlu0 %3008
        %3012 = vset.pattern.permute.xlu0 0
        %3013 = vperm.xlu0 %3012, %v2988
        %v3014 = vpop.permute.xlu0 %3013
        %3017 = vset.pattern.permute.xlu0 0
        %3018 = vperm.xlu0 %3017, %v2989
        %v3019 = vpop.permute.xlu0 %3018
        %3022 = vset.pattern.permute.xlu0 0
        %3023 = vperm.xlu0 %3022, %v2990
        %v3024 = vpop.permute.xlu0 %3023
        %3027 = vset.pattern.permute.xlu0 0
        %3028 = vperm.xlu0 %3027, %v2991
        %v3029 = vpop.permute.xlu0 %3028
        %3032 = vset.pattern.permute.xlu0 0
        %3033 = vperm.xlu0 %3032, %v2992
        %v3034 = vpop.permute.xlu0 %3033
        %3037 = vset.pattern.permute.xlu0 0
        %3038 = vperm.xlu0 %3037, %v2993
        %v3039 = vpop.permute.xlu0 %3038
        %3042 = vset.pattern.permute.xlu0 0
        %3043 = vperm.xlu0 %3042, %v2994
        %v3044 = vpop.permute.xlu0 %3043
        %3047 = vset.pattern.permute.xlu0 0
        %3048 = vperm.xlu0 %3047, %v2995
        %v3049 = vpop.permute.xlu0 %3048
        %3052 = vset.pattern.permute.xlu0 0
        %3053 = vperm.xlu0 %3052, %v2996
        %v3054 = vpop.permute.xlu0 %3053
        %3057 = vset.pattern.permute.xlu0 0
        %3058 = vperm.xlu0 %3057, %v2997
        %v3059 = vpop.permute.xlu0 %3058
        %3062 = vset.pattern.permute.xlu0 0
        %3063 = vperm.xlu0 %3062, %v2998
        %v3064 = vpop.permute.xlu0 %3063
        %3067 = vset.pattern.permute.xlu0 0
        %3068 = vperm.xlu0 %3067, %v2999
        %v3069 = vpop.permute.xlu0 %3068
        %3072 = vset.pattern.permute.xlu0 0
        %3073 = vperm.xlu0 %3072, %v3000
        %v3074 = vpop.permute.xlu0 %3073
        %3077 = vset.pattern.permute.xlu0 0
        %3078 = vperm.xlu0 %3077, %v3001
        %v3079 = vpop.permute.xlu0 %3078
        %3082 = vset.pattern.permute.xlu0 0
        %3083 = vperm.xlu0 %3082, %v3002
        %v3084 = vpop.permute.xlu0 %3083
        %3087 = vset.pattern.permute.xlu0 0
        %3088 = vperm.xlu0 %3087, %v3003
        %v3089 = vpop.permute.xlu0 %3088
        %3092 = vset.pattern.permute.xlu0 0
        %3093 = vperm.xlu0 %3092, %v3004
        %v3094 = vpop.permute.xlu0 %3093
        %3097 = vset.pattern.permute.xlu0 0
        %3098 = vperm.xlu0 %3097, %v3005
        %v3099 = vpop.permute.xlu0 %3098
        %v3120 = vunpack.c.l.b16 %v2928
        %v3121 = vunpack.c.h.b16 %v2928
        %v3122 = vunpack.c.l.b16 %v2929
        %v3123 = vunpack.c.h.b16 %v2929
        %v3124 = vunpack.c.l.b16 %v2930
        %v3125 = vunpack.c.h.b16 %v2930
        %v3126 = vunpack.c.l.b16 %v2931
        %v3127 = vunpack.c.h.b16 %v2931
        %v3128 = vunpack.c.l.b16 %v2932
        %v3129 = vunpack.c.h.b16 %v2932
        %v3130 = vunpack.c.l.b16 %v2933
        %v3131 = vunpack.c.h.b16 %v2933
        %v3132 = vunpack.c.l.b16 %v2934
        %v3133 = vunpack.c.h.b16 %v2934
        %v3134 = vunpack.c.l.b16 %v2935
        %v3135 = vunpack.c.h.b16 %v2935
        %v3136 = vunpack.c.l.b16 %v2936
        %v3137 = vunpack.c.h.b16 %v2936
        %v3138 = vunpack.c.l.b16 %v2937
        %v3139 = vunpack.c.h.b16 %v2937
        %v3140 = vunpack.c.l.b16 %v2938
        %v3141 = vunpack.c.h.b16 %v2938
        %v3142 = vunpack.c.l.b16 %v2939
        %v3143 = vunpack.c.h.b16 %v2939
        %v3144 = vunpack.c.l.b16 %v2940
        %v3145 = vunpack.c.h.b16 %v2940
        %v3146 = vunpack.c.l.b16 %v2941
        %v3147 = vunpack.c.h.b16 %v2941
        %v3148 = vunpack.c.l.b16 %v2942
        %v3149 = vunpack.c.h.b16 %v2942
        %v3150 = vunpack.c.l.b16 %v2943
        %v3151 = vunpack.c.h.b16 %v2943
        %v3152 = vunpack.c.l.b16 %v2944
        %v3153 = vunpack.c.h.b16 %v2944
        %v3154 = vunpack.c.l.b16 %v2945
        %v3155 = vunpack.c.h.b16 %v2945
        %v3156 = vunpack.c.l.b16 %v2946
        %v3157 = vunpack.c.h.b16 %v2946
        %v3158 = vpack.c.b16 %v3122, %v3120
        %v3159 = vpack.c.b16 %v3123, %v3121
        %v3160 = vpack.c.b16 %v3126, %v3124
        %v3161 = vpack.c.b16 %v3127, %v3125
        %v3162 = vpack.c.b16 %v3130, %v3128
        %v3163 = vpack.c.b16 %v3131, %v3129
        %v3164 = vpack.c.b16 %v3134, %v3132
        %v3165 = vpack.c.b16 %v3135, %v3133
        %v3166 = vpack.c.b16 %v3138, %v3136
        %v3167 = vpack.c.b16 %v3139, %v3137
        %v3168 = vpack.c.b16 %v3142, %v3140
        %v3169 = vpack.c.b16 %v3143, %v3141
        %v3170 = vpack.c.b16 %v3146, %v3144
        %v3171 = vpack.c.b16 %v3147, %v3145
        %v3172 = vpack.c.b16 %v3150, %v3148
        %v3173 = vpack.c.b16 %v3151, %v3149
        %v3174 = vpack.c.b16 %v3154, %v3152
        %v3175 = vpack.c.b16 %v3155, %v3153
        %v3176 = vpack.c.b16 %v3156, %v3156
        %v3177 = vpack.c.b16 %v3157, %v3157
        %v3189 = vsel %vm1600, %v3159, 0
        %v3192 = vsel %vm1600, %v3161, 0
        %v3195 = vsel %vm1600, %v3163, 0
        %v3198 = vsel %vm1600, %v3165, 0
        %v3201 = vsel %vm1600, %v3167, 0
        %v3204 = vsel %vm1600, %v3169, 0
        %v3207 = vsel %vm1600, %v3171, 0
        %v3210 = vsel %vm1600, %v3173, 0
        %v3213 = vsel %vm1600, %v3175, 0
        %v3216 = vsel %vm1600, %v3177, 0
        %v3219 = vsel %vm1631, %v2983, 0
        %v3222 = vsel %vm1631, %v2984, 0
        %v3225 = vsel %vm1631, %v2985, 0
        %v3228 = vsel %vm1631, %v2986, 0
        %3230 = vmatprep.subr.bf16.mxu0 %v2948
        %3231 = vmatpush1.bf16.msra.mxu0 %v2947
        %3232 = vmatprep.subr.bf16.mxu0 %v2952
        %3233 = vmatpush1.bf16.msra.mxu0 %v2951
        %3234 = vmatprep.subr.bf16.mxu0 %v2956
        %3235 = vmatpush1.bf16.msra.mxu0 %v2955
        %3236 = vmatprep.subr.bf16.mxu0 %v2960
        %3237 = vmatpush1.bf16.msra.mxu0 %v2959
        %3238 = vmatprep.subr.bf16.mxu0 %v2964
        %3239 = vmatpush1.bf16.msra.mxu0 %v2963
        %3240 = vmatprep.subr.bf16.mxu0 %v2968
        %3241 = vmatpush1.bf16.msra.mxu0 %v2967
        %3242 = vmatprep.subr.bf16.mxu0 %v2972
        %3243 = vmatpush1.bf16.msra.mxu0 %v2971
        %3244 = vmatprep.subr.bf16.mxu0 %v2976
        %3245 = vmatpush1.bf16.msra.mxu0 %v2975
        %3246 = vmatprep.subr.bf16.mxu0 %v2980
        %3247 = vmatpush1.bf16.msra.mxu0 %v2979
        %3248 = vmatprep.subr.bf16.mxu0 %v3222
        %3249 = vmatpush1.bf16.msra.mxu0 %v3219
        %3250 = vmatprep.subr.bf16.mxu0 0
        %3251 = vmatpush1.bf16.msra.mxu0 0
        %3252 = vmatprep.subr.bf16.mxu0 0
        %3253 = vmatpush1.bf16.msra.mxu0 0
        %3254 = vmatprep.subr.bf16.mxu0 0
        %3255 = vmatpush1.bf16.msra.mxu0 0
        %3256 = vmatprep.subr.bf16.mxu0 0
        %3257 = vmatpush1.bf16.msra.mxu0 0
        %3258 = vmatprep.subr.bf16.mxu0 0
        %3259 = vmatpush1.bf16.msra.mxu0 0
        %3260 = vmatprep.subr.bf16.mxu0 0
        %3261 = vmatpush1.bf16.msra.mxu0 0
        %3262 = vmatprep.mubr.bf16.mxu0 %v3189
        %3263 = vmatmul.mubr.bf16.gmra.mrb[0].mxu0 %v3158
        %v3264 = vpop.f32.mrb[0].mxu0
        %v3265 = vadd.f32 %v3009, %v3264
        %v3266 = vpop.f32.mrb[0].mxu0
        %v3267 = vadd.f32 %v3009, %v3266
        %v3268 = vpop.f32.mrb[0].mxu0
        %v3269 = vadd.f32 %v3014, %v3268
        %v3270 = vpop.f32.mrb[0].mxu0
        %v3271 = vadd.f32 %v3014, %v3270
        %3272 = vmatprep.mubr.bf16.mxu0 %v3192
        %3273 = vmatmul.mubr.bf16.gmra.mrb[0].mxu0 %v3160
        %v3274 = vpop.f32.mrb[0].mxu0
        %v3275 = vadd.f32 %v3019, %v3274
        %v3276 = vpop.f32.mrb[0].mxu0
        %v3277 = vadd.f32 %v3019, %v3276
        %v3278 = vpop.f32.mrb[0].mxu0
        %v3279 = vadd.f32 %v3024, %v3278
        %v3280 = vpop.f32.mrb[0].mxu0
        %v3281 = vadd.f32 %v3024, %v3280
        %3282 = vmatprep.mubr.bf16.mxu0 %v3195
        %3283 = vmatmul.mubr.bf16.gmra.mrb[0].mxu0 %v3162
        %v3284 = vpop.f32.mrb[0].mxu0
        %v3285 = vadd.f32 %v3029, %v3284
        %v3286 = vpop.f32.mrb[0].mxu0
        %v3287 = vadd.f32 %v3029, %v3286
        %v3288 = vpop.f32.mrb[0].mxu0
        %v3289 = vadd.f32 %v3034, %v3288
        %v3290 = vpop.f32.mrb[0].mxu0
        %v3291 = vadd.f32 %v3034, %v3290
        %3292 = vmatprep.mubr.bf16.mxu0 %v3198
        %3293 = vmatmul.mubr.bf16.gmra.mrb[0].mxu0 %v3164
        %v3294 = vpop.f32.mrb[0].mxu0
        %v3295 = vadd.f32 %v3039, %v3294
        %v3296 = vpop.f32.mrb[0].mxu0
        %v3297 = vadd.f32 %v3039, %v3296
        %v3298 = vpop.f32.mrb[0].mxu0
        %v3299 = vadd.f32 %v3044, %v3298
        %v3300 = vpop.f32.mrb[0].mxu0
        %v3301 = vadd.f32 %v3044, %v3300
        %3302 = vmatprep.mubr.bf16.mxu0 %v3201
        %3303 = vmatmul.mubr.bf16.gmra.mrb[0].mxu0 %v3166
        %v3304 = vpop.f32.mrb[0].mxu0
        %v3305 = vadd.f32 %v3049, %v3304
        %v3306 = vpop.f32.mrb[0].mxu0
        %v3307 = vadd.f32 %v3049, %v3306
        %v3308 = vpop.f32.mrb[0].mxu0
        %v3309 = vadd.f32 %v3054, %v3308
        %v3310 = vpop.f32.mrb[0].mxu0
        %v3311 = vadd.f32 %v3054, %v3310
        %3312 = vmatprep.mubr.bf16.mxu0 %v3204
        %3313 = vmatmul.mubr.bf16.gmra.mrb[0].mxu0 %v3168
        %v3314 = vpop.f32.mrb[0].mxu0
        %v3315 = vadd.f32 %v3059, %v3314
        %v3316 = vpop.f32.mrb[0].mxu0
        %v3317 = vadd.f32 %v3059, %v3316
        %v3318 = vpop.f32.mrb[0].mxu0
        %v3319 = vadd.f32 %v3064, %v3318
        %v3320 = vpop.f32.mrb[0].mxu0
        %v3321 = vadd.f32 %v3064, %v3320
        %3322 = vmatprep.mubr.bf16.mxu0 %v3207
        %3323 = vmatmul.mubr.bf16.gmra.mrb[0].mxu0 %v3170
        %v3324 = vpop.f32.mrb[0].mxu0
        %v3325 = vadd.f32 %v3069, %v3324
        %v3326 = vpop.f32.mrb[0].mxu0
        %v3327 = vadd.f32 %v3069, %v3326
        %v3328 = vpop.f32.mrb[0].mxu0
        %v3329 = vadd.f32 %v3074, %v3328
        %v3330 = vpop.f32.mrb[0].mxu0
        %v3331 = vadd.f32 %v3074, %v3330
        %3332 = vmatprep.mubr.bf16.mxu0 %v3210
        %3333 = vmatmul.mubr.bf16.gmra.mrb[0].mxu0 %v3172
        %v3334 = vpop.f32.mrb[0].mxu0
        %v3335 = vadd.f32 %v3079, %v3334
        %v3336 = vpop.f32.mrb[0].mxu0
        %v3337 = vadd.f32 %v3079, %v3336
        %v3338 = vpop.f32.mrb[0].mxu0
        %v3339 = vadd.f32 %v3084, %v3338
        %v3340 = vpop.f32.mrb[0].mxu0
        %v3341 = vadd.f32 %v3084, %v3340
        %3342 = vmatprep.mubr.bf16.mxu0 %v3213
        %3343 = vmatmul.mubr.bf16.gmra.mrb[0].mxu0 %v3174
        %v3344 = vpop.f32.mrb[0].mxu0
        %v3345 = vadd.f32 %v3089, %v3344
        %v3346 = vpop.f32.mrb[0].mxu0
        %v3347 = vadd.f32 %v3089, %v3346
        %v3348 = vpop.f32.mrb[0].mxu0
        %v3349 = vadd.f32 %v3094, %v3348
        %v3350 = vpop.f32.mrb[0].mxu0
        %v3351 = vadd.f32 %v3094, %v3350
        %3352 = vmatprep.mubr.bf16.mxu0 %v3216
        %3353 = vmatmul.mubr.bf16.gmra.mrb[0].mxu0 %v3176
        %v3354 = vpop.f32.mrb[0].mxu0
        %v3355 = vadd.f32 %v3099, %v3354
        %v3356 = vpop.f32.mrb[0].mxu0
        %v3357 = vadd.f32 %v3099, %v3356
        %v3358 = vpop.f32.mrb[0].mxu0
        %v3359 = vpop.f32.mrb[0].mxu0
        %3360 = vdwg.mxu0
        %3361 = vmatprep.subr.bf16.mxu0 %v2950
        %3362 = vmatpush1.bf16.msra.mxu0 %v2949
        %3363 = vmatprep.subr.bf16.mxu0 %v2954
        %3364 = vmatpush1.bf16.msra.mxu0 %v2953
        %3365 = vmatprep.subr.bf16.mxu0 %v2958
        %3366 = vmatpush1.bf16.msra.mxu0 %v2957
        %3367 = vmatprep.subr.bf16.mxu0 %v2962
        %3368 = vmatpush1.bf16.msra.mxu0 %v2961
        %3369 = vmatprep.subr.bf16.mxu0 %v2966
        %3370 = vmatpush1.bf16.msra.mxu0 %v2965
        %3371 = vmatprep.subr.bf16.mxu0 %v2970
        %3372 = vmatpush1.bf16.msra.mxu0 %v2969
        %3373 = vmatprep.subr.bf16.mxu0 %v2974
        %3374 = vmatpush1.bf16.msra.mxu0 %v2973
        %3375 = vmatprep.subr.bf16.mxu0 %v2978
        %3376 = vmatpush1.bf16.msra.mxu0 %v2977
        %3377 = vmatprep.subr.bf16.mxu0 %v2982
        %3378 = vmatpush1.bf16.msra.mxu0 %v2981
        %3379 = vmatprep.subr.bf16.mxu0 %v3228
        %3380 = vmatpush1.bf16.msra.mxu0 %v3225
        %3381 = vmatprep.subr.bf16.mxu0 0
        %3382 = vmatpush1.bf16.msra.mxu0 0
        %3383 = vmatprep.subr.bf16.mxu0 0
        %3384 = vmatpush1.bf16.msra.mxu0 0
        %3385 = vmatprep.subr.bf16.mxu0 0
        %3386 = vmatpush1.bf16.msra.mxu0 0
        %3387 = vmatprep.subr.bf16.mxu0 0
        %3388 = vmatpush1.bf16.msra.mxu0 0
        %3389 = vmatprep.subr.bf16.mxu0 0
        %3390 = vmatpush1.bf16.msra.mxu0 0
        %3391 = vmatprep.subr.bf16.mxu0 0
        %3392 = vmatpush1.bf16.msra.mxu0 0
        %3393 = vmatprep.mubr.bf16.mxu0 %v3189
        %3394 = vmatmul.mubr.bf16.gmra.mrb[0].mxu0 %v3158
        %v3395 = vpop.f32.mrb[0].mxu0
        %v3396 = vadd.f32 %v3009, %v3395
        %v3397 = vpop.f32.mrb[0].mxu0
        %v3398 = vadd.f32 %v3009, %v3397
        %v3399 = vpop.f32.mrb[0].mxu0
        %v3400 = vadd.f32 %v3014, %v3399
        %v3401 = vpop.f32.mrb[0].mxu0
        %v3402 = vadd.f32 %v3014, %v3401
        %3403 = vmatprep.mubr.bf16.mxu0 %v3192
        %3404 = vmatmul.mubr.bf16.gmra.mrb[0].mxu0 %v3160
        %v3405 = vpop.f32.mrb[0].mxu0
        %v3406 = vadd.f32 %v3019, %v3405
        %v3407 = vpop.f32.mrb[0].mxu0
        %v3408 = vadd.f32 %v3019, %v3407
        %v3409 = vpop.f32.mrb[0].mxu0
        %v3410 = vadd.f32 %v3024, %v3409
        %v3411 = vpop.f32.mrb[0].mxu0
        %v3412 = vadd.f32 %v3024, %v3411
        %3413 = vmatprep.mubr.bf16.mxu0 %v3195
        %3414 = vmatmul.mubr.bf16.gmra.mrb[0].mxu0 %v3162
        %v3415 = vpop.f32.mrb[0].mxu0
        %v3416 = vadd.f32 %v3029, %v3415
        %v3417 = vpop.f32.mrb[0].mxu0
        %v3418 = vadd.f32 %v3029, %v3417
        %v3419 = vpop.f32.mrb[0].mxu0
        %v3420 = vadd.f32 %v3034, %v3419
        %v3421 = vpop.f32.mrb[0].mxu0
        %v3422 = vadd.f32 %v3034, %v3421
        %3423 = vmatprep.mubr.bf16.mxu0 %v3198
        %3424 = vmatmul.mubr.bf16.gmra.mrb[0].mxu0 %v3164
        %v3425 = vpop.f32.mrb[0].mxu0
        %v3426 = vadd.f32 %v3039, %v3425
        %v3427 = vpop.f32.mrb[0].mxu0
        %v3428 = vadd.f32 %v3039, %v3427
        %v3429 = vpop.f32.mrb[0].mxu0
        %v3430 = vadd.f32 %v3044, %v3429
        %v3431 = vpop.f32.mrb[0].mxu0
        %v3432 = vadd.f32 %v3044, %v3431
        %3433 = vmatprep.mubr.bf16.mxu0 %v3201
        %3434 = vmatmul.mubr.bf16.gmra.mrb[0].mxu0 %v3166
        %v3435 = vpop.f32.mrb[0].mxu0
        %v3436 = vadd.f32 %v3049, %v3435
        %v3437 = vpop.f32.mrb[0].mxu0
        %v3438 = vadd.f32 %v3049, %v3437
        %v3439 = vpop.f32.mrb[0].mxu0
        %v3440 = vadd.f32 %v3054, %v3439
        %v3441 = vpop.f32.mrb[0].mxu0
        %v3442 = vadd.f32 %v3054, %v3441
        %3443 = vmatprep.mubr.bf16.mxu0 %v3204
        %3444 = vmatmul.mubr.bf16.gmra.mrb[0].mxu0 %v3168
        %v3445 = vpop.f32.mrb[0].mxu0
        %v3446 = vadd.f32 %v3059, %v3445
        %v3447 = vpop.f32.mrb[0].mxu0
        %v3448 = vadd.f32 %v3059, %v3447
        %v3449 = vpop.f32.mrb[0].mxu0
        %v3450 = vadd.f32 %v3064, %v3449
        %v3451 = vpop.f32.mrb[0].mxu0
        %v3452 = vadd.f32 %v3064, %v3451
        %3453 = vmatprep.mubr.bf16.mxu0 %v3207
        %3454 = vmatmul.mubr.bf16.gmra.mrb[0].mxu0 %v3170
        %v3455 = vpop.f32.mrb[0].mxu0
        %v3456 = vadd.f32 %v3069, %v3455
        %v3457 = vpop.f32.mrb[0].mxu0
        %v3458 = vadd.f32 %v3069, %v3457
        %v3459 = vpop.f32.mrb[0].mxu0
        %v3460 = vadd.f32 %v3074, %v3459
        %v3461 = vpop.f32.mrb[0].mxu0
        %v3462 = vadd.f32 %v3074, %v3461
        %3463 = vmatprep.mubr.bf16.mxu0 %v3210
        %3464 = vmatmul.mubr.bf16.gmra.mrb[0].mxu0 %v3172
        %v3465 = vpop.f32.mrb[0].mxu0
        %v3466 = vadd.f32 %v3079, %v3465
        %v3467 = vpop.f32.mrb[0].mxu0
        %v3468 = vadd.f32 %v3079, %v3467
        %v3469 = vpop.f32.mrb[0].mxu0
        %v3470 = vadd.f32 %v3084, %v3469
        %v3471 = vpop.f32.mrb[0].mxu0
        %v3472 = vadd.f32 %v3084, %v3471
        %3473 = vmatprep.mubr.bf16.mxu0 %v3213
        %3474 = vmatmul.mubr.bf16.gmra.mrb[0].mxu0 %v3174
        %v3475 = vpop.f32.mrb[0].mxu0
        %v3476 = vadd.f32 %v3089, %v3475
        %v3477 = vpop.f32.mrb[0].mxu0
        %v3478 = vadd.f32 %v3089, %v3477
        %v3479 = vpop.f32.mrb[0].mxu0
        %v3480 = vadd.f32 %v3094, %v3479
        %v3481 = vpop.f32.mrb[0].mxu0
        %v3482 = vadd.f32 %v3094, %v3481
        %3483 = vmatprep.mubr.bf16.mxu0 %v3216
        %3484 = vmatmul.mubr.bf16.gmra.mrb[0].mxu0 %v3176
        %v3485 = vpop.f32.mrb[0].mxu0
        %v3486 = vadd.f32 %v3099, %v3485
        %v3487 = vpop.f32.mrb[0].mxu0
        %v3488 = vadd.f32 %v3099, %v3487
        %v3489 = vpop.f32.mrb[0].mxu0
        %v3490 = vpop.f32.mrb[0].mxu0
        %3491 = vdwg.mxu0
        %vm3492 = vcmp.ge.f32.partialorder %v3265, 0.0
        %vm3493 = vcmp.ge.f32.partialorder %v3267, 0.0
        %vm3494 = vcmp.ge.f32.partialorder %v3396, 0.0
        %vm3495 = vcmp.ge.f32.partialorder %v3398, 0.0
        %vm3496 = vcmp.ge.f32.partialorder %v3269, 0.0
        %vm3497 = vcmp.ge.f32.partialorder %v3271, 0.0
        %vm3498 = vcmp.ge.f32.partialorder %v3400, 0.0
        %vm3499 = vcmp.ge.f32.partialorder %v3402, 0.0
        %vm3500 = vcmp.ge.f32.partialorder %v3275, 0.0
        %vm3501 = vcmp.ge.f32.partialorder %v3277, 0.0
        %vm3502 = vcmp.ge.f32.partialorder %v3406, 0.0
        %vm3503 = vcmp.ge.f32.partialorder %v3408, 0.0
        %vm3504 = vcmp.ge.f32.partialorder %v3279, 0.0
        %vm3505 = vcmp.ge.f32.partialorder %v3281, 0.0
        %vm3506 = vcmp.ge.f32.partialorder %v3410, 0.0
        %vm3507 = vcmp.ge.f32.partialorder %v3412, 0.0
        %vm3508 = vcmp.ge.f32.partialorder %v3285, 0.0
        %vm3509 = vcmp.ge.f32.partialorder %v3287, 0.0
        %vm3510 = vcmp.ge.f32.partialorder %v3416, 0.0
        %vm3511 = vcmp.ge.f32.partialorder %v3418, 0.0
        %vm3512 = vcmp.ge.f32.partialorder %v3289, 0.0
        %vm3513 = vcmp.ge.f32.partialorder %v3291, 0.0
        %vm3514 = vcmp.ge.f32.partialorder %v3420, 0.0
        %vm3515 = vcmp.ge.f32.partialorder %v3422, 0.0
        %vm3516 = vcmp.ge.f32.partialorder %v3295, 0.0
        %vm3517 = vcmp.ge.f32.partialorder %v3297, 0.0
        %vm3518 = vcmp.ge.f32.partialorder %v3426, 0.0
        %vm3519 = vcmp.ge.f32.partialorder %v3428, 0.0
        %vm3520 = vcmp.ge.f32.partialorder %v3299, 0.0
        %vm3521 = vcmp.ge.f32.partialorder %v3301, 0.0
        %vm3522 = vcmp.ge.f32.partialorder %v3430, 0.0
        %vm3523 = vcmp.ge.f32.partialorder %v3432, 0.0
        %vm3524 = vcmp.ge.f32.partialorder %v3305, 0.0
        %vm3525 = vcmp.ge.f32.partialorder %v3307, 0.0
        %vm3526 = vcmp.ge.f32.partialorder %v3436, 0.0
        %vm3527 = vcmp.ge.f32.partialorder %v3438, 0.0
        %vm3528 = vcmp.ge.f32.partialorder %v3309, 0.0
        %vm3529 = vcmp.ge.f32.partialorder %v3311, 0.0
        %vm3530 = vcmp.ge.f32.partialorder %v3440, 0.0
        %vm3531 = vcmp.ge.f32.partialorder %v3442, 0.0
        %vm3532 = vcmp.ge.f32.partialorder %v3315, 0.0
        %vm3533 = vcmp.ge.f32.partialorder %v3317, 0.0
        %vm3534 = vcmp.ge.f32.partialorder %v3446, 0.0
        %vm3535 = vcmp.ge.f32.partialorder %v3448, 0.0
        %vm3536 = vcmp.ge.f32.partialorder %v3319, 0.0
        %vm3537 = vcmp.ge.f32.partialorder %v3321, 0.0
        %vm3538 = vcmp.ge.f32.partialorder %v3450, 0.0
        %vm3539 = vcmp.ge.f32.partialorder %v3452, 0.0
        %vm3540 = vcmp.ge.f32.partialorder %v3325, 0.0
        %vm3541 = vcmp.ge.f32.partialorder %v3327, 0.0
        %vm3542 = vcmp.ge.f32.partialorder %v3456, 0.0
        %vm3543 = vcmp.ge.f32.partialorder %v3458, 0.0
        %vm3544 = vcmp.ge.f32.partialorder %v3329, 0.0
        %vm3545 = vcmp.ge.f32.partialorder %v3331, 0.0
        %vm3546 = vcmp.ge.f32.partialorder %v3460, 0.0
        %vm3547 = vcmp.ge.f32.partialorder %v3462, 0.0
        %vm3548 = vcmp.ge.f32.partialorder %v3335, 0.0
        %vm3549 = vcmp.ge.f32.partialorder %v3337, 0.0
        %vm3550 = vcmp.ge.f32.partialorder %v3466, 0.0
        %vm3551 = vcmp.ge.f32.partialorder %v3468, 0.0
        %vm3552 = vcmp.ge.f32.partialorder %v3339, 0.0
        %vm3553 = vcmp.ge.f32.partialorder %v3341, 0.0
        %vm3554 = vcmp.ge.f32.partialorder %v3470, 0.0
        %vm3555 = vcmp.ge.f32.partialorder %v3472, 0.0
        %vm3556 = vcmp.ge.f32.partialorder %v3345, 0.0
        %vm3557 = vcmp.ge.f32.partialorder %v3347, 0.0
        %vm3558 = vcmp.ge.f32.partialorder %v3476, 0.0
        %vm3559 = vcmp.ge.f32.partialorder %v3478, 0.0
        %vm3560 = vcmp.ge.f32.partialorder %v3349, 0.0
        %vm3561 = vcmp.ge.f32.partialorder %v3351, 0.0
        %vm3562 = vcmp.ge.f32.partialorder %v3480, 0.0
        %vm3563 = vcmp.ge.f32.partialorder %v3482, 0.0
        %vm3564 = vcmp.ge.f32.partialorder %v3355, 0.0
        %vm3565 = vcmp.ge.f32.partialorder %v3357, 0.0
        %vm3566 = vcmp.ge.f32.partialorder %v3486, 0.0
        %vm3567 = vcmp.ge.f32.partialorder %v3488, 0.0
        %v3568 = vmul.f32 %v3265, 0.01
        %v3569 = vmul.f32 %v3267, 0.01
        %v3570 = vmul.f32 %v3396, 0.01
        %v3571 = vmul.f32 %v3398, 0.01
        %v3572 = vmul.f32 %v3269, 0.01
        %v3573 = vmul.f32 %v3271, 0.01
        %v3574 = vmul.f32 %v3400, 0.01
        %v3575 = vmul.f32 %v3402, 0.01
        %v3576 = vmul.f32 %v3275, 0.01
        %v3577 = vmul.f32 %v3277, 0.01
        %v3578 = vmul.f32 %v3406, 0.01
        %v3579 = vmul.f32 %v3408, 0.01
        %v3580 = vmul.f32 %v3279, 0.01
        %v3581 = vmul.f32 %v3281, 0.01
        %v3582 = vmul.f32 %v3410, 0.01
        %v3583 = vmul.f32 %v3412, 0.01
        %v3584 = vmul.f32 %v3285, 0.01
        %v3585 = vmul.f32 %v3287, 0.01
        %v3586 = vmul.f32 %v3416, 0.01
        %v3587 = vmul.f32 %v3418, 0.01
        %v3588 = vmul.f32 %v3289, 0.01
        %v3589 = vmul.f32 %v3291, 0.01
        %v3590 = vmul.f32 %v3420, 0.01
        %v3591 = vmul.f32 %v3422, 0.01
        %v3592 = vmul.f32 %v3295, 0.01
        %v3593 = vmul.f32 %v3297, 0.01
        %v3594 = vmul.f32 %v3426, 0.01
        %v3595 = vmul.f32 %v3428, 0.01
        %v3596 = vmul.f32 %v3299, 0.01
        %v3597 = vmul.f32 %v3301, 0.01
        %v3598 = vmul.f32 %v3430, 0.01
        %v3599 = vmul.f32 %v3432, 0.01
        %v3600 = vmul.f32 %v3305, 0.01
        %v3601 = vmul.f32 %v3307, 0.01
        %v3602 = vmul.f32 %v3436, 0.01
        %v3603 = vmul.f32 %v3438, 0.01
        %v3604 = vmul.f32 %v3309, 0.01
        %v3605 = vmul.f32 %v3311, 0.01
        %v3606 = vmul.f32 %v3440, 0.01
        %v3607 = vmul.f32 %v3442, 0.01
        %v3608 = vmul.f32 %v3315, 0.01
        %v3609 = vmul.f32 %v3317, 0.01
        %v3610 = vmul.f32 %v3446, 0.01
        %v3611 = vmul.f32 %v3448, 0.01
        %v3612 = vmul.f32 %v3319, 0.01
        %v3613 = vmul.f32 %v3321, 0.01
        %v3614 = vmul.f32 %v3450, 0.01
        %v3615 = vmul.f32 %v3452, 0.01
        %v3616 = vmul.f32 %v3325, 0.01
        %v3617 = vmul.f32 %v3327, 0.01
        %v3618 = vmul.f32 %v3456, 0.01
        %v3619 = vmul.f32 %v3458, 0.01
        %v3620 = vmul.f32 %v3329, 0.01
        %v3621 = vmul.f32 %v3331, 0.01
        %v3622 = vmul.f32 %v3460, 0.01
        %v3623 = vmul.f32 %v3462, 0.01
        %v3624 = vmul.f32 %v3335, 0.01
        %v3625 = vmul.f32 %v3337, 0.01
        %v3626 = vmul.f32 %v3466, 0.01
        %v3627 = vmul.f32 %v3468, 0.01
        %v3628 = vmul.f32 %v3339, 0.01
        %v3629 = vmul.f32 %v3341, 0.01
        %v3630 = vmul.f32 %v3470, 0.01
        %v3631 = vmul.f32 %v3472, 0.01
        %v3632 = vmul.f32 %v3345, 0.01
        %v3633 = vmul.f32 %v3347, 0.01
        %v3634 = vmul.f32 %v3476, 0.01
        %v3635 = vmul.f32 %v3478, 0.01
        %v3636 = vmul.f32 %v3349, 0.01
        %v3637 = vmul.f32 %v3351, 0.01
        %v3638 = vmul.f32 %v3480, 0.01
        %v3639 = vmul.f32 %v3482, 0.01
        %v3640 = vmul.f32 %v3355, 0.01
        %v3641 = vmul.f32 %v3357, 0.01
        %v3642 = vmul.f32 %v3486, 0.01
        %v3643 = vmul.f32 %v3488, 0.01
        %v3644 = vsel %vm3492, %v3265, %v3568
        %v3645 = vsel %vm3493, %v3267, %v3569
        %v3646 = vsel %vm3494, %v3396, %v3570
        %v3647 = vsel %vm3495, %v3398, %v3571
        %v3648 = vsel %vm3496, %v3269, %v3572
        %v3649 = vsel %vm3497, %v3271, %v3573
        %v3650 = vsel %vm3498, %v3400, %v3574
        %v3651 = vsel %vm3499, %v3402, %v3575
        %v3652 = vsel %vm3500, %v3275, %v3576
        %v3653 = vsel %vm3501, %v3277, %v3577
        %v3654 = vsel %vm3502, %v3406, %v3578
        %v3655 = vsel %vm3503, %v3408, %v3579
        %v3656 = vsel %vm3504, %v3279, %v3580
        %v3657 = vsel %vm3505, %v3281, %v3581
        %v3658 = vsel %vm3506, %v3410, %v3582
        %v3659 = vsel %vm3507, %v3412, %v3583
        %v3660 = vsel %vm3508, %v3285, %v3584
        %v3661 = vsel %vm3509, %v3287, %v3585
        %v3662 = vsel %vm3510, %v3416, %v3586
        %v3663 = vsel %vm3511, %v3418, %v3587
        %v3664 = vsel %vm3512, %v3289, %v3588
        %v3665 = vsel %vm3513, %v3291, %v3589
        %v3666 = vsel %vm3514, %v3420, %v3590
        %v3667 = vsel %vm3515, %v3422, %v3591
        %v3668 = vsel %vm3516, %v3295, %v3592
        %v3669 = vsel %vm3517, %v3297, %v3593
        %v3670 = vsel %vm3518, %v3426, %v3594
        %v3671 = vsel %vm3519, %v3428, %v3595
        %v3672 = vsel %vm3520, %v3299, %v3596
        %v3673 = vsel %vm3521, %v3301, %v3597
        %v3674 = vsel %vm3522, %v3430, %v3598
        %v3675 = vsel %vm3523, %v3432, %v3599
        %v3676 = vsel %vm3524, %v3305, %v3600
        %v3677 = vsel %vm3525, %v3307, %v3601
        %v3678 = vsel %vm3526, %v3436, %v3602
        %v3679 = vsel %vm3527, %v3438, %v3603
        %v3680 = vsel %vm3528, %v3309, %v3604
        %v3681 = vsel %vm3529, %v3311, %v3605
        %v3682 = vsel %vm3530, %v3440, %v3606
        %v3683 = vsel %vm3531, %v3442, %v3607
        %v3684 = vsel %vm3532, %v3315, %v3608
        %v3685 = vsel %vm3533, %v3317, %v3609
        %v3686 = vsel %vm3534, %v3446, %v3610
        %v3687 = vsel %vm3535, %v3448, %v3611
        %v3688 = vsel %vm3536, %v3319, %v3612
        %v3689 = vsel %vm3537, %v3321, %v3613
        %v3690 = vsel %vm3538, %v3450, %v3614
        %v3691 = vsel %vm3539, %v3452, %v3615
        %v3692 = vsel %vm3540, %v3325, %v3616
        %v3693 = vsel %vm3541, %v3327, %v3617
        %v3694 = vsel %vm3542, %v3456, %v3618
        %v3695 = vsel %vm3543, %v3458, %v3619
        %v3696 = vsel %vm3544, %v3329, %v3620
        %v3697 = vsel %vm3545, %v3331, %v3621
        %v3698 = vsel %vm3546, %v3460, %v3622
        %v3699 = vsel %vm3547, %v3462, %v3623
        %v3700 = vsel %vm3548, %v3335, %v3624
        %v3701 = vsel %vm3549, %v3337, %v3625
        %v3702 = vsel %vm3550, %v3466, %v3626
        %v3703 = vsel %vm3551, %v3468, %v3627
        %v3704 = vsel %vm3552, %v3339, %v3628
        %v3705 = vsel %vm3553, %v3341, %v3629
        %v3706 = vsel %vm3554, %v3470, %v3630
        %v3707 = vsel %vm3555, %v3472, %v3631
        %v3708 = vsel %vm3556, %v3345, %v3632
        %v3709 = vsel %vm3557, %v3347, %v3633
        %v3710 = vsel %vm3558, %v3476, %v3634
        %v3711 = vsel %vm3559, %v3478, %v3635
        %v3712 = vsel %vm3560, %v3349, %v3636
        %v3713 = vsel %vm3561, %v3351, %v3637
        %v3714 = vsel %vm3562, %v3480, %v3638
        %v3715 = vsel %vm3563, %v3482, %v3639
        %v3716 = vsel %vm3564, %v3355, %v3640
        %v3717 = vsel %vm3565, %v3357, %v3641
        %v3718 = vsel %vm3566, %v3486, %v3642
        %v3719 = vsel %vm3567, %v3488, %v3643
        %v3720 = vld [vmem:[%s4] sm:$0xff]
        %v3721 = vld [vmem:[%s4 + $0x8] sm:$0xff]
        %v3722 = vld [vmem:[%s4 + $0x10] sm:$0xff]
        %v3723 = vld [vmem:[%s4 + $0x18] sm:$0x77]
        %v3724 = vpack.c.bf16 %v3648, %v3644
        %v3725 = vpack.c.bf16 %v3649, %v3645
        %v3726 = vpack.c.bf16 %v3650, %v3646
        %v3727 = vpack.c.bf16 %v3651, %v3647
        %v3728 = vpack.c.bf16 %v3656, %v3652
        %v3729 = vpack.c.bf16 %v3657, %v3653
        %v3730 = vpack.c.bf16 %v3658, %v3654
        %v3731 = vpack.c.bf16 %v3659, %v3655
        %v3732 = vpack.c.bf16 %v3664, %v3660
        %v3733 = vpack.c.bf16 %v3665, %v3661
        %v3734 = vpack.c.bf16 %v3666, %v3662
        %v3735 = vpack.c.bf16 %v3667, %v3663
        %v3736 = vpack.c.bf16 %v3672, %v3668
        %v3737 = vpack.c.bf16 %v3673, %v3669
        %v3738 = vpack.c.bf16 %v3674, %v3670
        %v3739 = vpack.c.bf16 %v3675, %v3671
        %v3740 = vpack.c.bf16 %v3680, %v3676
        %v3741 = vpack.c.bf16 %v3681, %v3677
        %v3742 = vpack.c.bf16 %v3682, %v3678
        %v3743 = vpack.c.bf16 %v3683, %v3679
        %v3744 = vpack.c.bf16 %v3688, %v3684
        %v3745 = vpack.c.bf16 %v3689, %v3685
        %v3746 = vpack.c.bf16 %v3690, %v3686
        %v3747 = vpack.c.bf16 %v3691, %v3687
        %v3748 = vpack.c.bf16 %v3696, %v3692
        %v3749 = vpack.c.bf16 %v3697, %v3693
        %v3750 = vpack.c.bf16 %v3698, %v3694
        %v3751 = vpack.c.bf16 %v3699, %v3695
        %v3752 = vpack.c.bf16 %v3704, %v3700
        %v3753 = vpack.c.bf16 %v3705, %v3701
        %v3754 = vpack.c.bf16 %v3706, %v3702
        %v3755 = vpack.c.bf16 %v3707, %v3703
        %v3756 = vpack.c.bf16 %v3712, %v3708
        %v3757 = vpack.c.bf16 %v3713, %v3709
        %v3758 = vpack.c.bf16 %v3714, %v3710
        %v3759 = vpack.c.bf16 %v3715, %v3711
        %v3760 = vpack.c.bf16 %v3716, %v3716
        %v3761 = vpack.c.bf16 %v3717, %v3717
        %v3762 = vpack.c.bf16 %v3718, %v3718
        %v3763 = vpack.c.bf16 %v3719, %v3719
        %v3764 = vld [vmem:[%s6 + $0x280] sm:$0xff]
        %v3765 = vld [vmem:[%s6 + $0x288] sm:$0xff]
        %v3766 = vld [vmem:[%s6 + $0x290] sm:$0xff]
        %v3767 = vld [vmem:[%s6 + $0x298] sm:$0x3f]
        %3769 = vset.pattern.permute.xlu0 0
        %3770 = vperm.xlu0 %3769, %v3764
        %v3771 = vpop.permute.xlu0 %3770
        %3774 = vset.pattern.permute.xlu0 0
        %3775 = vperm.xlu0 %3774, %v3765
        %v3776 = vpop.permute.xlu0 %3775
        %3779 = vset.pattern.permute.xlu0 0
        %3780 = vperm.xlu0 %3779, %v3766
        %v3781 = vpop.permute.xlu0 %3780
        %3784 = vset.pattern.permute.xlu0 0
        %3785 = vperm.xlu0 %3784, %v3767
        %v3786 = vpop.permute.xlu0 %3785
        %v3792 = vunpack.c.l.b16 %v3720
        %v3793 = vunpack.c.h.b16 %v3720
        %v3794 = vunpack.c.l.b16 %v3721
        %v3795 = vunpack.c.h.b16 %v3721
        %v3796 = vunpack.c.l.b16 %v3722
        %v3797 = vunpack.c.h.b16 %v3722
        %v3798 = vunpack.c.l.b16 %v3723
        %v3799 = vunpack.c.h.b16 %v3723
        %v3800 = vpack.c.b16 %v3794, %v3792
        %v3801 = vpack.c.b16 %v3795, %v3793
        %v3802 = vpack.c.b16 %v3798, %v3796
        %v3803 = vpack.c.b16 %v3799, %v3797
        %v3807 = vsel %vm1600, %v3801, 0
        %v3810 = vsel %vm1600, %v3803, 0
        %v3813 = vsel %vm1631, %v3760, 0
        %v3816 = vsel %vm1631, %v3761, 0
        %v3819 = vsel %vm1631, %v3762, 0
        %v3822 = vsel %vm1631, %v3763, 0
        %3824 = vmatprep.subr.bf16.mxu0 %v3725
        %3825 = vmatpush1.bf16.msra.mxu0 %v3724
        %3826 = vmatprep.subr.bf16.mxu0 %v3729
        %3827 = vmatpush1.bf16.msra.mxu0 %v3728
        %3828 = vmatprep.subr.bf16.mxu0 %v3733
        %3829 = vmatpush1.bf16.msra.mxu0 %v3732
        %3830 = vmatprep.subr.bf16.mxu0 %v3737
        %3831 = vmatpush1.bf16.msra.mxu0 %v3736
        %3832 = vmatprep.subr.bf16.mxu0 %v3741
        %3833 = vmatpush1.bf16.msra.mxu0 %v3740
        %3834 = vmatprep.subr.bf16.mxu0 %v3745
        %3835 = vmatpush1.bf16.msra.mxu0 %v3744
        %3836 = vmatprep.subr.bf16.mxu0 %v3749
        %3837 = vmatpush1.bf16.msra.mxu0 %v3748
        %3838 = vmatprep.subr.bf16.mxu0 %v3753
        %3839 = vmatpush1.bf16.msra.mxu0 %v3752
        %3840 = vmatprep.subr.bf16.mxu0 %v3757
        %3841 = vmatpush1.bf16.msra.mxu0 %v3756
        %3842 = vmatprep.subr.bf16.mxu0 %v3816
        %3843 = vmatpush1.bf16.msra.mxu0 %v3813
        %3844 = vmatprep.subr.bf16.mxu0 0
        %3845 = vmatpush1.bf16.msra.mxu0 0
        %3846 = vmatprep.subr.bf16.mxu0 0
        %3847 = vmatpush1.bf16.msra.mxu0 0
        %3848 = vmatprep.subr.bf16.mxu0 0
        %3849 = vmatpush1.bf16.msra.mxu0 0
        %3850 = vmatprep.subr.bf16.mxu0 0
        %3851 = vmatpush1.bf16.msra.mxu0 0
        %3852 = vmatprep.subr.bf16.mxu0 0
        %3853 = vmatpush1.bf16.msra.mxu0 0
        %3854 = vmatprep.subr.bf16.mxu0 0
        %3855 = vmatpush1.bf16.msra.mxu0 0
        %3856 = vmatprep.mubr.bf16.mxu0 %v3807
        %3857 = vmatmul.mubr.bf16.gmra.mrb[0].mxu0 %v3800
        %v3858 = vpop.f32.mrb[0].mxu0
        %v3859 = vadd.f32 %v3771, %v3858
        %v3860 = vpop.f32.mrb[0].mxu0
        %v3861 = vadd.f32 %v3771, %v3860
        %v3862 = vpop.f32.mrb[0].mxu0
        %v3863 = vadd.f32 %v3776, %v3862
        %v3864 = vpop.f32.mrb[0].mxu0
        %v3865 = vadd.f32 %v3776, %v3864
        %3866 = vmatprep.mubr.bf16.mxu0 %v3810
        %3867 = vmatmul.mubr.bf16.gmra.mrb[0].mxu0 %v3802
        %v3868 = vpop.f32.mrb[0].mxu0
        %v3869 = vadd.f32 %v3781, %v3868
        %v3870 = vpop.f32.mrb[0].mxu0
        %v3871 = vadd.f32 %v3781, %v3870
        %v3872 = vpop.f32.mrb[0].mxu0
        %v3873 = vadd.f32 %v3786, %v3872
        %v3874 = vpop.f32.mrb[0].mxu0
        %v3875 = vadd.f32 %v3786, %v3874
        %3876 = vdwg.mxu0
        %3877 = vmatprep.subr.bf16.mxu0 %v3727
        %3878 = vmatpush1.bf16.msra.mxu0 %v3726
        %3879 = vmatprep.subr.bf16.mxu0 %v3731
        %3880 = vmatpush1.bf16.msra.mxu0 %v3730
        %3881 = vmatprep.subr.bf16.mxu0 %v3735
        %3882 = vmatpush1.bf16.msra.mxu0 %v3734
        %3883 = vmatprep.subr.bf16.mxu0 %v3739
        %3884 = vmatpush1.bf16.msra.mxu0 %v3738
        %3885 = vmatprep.subr.bf16.mxu0 %v3743
        %3886 = vmatpush1.bf16.msra.mxu0 %v3742
        %3887 = vmatprep.subr.bf16.mxu0 %v3747
        %3888 = vmatpush1.bf16.msra.mxu0 %v3746
        %3889 = vmatprep.subr.bf16.mxu0 %v3751
        %3890 = vmatpush1.bf16.msra.mxu0 %v3750
        %3891 = vmatprep.subr.bf16.mxu0 %v3755
        %3892 = vmatpush1.bf16.msra.mxu0 %v3754
        %3893 = vmatprep.subr.bf16.mxu0 %v3759
        %3894 = vmatpush1.bf16.msra.mxu0 %v3758
        %3895 = vmatprep.subr.bf16.mxu0 %v3822
        %3896 = vmatpush1.bf16.msra.mxu0 %v3819
        %3897 = vmatprep.subr.bf16.mxu0 0
        %3898 = vmatpush1.bf16.msra.mxu0 0
        %3899 = vmatprep.subr.bf16.mxu0 0
        %3900 = vmatpush1.bf16.msra.mxu0 0
        %3901 = vmatprep.subr.bf16.mxu0 0
        %3902 = vmatpush1.bf16.msra.mxu0 0
        %3903 = vmatprep.subr.bf16.mxu0 0
        %3904 = vmatpush1.bf16.msra.mxu0 0
        %3905 = vmatprep.subr.bf16.mxu0 0
        %3906 = vmatpush1.bf16.msra.mxu0 0
        %3907 = vmatprep.subr.bf16.mxu0 0
        %3908 = vmatpush1.bf16.msra.mxu0 0
        %3909 = vmatprep.mubr.bf16.mxu0 %v3807
        %3910 = vmatmul.mubr.bf16.gmra.mrb[0].mxu0 %v3800
        %v3911 = vpop.f32.mrb[0].mxu0
        %v3912 = vadd.f32 %v3771, %v3911
        %v3913 = vpop.f32.mrb[0].mxu0
        %v3914 = vadd.f32 %v3771, %v3913
        %v3915 = vpop.f32.mrb[0].mxu0
        %v3916 = vadd.f32 %v3776, %v3915
        %v3917 = vpop.f32.mrb[0].mxu0
        %v3918 = vadd.f32 %v3776, %v3917
        %3919 = vmatprep.mubr.bf16.mxu0 %v3810
        %3920 = vmatmul.mubr.bf16.gmra.mrb[0].mxu0 %v3802
        %v3921 = vpop.f32.mrb[0].mxu0
        %v3922 = vadd.f32 %v3781, %v3921
        %v3923 = vpop.f32.mrb[0].mxu0
        %v3924 = vadd.f32 %v3781, %v3923
        %v3925 = vpop.f32.mrb[0].mxu0
        %v3926 = vadd.f32 %v3786, %v3925
        %v3927 = vpop.f32.mrb[0].mxu0
        %v3928 = vadd.f32 %v3786, %v3927
        %3929 = vdwg.mxu0
        %vm3930 = vcmp.ge.f32.partialorder %v3859, 0.0
        %vm3931 = vcmp.ge.f32.partialorder %v3861, 0.0
        %vm3932 = vcmp.ge.f32.partialorder %v3912, 0.0
        %vm3933 = vcmp.ge.f32.partialorder %v3914, 0.0
        %vm3934 = vcmp.ge.f32.partialorder %v3863, 0.0
        %vm3935 = vcmp.ge.f32.partialorder %v3865, 0.0
        %vm3936 = vcmp.ge.f32.partialorder %v3916, 0.0
        %vm3937 = vcmp.ge.f32.partialorder %v3918, 0.0
        %vm3938 = vcmp.ge.f32.partialorder %v3869, 0.0
        %vm3939 = vcmp.ge.f32.partialorder %v3871, 0.0
        %vm3940 = vcmp.ge.f32.partialorder %v3922, 0.0
        %vm3941 = vcmp.ge.f32.partialorder %v3924, 0.0
        %vm3942 = vcmp.ge.f32.partialorder %v3873, 0.0
        %vm3943 = vcmp.ge.f32.partialorder %v3875, 0.0
        %vm3944 = vcmp.ge.f32.partialorder %v3926, 0.0
        %vm3945 = vcmp.ge.f32.partialorder %v3928, 0.0
        %v3946 = vmul.f32 %v3859, 0.01
        %v3947 = vmul.f32 %v3861, 0.01
        %v3948 = vmul.f32 %v3912, 0.01
        %v3949 = vmul.f32 %v3914, 0.01
        %v3950 = vmul.f32 %v3863, 0.01
        %v3951 = vmul.f32 %v3865, 0.01
        %v3952 = vmul.f32 %v3916, 0.01
        %v3953 = vmul.f32 %v3918, 0.01
        %v3954 = vmul.f32 %v3869, 0.01
        %v3955 = vmul.f32 %v3871, 0.01
        %v3956 = vmul.f32 %v3922, 0.01
        %v3957 = vmul.f32 %v3924, 0.01
        %v3958 = vmul.f32 %v3873, 0.01
        %v3959 = vmul.f32 %v3875, 0.01
        %v3960 = vmul.f32 %v3926, 0.01
        %v3961 = vmul.f32 %v3928, 0.01
        %v3962 = vsel %vm3930, %v3859, %v3946
        %v3963 = vsel %vm3931, %v3861, %v3947
        %v3964 = vsel %vm3932, %v3912, %v3948
        %v3965 = vsel %vm3933, %v3914, %v3949
        %v3966 = vsel %vm3934, %v3863, %v3950
        %v3967 = vsel %vm3935, %v3865, %v3951
        %v3968 = vsel %vm3936, %v3916, %v3952
        %v3969 = vsel %vm3937, %v3918, %v3953
        %v3970 = vsel %vm3938, %v3869, %v3954
        %v3971 = vsel %vm3939, %v3871, %v3955
        %v3972 = vsel %vm3940, %v3922, %v3956
        %v3973 = vsel %vm3941, %v3924, %v3957
        %v3974 = vsel %vm3942, %v3873, %v3958
        %v3975 = vsel %vm3943, %v3875, %v3959
        %v3976 = vsel %vm3944, %v3926, %v3960
        %v3977 = vsel %vm3945, %v3928, %v3961
        %v3978 = vld [vmem:[%s5] sm:$0x7]
        %v3979 = vld [vmem:[%s6 + $0x2a0] sm:$0x7]
        %3981 = vset.pattern.permute.xlu0 0
        %3982 = vperm.xlu0 %3981, %v3978
        %v3983 = vpop.permute.xlu0 %3982
        %v3985 = vlaneseq
        %v3986 = vshrl.u32 %v3985, 7
        %v3987 = vsub.s32 0, %v3986
        %v3988 = vrot.slane %v3962, %v3987
        %v3989 = vlaneseq
        %v3990 = vshrl.u32 %v3989, 7
        %v3991 = vsub.s32 0, %v3990
        %v3992 = vrot.slane %v3963, %v3991
        %v3993 = vlaneseq
        %v3994 = vshrl.u32 %v3993, 7
        %v3995 = vsub.s32 0, %v3994
        %v3996 = vrot.slane %v3964, %v3995
        %v3997 = vlaneseq
        %v3998 = vshrl.u32 %v3997, 7
        %v3999 = vsub.s32 0, %v3998
        %v4000 = vrot.slane %v3965, %v3999
        %v4001 = vmul.f32 %v3983, %v3988
        %v4002 = vmul.f32 %v3983, %v3992
        %v4003 = vmul.f32 %v3983, %v3996
        %v4004 = vmul.f32 %v3983, %v4000
        %4006 = vset.pattern.permute.xlu0 0
        %4007 = vperm.xlu0 %4006, %v3979
        %v4008 = vpop.permute.xlu0 %4007
        %v4010 = vadd.f32 %v4008, %v4001
        %v4011 = vadd.f32 %v4008, %v4002
        %v4012 = vadd.f32 %v4008, %v4003
        %v4013 = vadd.f32 %v4008, %v4004
        %4014 = vset.pattern.permute.xlu0 1
        %4015 = vperm.xlu0 %4014, %v3978
        %v4016 = vpop.permute.xlu0 %4015
        %v4018 = vlaneseq
        %v4019 = vshrl.u32 %v4018, 7
        %v4020 = vsub.s32 1, %v4019
        %v4021 = vrot.slane %v3962, %v4020
        %v4022 = vlaneseq
        %v4023 = vshrl.u32 %v4022, 7
        %v4024 = vsub.s32 1, %v4023
        %v4025 = vrot.slane %v3963, %v4024
        %v4026 = vlaneseq
        %v4027 = vshrl.u32 %v4026, 7
        %v4028 = vsub.s32 1, %v4027
        %v4029 = vrot.slane %v3964, %v4028
        %v4030 = vlaneseq
        %v4031 = vshrl.u32 %v4030, 7
        %v4032 = vsub.s32 1, %v4031
        %v4033 = vrot.slane %v3965, %v4032
        %v4034 = vmul.f32 %v4016, %v4021
        %v4035 = vmul.f32 %v4016, %v4025
        %v4036 = vmul.f32 %v4016, %v4029
        %v4037 = vmul.f32 %v4016, %v4033
        %v4038 = vadd.f32 %v4010, %v4034
        %v4039 = vadd.f32 %v4011, %v4035
        %v4040 = vadd.f32 %v4012, %v4036
        %v4041 = vadd.f32 %v4013, %v4037
        %4042 = vset.pattern.permute.xlu0 2
        %4043 = vperm.xlu0 %4042, %v3978
        %v4044 = vpop.permute.xlu0 %4043
        %v4046 = vlaneseq
        %v4047 = vshrl.u32 %v4046, 7
        %v4048 = vsub.s32 2, %v4047
        %v4049 = vrot.slane %v3962, %v4048
        %v4050 = vlaneseq
        %v4051 = vshrl.u32 %v4050, 7
        %v4052 = vsub.s32 2, %v4051
        %v4053 = vrot.slane %v3963, %v4052
        %v4054 = vlaneseq
        %v4055 = vshrl.u32 %v4054, 7
        %v4056 = vsub.s32 2, %v4055
        %v4057 = vrot.slane %v3964, %v4056
        %v4058 = vlaneseq
        %v4059 = vshrl.u32 %v4058, 7
        %v4060 = vsub.s32 2, %v4059
        %v4061 = vrot.slane %v3965, %v4060
        %v4062 = vmul.f32 %v4044, %v4049
        %v4063 = vmul.f32 %v4044, %v4053
        %v4064 = vmul.f32 %v4044, %v4057
        %v4065 = vmul.f32 %v4044, %v4061
        %v4066 = vadd.f32 %v4038, %v4062
        %v4067 = vadd.f32 %v4039, %v4063
        %v4068 = vadd.f32 %v4040, %v4064
        %v4069 = vadd.f32 %v4041, %v4065
        %4070 = vset.pattern.permute.xlu0 3
        %4071 = vperm.xlu0 %4070, %v3978
        %v4072 = vpop.permute.xlu0 %4071
        %v4074 = vlaneseq
        %v4075 = vshrl.u32 %v4074, 7
        %v4076 = vsub.s32 3, %v4075
        %v4077 = vrot.slane %v3962, %v4076
        %v4078 = vlaneseq
        %v4079 = vshrl.u32 %v4078, 7
        %v4080 = vsub.s32 3, %v4079
        %v4081 = vrot.slane %v3963, %v4080
        %v4082 = vlaneseq
        %v4083 = vshrl.u32 %v4082, 7
        %v4084 = vsub.s32 3, %v4083
        %v4085 = vrot.slane %v3964, %v4084
        %v4086 = vlaneseq
        %v4087 = vshrl.u32 %v4086, 7
        %v4088 = vsub.s32 3, %v4087
        %v4089 = vrot.slane %v3965, %v4088
        %v4090 = vmul.f32 %v4072, %v4077
        %v4091 = vmul.f32 %v4072, %v4081
        %v4092 = vmul.f32 %v4072, %v4085
        %v4093 = vmul.f32 %v4072, %v4089
        %v4094 = vadd.f32 %v4066, %v4090
        %v4095 = vadd.f32 %v4067, %v4091
        %v4096 = vadd.f32 %v4068, %v4092
        %v4097 = vadd.f32 %v4069, %v4093
        %4098 = vset.pattern.permute.xlu0 4
        %4099 = vperm.xlu0 %4098, %v3978
        %v4100 = vpop.permute.xlu0 %4099
        %v4102 = vlaneseq
        %v4103 = vshrl.u32 %v4102, 7
        %v4104 = vsub.s32 4, %v4103
        %v4105 = vrot.slane %v3962, %v4104
        %v4106 = vlaneseq
        %v4107 = vshrl.u32 %v4106, 7
        %v4108 = vsub.s32 4, %v4107
        %v4109 = vrot.slane %v3963, %v4108
        %v4110 = vlaneseq
        %v4111 = vshrl.u32 %v4110, 7
        %v4112 = vsub.s32 4, %v4111
        %v4113 = vrot.slane %v3964, %v4112
        %v4114 = vlaneseq
        %v4115 = vshrl.u32 %v4114, 7
        %v4116 = vsub.s32 4, %v4115
        %v4117 = vrot.slane %v3965, %v4116
        %v4118 = vmul.f32 %v4100, %v4105
        %v4119 = vmul.f32 %v4100, %v4109
        %v4120 = vmul.f32 %v4100, %v4113
        %v4121 = vmul.f32 %v4100, %v4117
        %v4122 = vadd.f32 %v4094, %v4118
        %v4123 = vadd.f32 %v4095, %v4119
        %v4124 = vadd.f32 %v4096, %v4120
        %v4125 = vadd.f32 %v4097, %v4121
        %4126 = vset.pattern.permute.xlu0 5
        %4127 = vperm.xlu0 %4126, %v3978
        %v4128 = vpop.permute.xlu0 %4127
        %v4130 = vlaneseq
        %v4131 = vshrl.u32 %v4130, 7
        %v4132 = vsub.s32 5, %v4131
        %v4133 = vrot.slane %v3962, %v4132
        %v4134 = vlaneseq
        %v4135 = vshrl.u32 %v4134, 7
        %v4136 = vsub.s32 5, %v4135
        %v4137 = vrot.slane %v3963, %v4136
        %v4138 = vlaneseq
        %v4139 = vshrl.u32 %v4138, 7
        %v4140 = vsub.s32 5, %v4139
        %v4141 = vrot.slane %v3964, %v4140
        %v4142 = vlaneseq
        %v4143 = vshrl.u32 %v4142, 7
        %v4144 = vsub.s32 5, %v4143
        %v4145 = vrot.slane %v3965, %v4144
        %v4146 = vmul.f32 %v4128, %v4133
        %v4147 = vmul.f32 %v4128, %v4137
        %v4148 = vmul.f32 %v4128, %v4141
        %v4149 = vmul.f32 %v4128, %v4145
        %v4150 = vadd.f32 %v4122, %v4146
        %v4151 = vadd.f32 %v4123, %v4147
        %v4152 = vadd.f32 %v4124, %v4148
        %v4153 = vadd.f32 %v4125, %v4149
        %4154 = vset.pattern.permute.xlu0 6
        %4155 = vperm.xlu0 %4154, %v3978
        %v4156 = vpop.permute.xlu0 %4155
        %v4158 = vlaneseq
        %v4159 = vshrl.u32 %v4158, 7
        %v4160 = vsub.s32 6, %v4159
        %v4161 = vrot.slane %v3962, %v4160
        %v4162 = vlaneseq
        %v4163 = vshrl.u32 %v4162, 7
        %v4164 = vsub.s32 6, %v4163
        %v4165 = vrot.slane %v3963, %v4164
        %v4166 = vlaneseq
        %v4167 = vshrl.u32 %v4166, 7
        %v4168 = vsub.s32 6, %v4167
        %v4169 = vrot.slane %v3964, %v4168
        %v4170 = vlaneseq
        %v4171 = vshrl.u32 %v4170, 7
        %v4172 = vsub.s32 6, %v4171
        %v4173 = vrot.slane %v3965, %v4172
        %v4174 = vmul.f32 %v4156, %v4161
        %v4175 = vmul.f32 %v4156, %v4165
        %v4176 = vmul.f32 %v4156, %v4169
        %v4177 = vmul.f32 %v4156, %v4173
        %v4178 = vadd.f32 %v4150, %v4174
        %v4179 = vadd.f32 %v4151, %v4175
        %v4180 = vadd.f32 %v4152, %v4176
        %v4181 = vadd.f32 %v4153, %v4177
        %4182 = vset.pattern.permute.xlu0 7
        %4183 = vperm.xlu0 %4182, %v3978
        %v4184 = vpop.permute.xlu0 %4183
        %v4186 = vlaneseq
        %v4187 = vshrl.u32 %v4186, 7
        %v4188 = vsub.s32 7, %v4187
        %v4189 = vrot.slane %v3962, %v4188
        %v4190 = vlaneseq
        %v4191 = vshrl.u32 %v4190, 7
        %v4192 = vsub.s32 7, %v4191
        %v4193 = vrot.slane %v3963, %v4192
        %v4194 = vlaneseq
        %v4195 = vshrl.u32 %v4194, 7
        %v4196 = vsub.s32 7, %v4195
        %v4197 = vrot.slane %v3964, %v4196
        %v4198 = vlaneseq
        %v4199 = vshrl.u32 %v4198, 7
        %v4200 = vsub.s32 7, %v4199
        %v4201 = vrot.slane %v3965, %v4200
        %v4202 = vmul.f32 %v4184, %v4189
        %v4203 = vmul.f32 %v4184, %v4193
        %v4204 = vmul.f32 %v4184, %v4197
        %v4205 = vmul.f32 %v4184, %v4201
        %v4206 = vadd.f32 %v4178, %v4202
        %v4207 = vadd.f32 %v4179, %v4203
        %v4208 = vadd.f32 %v4180, %v4204
        %v4209 = vadd.f32 %v4181, %v4205
        %4210 = vset.pattern.permute.xlu0 8
        %4211 = vperm.xlu0 %4210, %v3978
        %v4212 = vpop.permute.xlu0 %4211
        %v4214 = vlaneseq
        %v4215 = vshrl.u32 %v4214, 7
        %v4216 = vsub.s32 0, %v4215
        %v4217 = vrot.slane %v3966, %v4216
        %v4218 = vlaneseq
        %v4219 = vshrl.u32 %v4218, 7
        %v4220 = vsub.s32 0, %v4219
        %v4221 = vrot.slane %v3967, %v4220
        %v4222 = vlaneseq
        %v4223 = vshrl.u32 %v4222, 7
        %v4224 = vsub.s32 0, %v4223
        %v4225 = vrot.slane %v3968, %v4224
        %v4226 = vlaneseq
        %v4227 = vshrl.u32 %v4226, 7
        %v4228 = vsub.s32 0, %v4227
        %v4229 = vrot.slane %v3969, %v4228
        %v4230 = vmul.f32 %v4212, %v4217
        %v4231 = vmul.f32 %v4212, %v4221
        %v4232 = vmul.f32 %v4212, %v4225
        %v4233 = vmul.f32 %v4212, %v4229
        %v4234 = vadd.f32 %v4206, %v4230
        %v4235 = vadd.f32 %v4207, %v4231
        %v4236 = vadd.f32 %v4208, %v4232
        %v4237 = vadd.f32 %v4209, %v4233
        %4238 = vset.pattern.permute.xlu0 9
        %4239 = vperm.xlu0 %4238, %v3978
        %v4240 = vpop.permute.xlu0 %4239
        %v4242 = vlaneseq
        %v4243 = vshrl.u32 %v4242, 7
        %v4244 = vsub.s32 1, %v4243
        %v4245 = vrot.slane %v3966, %v4244
        %v4246 = vlaneseq
        %v4247 = vshrl.u32 %v4246, 7
        %v4248 = vsub.s32 1, %v4247
        %v4249 = vrot.slane %v3967, %v4248
        %v4250 = vlaneseq
        %v4251 = vshrl.u32 %v4250, 7
        %v4252 = vsub.s32 1, %v4251
        %v4253 = vrot.slane %v3968, %v4252
        %v4254 = vlaneseq
        %v4255 = vshrl.u32 %v4254, 7
        %v4256 = vsub.s32 1, %v4255
        %v4257 = vrot.slane %v3969, %v4256
        %v4258 = vmul.f32 %v4240, %v4245
        %v4259 = vmul.f32 %v4240, %v4249
        %v4260 = vmul.f32 %v4240, %v4253
        %v4261 = vmul.f32 %v4240, %v4257
        %v4262 = vadd.f32 %v4234, %v4258
        %v4263 = vadd.f32 %v4235, %v4259
        %v4264 = vadd.f32 %v4236, %v4260
        %v4265 = vadd.f32 %v4237, %v4261
        %4266 = vset.pattern.permute.xlu0 10
        %4267 = vperm.xlu0 %4266, %v3978
        %v4268 = vpop.permute.xlu0 %4267
        %v4270 = vlaneseq
        %v4271 = vshrl.u32 %v4270, 7
        %v4272 = vsub.s32 2, %v4271
        %v4273 = vrot.slane %v3966, %v4272
        %v4274 = vlaneseq
        %v4275 = vshrl.u32 %v4274, 7
        %v4276 = vsub.s32 2, %v4275
        %v4277 = vrot.slane %v3967, %v4276
        %v4278 = vlaneseq
        %v4279 = vshrl.u32 %v4278, 7
        %v4280 = vsub.s32 2, %v4279
        %v4281 = vrot.slane %v3968, %v4280
        %v4282 = vlaneseq
        %v4283 = vshrl.u32 %v4282, 7
        %v4284 = vsub.s32 2, %v4283
        %v4285 = vrot.slane %v3969, %v4284
        %v4286 = vmul.f32 %v4268, %v4273
        %v4287 = vmul.f32 %v4268, %v4277
        %v4288 = vmul.f32 %v4268, %v4281
        %v4289 = vmul.f32 %v4268, %v4285
        %v4290 = vadd.f32 %v4262, %v4286
        %v4291 = vadd.f32 %v4263, %v4287
        %v4292 = vadd.f32 %v4264, %v4288
        %v4293 = vadd.f32 %v4265, %v4289
        %4294 = vset.pattern.permute.xlu0 11
        %4295 = vperm.xlu0 %4294, %v3978
        %v4296 = vpop.permute.xlu0 %4295
        %v4298 = vlaneseq
        %v4299 = vshrl.u32 %v4298, 7
        %v4300 = vsub.s32 3, %v4299
        %v4301 = vrot.slane %v3966, %v4300
        %v4302 = vlaneseq
        %v4303 = vshrl.u32 %v4302, 7
        %v4304 = vsub.s32 3, %v4303
        %v4305 = vrot.slane %v3967, %v4304
        %v4306 = vlaneseq
        %v4307 = vshrl.u32 %v4306, 7
        %v4308 = vsub.s32 3, %v4307
        %v4309 = vrot.slane %v3968, %v4308
        %v4310 = vlaneseq
        %v4311 = vshrl.u32 %v4310, 7
        %v4312 = vsub.s32 3, %v4311
        %v4313 = vrot.slane %v3969, %v4312
        %v4314 = vmul.f32 %v4296, %v4301
        %v4315 = vmul.f32 %v4296, %v4305
        %v4316 = vmul.f32 %v4296, %v4309
        %v4317 = vmul.f32 %v4296, %v4313
        %v4318 = vadd.f32 %v4290, %v4314
        %v4319 = vadd.f32 %v4291, %v4315
        %v4320 = vadd.f32 %v4292, %v4316
        %v4321 = vadd.f32 %v4293, %v4317
        %4322 = vset.pattern.permute.xlu0 12
        %4323 = vperm.xlu0 %4322, %v3978
        %v4324 = vpop.permute.xlu0 %4323
        %v4326 = vlaneseq
        %v4327 = vshrl.u32 %v4326, 7
        %v4328 = vsub.s32 4, %v4327
        %v4329 = vrot.slane %v3966, %v4328
        %v4330 = vlaneseq
        %v4331 = vshrl.u32 %v4330, 7
        %v4332 = vsub.s32 4, %v4331
        %v4333 = vrot.slane %v3967, %v4332
        %v4334 = vlaneseq
        %v4335 = vshrl.u32 %v4334, 7
        %v4336 = vsub.s32 4, %v4335
        %v4337 = vrot.slane %v3968, %v4336
        %v4338 = vlaneseq
        %v4339 = vshrl.u32 %v4338, 7
        %v4340 = vsub.s32 4, %v4339
        %v4341 = vrot.slane %v3969, %v4340
        %v4342 = vmul.f32 %v4324, %v4329
        %v4343 = vmul.f32 %v4324, %v4333
        %v4344 = vmul.f32 %v4324, %v4337
        %v4345 = vmul.f32 %v4324, %v4341
        %v4346 = vadd.f32 %v4318, %v4342
        %v4347 = vadd.f32 %v4319, %v4343
        %v4348 = vadd.f32 %v4320, %v4344
        %v4349 = vadd.f32 %v4321, %v4345
        %4350 = vset.pattern.permute.xlu0 13
        %4351 = vperm.xlu0 %4350, %v3978
        %v4352 = vpop.permute.xlu0 %4351
        %v4354 = vlaneseq
        %v4355 = vshrl.u32 %v4354, 7
        %v4356 = vsub.s32 5, %v4355
        %v4357 = vrot.slane %v3966, %v4356
        %v4358 = vlaneseq
        %v4359 = vshrl.u32 %v4358, 7
        %v4360 = vsub.s32 5, %v4359
        %v4361 = vrot.slane %v3967, %v4360
        %v4362 = vlaneseq
        %v4363 = vshrl.u32 %v4362, 7
        %v4364 = vsub.s32 5, %v4363
        %v4365 = vrot.slane %v3968, %v4364
        %v4366 = vlaneseq
        %v4367 = vshrl.u32 %v4366, 7
        %v4368 = vsub.s32 5, %v4367
        %v4369 = vrot.slane %v3969, %v4368
        %v4370 = vmul.f32 %v4352, %v4357
        %v4371 = vmul.f32 %v4352, %v4361
        %v4372 = vmul.f32 %v4352, %v4365
        %v4373 = vmul.f32 %v4352, %v4369
        %v4374 = vadd.f32 %v4346, %v4370
        %v4375 = vadd.f32 %v4347, %v4371
        %v4376 = vadd.f32 %v4348, %v4372
        %v4377 = vadd.f32 %v4349, %v4373
        %4378 = vset.pattern.permute.xlu0 14
        %4379 = vperm.xlu0 %4378, %v3978
        %v4380 = vpop.permute.xlu0 %4379
        %v4382 = vlaneseq
        %v4383 = vshrl.u32 %v4382, 7
        %v4384 = vsub.s32 6, %v4383
        %v4385 = vrot.slane %v3966, %v4384
        %v4386 = vlaneseq
        %v4387 = vshrl.u32 %v4386, 7
        %v4388 = vsub.s32 6, %v4387
        %v4389 = vrot.slane %v3967, %v4388
        %v4390 = vlaneseq
        %v4391 = vshrl.u32 %v4390, 7
        %v4392 = vsub.s32 6, %v4391
        %v4393 = vrot.slane %v3968, %v4392
        %v4394 = vlaneseq
        %v4395 = vshrl.u32 %v4394, 7
        %v4396 = vsub.s32 6, %v4395
        %v4397 = vrot.slane %v3969, %v4396
        %v4398 = vmul.f32 %v4380, %v4385
        %v4399 = vmul.f32 %v4380, %v4389
        %v4400 = vmul.f32 %v4380, %v4393
        %v4401 = vmul.f32 %v4380, %v4397
        %v4402 = vadd.f32 %v4374, %v4398
        %v4403 = vadd.f32 %v4375, %v4399
        %v4404 = vadd.f32 %v4376, %v4400
        %v4405 = vadd.f32 %v4377, %v4401
        %4406 = vset.pattern.permute.xlu0 15
        %4407 = vperm.xlu0 %4406, %v3978
        %v4408 = vpop.permute.xlu0 %4407
        %v4410 = vlaneseq
        %v4411 = vshrl.u32 %v4410, 7
        %v4412 = vsub.s32 7, %v4411
        %v4413 = vrot.slane %v3966, %v4412
        %v4414 = vlaneseq
        %v4415 = vshrl.u32 %v4414, 7
        %v4416 = vsub.s32 7, %v4415
        %v4417 = vrot.slane %v3967, %v4416
        %v4418 = vlaneseq
        %v4419 = vshrl.u32 %v4418, 7
        %v4420 = vsub.s32 7, %v4419
        %v4421 = vrot.slane %v3968, %v4420
        %v4422 = vlaneseq
        %v4423 = vshrl.u32 %v4422, 7
        %v4424 = vsub.s32 7, %v4423
        %v4425 = vrot.slane %v3969, %v4424
        %v4426 = vmul.f32 %v4408, %v4413
        %v4427 = vmul.f32 %v4408, %v4417
        %v4428 = vmul.f32 %v4408, %v4421
        %v4429 = vmul.f32 %v4408, %v4425
        %v4430 = vadd.f32 %v4402, %v4426
        %v4431 = vadd.f32 %v4403, %v4427
        %v4432 = vadd.f32 %v4404, %v4428
        %v4433 = vadd.f32 %v4405, %v4429
        %4434 = vset.pattern.permute.xlu0 16
        %4435 = vperm.xlu0 %4434, %v3978
        %v4436 = vpop.permute.xlu0 %4435
        %v4438 = vlaneseq
        %v4439 = vshrl.u32 %v4438, 7
        %v4440 = vsub.s32 0, %v4439
        %v4441 = vrot.slane %v3970, %v4440
        %v4442 = vlaneseq
        %v4443 = vshrl.u32 %v4442, 7
        %v4444 = vsub.s32 0, %v4443
        %v4445 = vrot.slane %v3971, %v4444
        %v4446 = vlaneseq
        %v4447 = vshrl.u32 %v4446, 7
        %v4448 = vsub.s32 0, %v4447
        %v4449 = vrot.slane %v3972, %v4448
        %v4450 = vlaneseq
        %v4451 = vshrl.u32 %v4450, 7
        %v4452 = vsub.s32 0, %v4451
        %v4453 = vrot.slane %v3973, %v4452
        %v4454 = vmul.f32 %v4436, %v4441
        %v4455 = vmul.f32 %v4436, %v4445
        %v4456 = vmul.f32 %v4436, %v4449
        %v4457 = vmul.f32 %v4436, %v4453
        %v4458 = vadd.f32 %v4430, %v4454
        %v4459 = vadd.f32 %v4431, %v4455
        %v4460 = vadd.f32 %v4432, %v4456
        %v4461 = vadd.f32 %v4433, %v4457
        %4462 = vset.pattern.permute.xlu0 17
        %4463 = vperm.xlu0 %4462, %v3978
        %v4464 = vpop.permute.xlu0 %4463
        %v4466 = vlaneseq
        %v4467 = vshrl.u32 %v4466, 7
        %v4468 = vsub.s32 1, %v4467
        %v4469 = vrot.slane %v3970, %v4468
        %v4470 = vlaneseq
        %v4471 = vshrl.u32 %v4470, 7
        %v4472 = vsub.s32 1, %v4471
        %v4473 = vrot.slane %v3971, %v4472
        %v4474 = vlaneseq
        %v4475 = vshrl.u32 %v4474, 7
        %v4476 = vsub.s32 1, %v4475
        %v4477 = vrot.slane %v3972, %v4476
        %v4478 = vlaneseq
        %v4479 = vshrl.u32 %v4478, 7
        %v4480 = vsub.s32 1, %v4479
        %v4481 = vrot.slane %v3973, %v4480
        %v4482 = vmul.f32 %v4464, %v4469
        %v4483 = vmul.f32 %v4464, %v4473
        %v4484 = vmul.f32 %v4464, %v4477
        %v4485 = vmul.f32 %v4464, %v4481
        %v4486 = vadd.f32 %v4458, %v4482
        %v4487 = vadd.f32 %v4459, %v4483
        %v4488 = vadd.f32 %v4460, %v4484
        %v4489 = vadd.f32 %v4461, %v4485
        %4490 = vset.pattern.permute.xlu0 18
        %4491 = vperm.xlu0 %4490, %v3978
        %v4492 = vpop.permute.xlu0 %4491
        %v4494 = vlaneseq
        %v4495 = vshrl.u32 %v4494, 7
        %v4496 = vsub.s32 2, %v4495
        %v4497 = vrot.slane %v3970, %v4496
        %v4498 = vlaneseq
        %v4499 = vshrl.u32 %v4498, 7
        %v4500 = vsub.s32 2, %v4499
        %v4501 = vrot.slane %v3971, %v4500
        %v4502 = vlaneseq
        %v4503 = vshrl.u32 %v4502, 7
        %v4504 = vsub.s32 2, %v4503
        %v4505 = vrot.slane %v3972, %v4504
        %v4506 = vlaneseq
        %v4507 = vshrl.u32 %v4506, 7
        %v4508 = vsub.s32 2, %v4507
        %v4509 = vrot.slane %v3973, %v4508
        %v4510 = vmul.f32 %v4492, %v4497
        %v4511 = vmul.f32 %v4492, %v4501
        %v4512 = vmul.f32 %v4492, %v4505
        %v4513 = vmul.f32 %v4492, %v4509
        %v4514 = vadd.f32 %v4486, %v4510
        %v4515 = vadd.f32 %v4487, %v4511
        %v4516 = vadd.f32 %v4488, %v4512
        %v4517 = vadd.f32 %v4489, %v4513
        %4518 = vset.pattern.permute.xlu0 19
        %4519 = vperm.xlu0 %4518, %v3978
        %v4520 = vpop.permute.xlu0 %4519
        %v4522 = vlaneseq
        %v4523 = vshrl.u32 %v4522, 7
        %v4524 = vsub.s32 3, %v4523
        %v4525 = vrot.slane %v3970, %v4524
        %v4526 = vlaneseq
        %v4527 = vshrl.u32 %v4526, 7
        %v4528 = vsub.s32 3, %v4527
        %v4529 = vrot.slane %v3971, %v4528
        %v4530 = vlaneseq
        %v4531 = vshrl.u32 %v4530, 7
        %v4532 = vsub.s32 3, %v4531
        %v4533 = vrot.slane %v3972, %v4532
        %v4534 = vlaneseq
        %v4535 = vshrl.u32 %v4534, 7
        %v4536 = vsub.s32 3, %v4535
        %v4537 = vrot.slane %v3973, %v4536
        %v4538 = vmul.f32 %v4520, %v4525
        %v4539 = vmul.f32 %v4520, %v4529
        %v4540 = vmul.f32 %v4520, %v4533
        %v4541 = vmul.f32 %v4520, %v4537
        %v4542 = vadd.f32 %v4514, %v4538
        %v4543 = vadd.f32 %v4515, %v4539
        %v4544 = vadd.f32 %v4516, %v4540
        %v4545 = vadd.f32 %v4517, %v4541
        %4546 = vset.pattern.permute.xlu0 20
        %4547 = vperm.xlu0 %4546, %v3978
        %v4548 = vpop.permute.xlu0 %4547
        %v4550 = vlaneseq
        %v4551 = vshrl.u32 %v4550, 7
        %v4552 = vsub.s32 4, %v4551
        %v4553 = vrot.slane %v3970, %v4552
        %v4554 = vlaneseq
        %v4555 = vshrl.u32 %v4554, 7
        %v4556 = vsub.s32 4, %v4555
        %v4557 = vrot.slane %v3971, %v4556
        %v4558 = vlaneseq
        %v4559 = vshrl.u32 %v4558, 7
        %v4560 = vsub.s32 4, %v4559
        %v4561 = vrot.slane %v3972, %v4560
        %v4562 = vlaneseq
        %v4563 = vshrl.u32 %v4562, 7
        %v4564 = vsub.s32 4, %v4563
        %v4565 = vrot.slane %v3973, %v4564
        %v4566 = vmul.f32 %v4548, %v4553
        %v4567 = vmul.f32 %v4548, %v4557
        %v4568 = vmul.f32 %v4548, %v4561
        %v4569 = vmul.f32 %v4548, %v4565
        %v4570 = vadd.f32 %v4542, %v4566
        %v4571 = vadd.f32 %v4543, %v4567
        %v4572 = vadd.f32 %v4544, %v4568
        %v4573 = vadd.f32 %v4545, %v4569
        %4574 = vset.pattern.permute.xlu0 21
        %4575 = vperm.xlu0 %4574, %v3978
        %v4576 = vpop.permute.xlu0 %4575
        %v4578 = vlaneseq
        %v4579 = vshrl.u32 %v4578, 7
        %v4580 = vsub.s32 5, %v4579
        %v4581 = vrot.slane %v3970, %v4580
        %v4582 = vlaneseq
        %v4583 = vshrl.u32 %v4582, 7
        %v4584 = vsub.s32 5, %v4583
        %v4585 = vrot.slane %v3971, %v4584
        %v4586 = vlaneseq
        %v4587 = vshrl.u32 %v4586, 7
        %v4588 = vsub.s32 5, %v4587
        %v4589 = vrot.slane %v3972, %v4588
        %v4590 = vlaneseq
        %v4591 = vshrl.u32 %v4590, 7
        %v4592 = vsub.s32 5, %v4591
        %v4593 = vrot.slane %v3973, %v4592
        %v4594 = vmul.f32 %v4576, %v4581
        %v4595 = vmul.f32 %v4576, %v4585
        %v4596 = vmul.f32 %v4576, %v4589
        %v4597 = vmul.f32 %v4576, %v4593
        %v4598 = vadd.f32 %v4570, %v4594
        %v4599 = vadd.f32 %v4571, %v4595
        %v4600 = vadd.f32 %v4572, %v4596
        %v4601 = vadd.f32 %v4573, %v4597
        %4602 = vset.pattern.permute.xlu0 22
        %4603 = vperm.xlu0 %4602, %v3978
        %v4604 = vpop.permute.xlu0 %4603
        %v4606 = vlaneseq
        %v4607 = vshrl.u32 %v4606, 7
        %v4608 = vsub.s32 6, %v4607
        %v4609 = vrot.slane %v3970, %v4608
        %v4610 = vlaneseq
        %v4611 = vshrl.u32 %v4610, 7
        %v4612 = vsub.s32 6, %v4611
        %v4613 = vrot.slane %v3971, %v4612
        %v4614 = vlaneseq
        %v4615 = vshrl.u32 %v4614, 7
        %v4616 = vsub.s32 6, %v4615
        %v4617 = vrot.slane %v3972, %v4616
        %v4618 = vlaneseq
        %v4619 = vshrl.u32 %v4618, 7
        %v4620 = vsub.s32 6, %v4619
        %v4621 = vrot.slane %v3973, %v4620
        %v4622 = vmul.f32 %v4604, %v4609
        %v4623 = vmul.f32 %v4604, %v4613
        %v4624 = vmul.f32 %v4604, %v4617
        %v4625 = vmul.f32 %v4604, %v4621
        %v4626 = vadd.f32 %v4598, %v4622
        %v4627 = vadd.f32 %v4599, %v4623
        %v4628 = vadd.f32 %v4600, %v4624
        %v4629 = vadd.f32 %v4601, %v4625
        %4630 = vset.pattern.permute.xlu0 23
        %4631 = vperm.xlu0 %4630, %v3978
        %v4632 = vpop.permute.xlu0 %4631
        %v4634 = vlaneseq
        %v4635 = vshrl.u32 %v4634, 7
        %v4636 = vsub.s32 7, %v4635
        %v4637 = vrot.slane %v3970, %v4636
        %v4638 = vlaneseq
        %v4639 = vshrl.u32 %v4638, 7
        %v4640 = vsub.s32 7, %v4639
        %v4641 = vrot.slane %v3971, %v4640
        %v4642 = vlaneseq
        %v4643 = vshrl.u32 %v4642, 7
        %v4644 = vsub.s32 7, %v4643
        %v4645 = vrot.slane %v3972, %v4644
        %v4646 = vlaneseq
        %v4647 = vshrl.u32 %v4646, 7
        %v4648 = vsub.s32 7, %v4647
        %v4649 = vrot.slane %v3973, %v4648
        %v4650 = vmul.f32 %v4632, %v4637
        %v4651 = vmul.f32 %v4632, %v4641
        %v4652 = vmul.f32 %v4632, %v4645
        %v4653 = vmul.f32 %v4632, %v4649
        %v4654 = vadd.f32 %v4626, %v4650
        %v4655 = vadd.f32 %v4627, %v4651
        %v4656 = vadd.f32 %v4628, %v4652
        %v4657 = vadd.f32 %v4629, %v4653
        %4658 = vset.pattern.permute.xlu0 24
        %4659 = vperm.xlu0 %4658, %v3978
        %v4660 = vpop.permute.xlu0 %4659
        %v4662 = vlaneseq
        %v4663 = vshrl.u32 %v4662, 7
        %v4664 = vsub.s32 0, %v4663
        %v4665 = vrot.slane %v3974, %v4664
        %v4666 = vlaneseq
        %v4667 = vshrl.u32 %v4666, 7
        %v4668 = vsub.s32 0, %v4667
        %v4669 = vrot.slane %v3975, %v4668
        %v4670 = vlaneseq
        %v4671 = vshrl.u32 %v4670, 7
        %v4672 = vsub.s32 0, %v4671
        %v4673 = vrot.slane %v3976, %v4672
        %v4674 = vlaneseq
        %v4675 = vshrl.u32 %v4674, 7
        %v4676 = vsub.s32 0, %v4675
        %v4677 = vrot.slane %v3977, %v4676
        %v4678 = vmul.f32 %v4660, %v4665
        %v4679 = vmul.f32 %v4660, %v4669
        %v4680 = vmul.f32 %v4660, %v4673
        %v4681 = vmul.f32 %v4660, %v4677
        %v4682 = vadd.f32 %v4654, %v4678
        %v4683 = vadd.f32 %v4655, %v4679
        %v4684 = vadd.f32 %v4656, %v4680
        %v4685 = vadd.f32 %v4657, %v4681
        %4686 = vset.pattern.permute.xlu0 25
        %4687 = vperm.xlu0 %4686, %v3978
        %v4688 = vpop.permute.xlu0 %4687
        %v4690 = vlaneseq
        %v4691 = vshrl.u32 %v4690, 7
        %v4692 = vsub.s32 1, %v4691
        %v4693 = vrot.slane %v3974, %v4692
        %v4694 = vlaneseq
        %v4695 = vshrl.u32 %v4694, 7
        %v4696 = vsub.s32 1, %v4695
        %v4697 = vrot.slane %v3975, %v4696
        %v4698 = vlaneseq
        %v4699 = vshrl.u32 %v4698, 7
        %v4700 = vsub.s32 1, %v4699
        %v4701 = vrot.slane %v3976, %v4700
        %v4702 = vlaneseq
        %v4703 = vshrl.u32 %v4702, 7
        %v4704 = vsub.s32 1, %v4703
        %v4705 = vrot.slane %v3977, %v4704
        %v4706 = vmul.f32 %v4688, %v4693
        %v4707 = vmul.f32 %v4688, %v4697
        %v4708 = vmul.f32 %v4688, %v4701
        %v4709 = vmul.f32 %v4688, %v4705
        %v4710 = vadd.f32 %v4682, %v4706
        %v4711 = vadd.f32 %v4683, %v4707
        %v4712 = vadd.f32 %v4684, %v4708
        %v4713 = vadd.f32 %v4685, %v4709
        %4714 = vset.pattern.permute.xlu0 26
        %4715 = vperm.xlu0 %4714, %v3978
        %v4716 = vpop.permute.xlu0 %4715
        %v4718 = vlaneseq
        %v4719 = vshrl.u32 %v4718, 7
        %v4720 = vsub.s32 2, %v4719
        %v4721 = vrot.slane %v3974, %v4720
        %v4722 = vlaneseq
        %v4723 = vshrl.u32 %v4722, 7
        %v4724 = vsub.s32 2, %v4723
        %v4725 = vrot.slane %v3975, %v4724
        %v4726 = vlaneseq
        %v4727 = vshrl.u32 %v4726, 7
        %v4728 = vsub.s32 2, %v4727
        %v4729 = vrot.slane %v3976, %v4728
        %v4730 = vlaneseq
        %v4731 = vshrl.u32 %v4730, 7
        %v4732 = vsub.s32 2, %v4731
        %v4733 = vrot.slane %v3977, %v4732
        %v4734 = vmul.f32 %v4716, %v4721
        %v4735 = vmul.f32 %v4716, %v4725
        %v4736 = vmul.f32 %v4716, %v4729
        %v4737 = vmul.f32 %v4716, %v4733
        %v4738 = vadd.f32 %v4710, %v4734
        %v4739 = vadd.f32 %v4711, %v4735
        %v4740 = vadd.f32 %v4712, %v4736
        %v4741 = vadd.f32 %v4713, %v4737
        %4742 = vset.pattern.permute.xlu0 27
        %4743 = vperm.xlu0 %4742, %v3978
        %v4744 = vpop.permute.xlu0 %4743
        %v4746 = vlaneseq
        %v4747 = vshrl.u32 %v4746, 7
        %v4748 = vsub.s32 3, %v4747
        %v4749 = vrot.slane %v3974, %v4748
        %v4750 = vlaneseq
        %v4751 = vshrl.u32 %v4750, 7
        %v4752 = vsub.s32 3, %v4751
        %v4753 = vrot.slane %v3975, %v4752
        %v4754 = vlaneseq
        %v4755 = vshrl.u32 %v4754, 7
        %v4756 = vsub.s32 3, %v4755
        %v4757 = vrot.slane %v3976, %v4756
        %v4758 = vlaneseq
        %v4759 = vshrl.u32 %v4758, 7
        %v4760 = vsub.s32 3, %v4759
        %v4761 = vrot.slane %v3977, %v4760
        %v4762 = vmul.f32 %v4744, %v4749
        %v4763 = vmul.f32 %v4744, %v4753
        %v4764 = vmul.f32 %v4744, %v4757
        %v4765 = vmul.f32 %v4744, %v4761
        %v4766 = vadd.f32 %v4738, %v4762
        %v4767 = vadd.f32 %v4739, %v4763
        %v4768 = vadd.f32 %v4740, %v4764
        %v4769 = vadd.f32 %v4741, %v4765
        %4770 = vset.pattern.permute.xlu0 28
        %4771 = vperm.xlu0 %4770, %v3978
        %v4772 = vpop.permute.xlu0 %4771
        %v4774 = vlaneseq
        %v4775 = vshrl.u32 %v4774, 7
        %v4776 = vsub.s32 4, %v4775
        %v4777 = vrot.slane %v3974, %v4776
        %v4778 = vlaneseq
        %v4779 = vshrl.u32 %v4778, 7
        %v4780 = vsub.s32 4, %v4779
        %v4781 = vrot.slane %v3975, %v4780
        %v4782 = vlaneseq
        %v4783 = vshrl.u32 %v4782, 7
        %v4784 = vsub.s32 4, %v4783
        %v4785 = vrot.slane %v3976, %v4784
        %v4786 = vlaneseq
        %v4787 = vshrl.u32 %v4786, 7
        %v4788 = vsub.s32 4, %v4787
        %v4789 = vrot.slane %v3977, %v4788
        %v4790 = vmul.f32 %v4772, %v4777
        %v4791 = vmul.f32 %v4772, %v4781
        %v4792 = vmul.f32 %v4772, %v4785
        %v4793 = vmul.f32 %v4772, %v4789
        %v4794 = vadd.f32 %v4766, %v4790
        %v4795 = vadd.f32 %v4767, %v4791
        %v4796 = vadd.f32 %v4768, %v4792
        %v4797 = vadd.f32 %v4769, %v4793
        %4798 = vset.pattern.permute.xlu0 29
        %4799 = vperm.xlu0 %4798, %v3978
        %v4800 = vpop.permute.xlu0 %4799
        %v4802 = vlaneseq
        %v4803 = vshrl.u32 %v4802, 7
        %v4804 = vsub.s32 5, %v4803
        %v4805 = vrot.slane %v3974, %v4804
        %v4806 = vlaneseq
        %v4807 = vshrl.u32 %v4806, 7
        %v4808 = vsub.s32 5, %v4807
        %v4809 = vrot.slane %v3975, %v4808
        %v4810 = vlaneseq
        %v4811 = vshrl.u32 %v4810, 7
        %v4812 = vsub.s32 5, %v4811
        %v4813 = vrot.slane %v3976, %v4812
        %v4814 = vlaneseq
        %v4815 = vshrl.u32 %v4814, 7
        %v4816 = vsub.s32 5, %v4815
        %v4817 = vrot.slane %v3977, %v4816
        %v4818 = vmul.f32 %v4800, %v4805
        %v4819 = vmul.f32 %v4800, %v4809
        %v4820 = vmul.f32 %v4800, %v4813
        %v4821 = vmul.f32 %v4800, %v4817
        %v4822 = vadd.f32 %v4794, %v4818
        %v4823 = vadd.f32 %v4795, %v4819
        %v4824 = vadd.f32 %v4796, %v4820
        %v4825 = vadd.f32 %v4797, %v4821
        %v4826 = vmul.f32 %v4822, %v4822
        %v4827 = vmul.f32 %v4823, %v4823
        %v4828 = vmul.f32 %v4824, %v4824
        %v4829 = vmul.f32 %v4825, %v4825
        %v4830 = vsel %vm1631, %v4826, 0.0
        %v4831 = vrot.slane %v4830, 4
        %v4832 = vadd.f32 %v4830, %v4831
        %v4833 = vrot.slane %v4832, 2
        %v4834 = vadd.f32 %v4832, %v4833
        %v4835 = vrot.slane %v4834, 1
        %v4836 = vadd.f32 %v4834, %v4835
        %v4837 = vsel %vm1631, %v4827, 0.0
        %v4838 = vrot.slane %v4837, 4
        %v4839 = vadd.f32 %v4837, %v4838
        %v4840 = vrot.slane %v4839, 2
        %v4841 = vadd.f32 %v4839, %v4840
        %v4842 = vrot.slane %v4841, 1
        %v4843 = vadd.f32 %v4841, %v4842
        %v4844 = vsel %vm1631, %v4828, 0.0
        %v4845 = vrot.slane %v4844, 4
        %v4846 = vadd.f32 %v4844, %v4845
        %v4847 = vrot.slane %v4846, 2
        %v4848 = vadd.f32 %v4846, %v4847
        %v4849 = vrot.slane %v4848, 1
        %v4850 = vadd.f32 %v4848, %v4849
        %v4851 = vsel %vm1631, %v4829, 0.0
        %v4852 = vrot.slane %v4851, 4
        %v4853 = vadd.f32 %v4851, %v4852
        %v4854 = vrot.slane %v4853, 2
        %v4855 = vadd.f32 %v4853, %v4854
        %v4856 = vrot.slane %v4855, 1
        %v4857 = vadd.f32 %v4855, %v4856
        %v4858 = vmax.f32 %v4836, 1e-24
        %v4859 = vmax.f32 %v4843, 1e-24
        %v4860 = vmax.f32 %v4850, 1e-24
        %v4861 = vmax.f32 %v4857, 1e-24
        %v4862 = vrsqrt.pop %v4858
        %v4863 = vrsqrt.pop %v4859
        %v4864 = vrsqrt.pop %v4860
        %v4865 = vrsqrt.pop %v4861
        %v4866 = vmul.f32 %v4822, %v4862
        %v4867 = vmul.f32 %v4823, %v4863
        %v4868 = vmul.f32 %v4824, %v4864
        %v4869 = vmul.f32 %v4825, %v4865
        %v4874 = vcombine.low %v4866, %v4867
        %v4875 = vcombine.low %v4868, %v4869
        %4878 = vst [vmem:[%s272] sm:$0x77] %v4874
        %4879 = vst [vmem:[%s272 + $0x8] sm:$0x77] %v4875
        %s4880 = sand.u32 %s181, 1
        %s4881 = scalar_lea.sflag [#allocation3], %s4880
        %s4882 = sand.u32 %s181, 1
        %s4883 = smul.addr %s4882, 16
        %s4884 = scalar_lea.vmem [#allocation2], %s4883
        // Predicated region
        $region49: #{tpu_custom_call.1} parent=47 // pred_check
          %p4885 = pneg %p191
        $region50: #{tpu_custom_call.1} parent=47 // pred_check_branch
          %4887 = sbr.rel (%p4885) target = $region52
        $region51: #{tpu_custom_call.1} parent=47 // pred_region
          %s4888 = smul.u32 4, %s21
          %s4890 = ssub.s32 256, 256
          %4891 = vsyncadd %s4881, %s4890
          %s4892 = smul.addr %s4888, 64
          %s4893 = scalar_lea.hbm %s7, %s4892
          %s4895 = sshll.u32 %s4884, 4
          %s4896 = int_to_ptr.vmem [resolvable:$true] %s4895
          %4898 = dma.vmem_to_hbm [thread:$0]  %s4896, 256, %s4893, %s4881
        $region52: #{tpu_custom_call.1} parent=47 // pred_fallthru
          _
      $region48: #{tpu_custom_call.1} parent=5 // pred_fallthru
        _
      %p4899 = scmp.le.s32.totalorder 2, %s16
      // Predicated region
      $region53: #{tpu_custom_call.1} parent=5 // pred_check
        %p4900 = pneg %p4899
      $region54: #{tpu_custom_call.1} parent=5 // pred_check_branch
        %4902 = sbr.rel (%p4900) target = $region56
      $region55: #{tpu_custom_call.1} parent=5 // pred_region
        %s4903 = ssub.s32 %s16, 2
        // Predicated region
        $region57: #{tpu_custom_call.1} parent=55 // pred_check
          %p4904 = pneg %p197
        $region58: #{tpu_custom_call.1} parent=55 // pred_check_branch
          %4906 = sbr.rel (%p4904) target = $region60
        $region59: #{tpu_custom_call.1} parent=55 // pred_region
          %s4907 = sand.u32 %s182, 1
          %s4908 = scalar_lea.sflag [#allocation3], %s4907
          %s4909 = sand.u32 %s182, 1
          %s4910 = smul.addr %s4909, 16
          %s4911 = scalar_lea.vmem [#allocation2], %s4910
          %4912 = dma.done %s4908, 256
        $region60: #{tpu_custom_call.1} parent=55 // pred_fallthru
          _
      $region56: #{tpu_custom_call.1} parent=5 // pred_fallthru
        _
    $region6: #{tpu_custom_call.1} parent=1 // loop_footer
      %s20 = sadd.s32 1, %s16
    $region7: #{tpu_custom_call.1} parent=1 // loop_footer_branch
      %15 = sbr.rel target = $region3
    $region8: #{tpu_custom_call.1} parent=1 // loop_exit
      _
    %4913 = vsyncpa [#allocation3], 1
    %s4914 = scalar_lea.sflag [#allocation3], 1
    %4915 = vsyncpa %s4914, 1

</llo_original>
